<compile_context>
chip_gen: v6e
topology: v6e:2x2x1
jax: 0.10.0
libtpu: 0.0.40
codegen_flags: <defaults>
</compile_context>

<pallas_src>
import functools

import jax
import jax.numpy as jnp
from jax import lax
from jax.experimental import pallas as pl
from jax.experimental.pallas import tpu as pltpu


# ----------------------------------------------------------------------------
# Fused forward kernel (TB images per grid step)
# ----------------------------------------------------------------------------
def _lenet5_kernel(x_ref, band1_ref, b1_ref, sel1_ref, band2_ref, b2_ref,
                   sel2_ref, g1_ref, fb1_ref, w2_ref, fb2_ref, w3_ref,
                   fb3_ref, o_ref, *, act, tb):
    f32 = jnp.float32
    bf16 = jnp.bfloat16
    dot = functools.partial(jnp.dot, preferred_element_type=f32)

    def activation(y):
        if act == "relu":
            return jnp.maximum(y, 0.0)
        return 1.0 / (1.0 + jnp.exp(-y))           # exact sigmoid

    m1 = tb * 32 - 4                               # conv1 output rows (t*32+oh)
    m2 = tb * 14 - 4                               # conv2 output rows (t*14+oh)

    # ---- conv1 (1->6, 5x5 valid): one wide-K banded MXU matmul -------------
    xb = x_ref[...].astype(bf16)                               # (tb*32, 32), cast once
    xc = jnp.concatenate([xb[i:i + m1, :] for i in range(5)], axis=1)   # (m1, 160)
    a1 = dot(xc, band1_ref[...]).astype(bf16)                  # (m1, 168) pre-act
    # rows t*32+28..31 of each image are cross-image garbage and never used.

    # ---- maxpool 2x2/2 on pre-activations, then bias + activation ----------
    h1 = jnp.maximum(a1[:, :-1], a1[:, 1:])                    # lane-neighbour max
    v1 = jnp.maximum(h1[:-1, :], h1[1:, :])                    # sublane-neighbour max
    p1 = activation(dot(sel1_ref[...], v1) + b1_ref[...])      # (tb*14, 167) f32
    p1b = p1.astype(bf16)
    # p1b[t*14+r, ci*28+2c] = pooled act of image t, channel ci, (r, c).

    # ---- conv2 (6->16, 5x5 valid): one wide-K banded MXU matmul ------------
    xc2 = jnp.concatenate([p1b[i:i + m2, :] for i in range(5)], axis=1)  # (m2, 835)
    a2 = dot(xc2, band2_ref[...]).astype(bf16)                 # (m2, 160) pre-act

    # ---- maxpool 2x2/2, bias, activation ------------------------------------
    h2 = jnp.maximum(a2[:, :-1], a2[:, 1:])                    # (m2, 159)
    v2 = jnp.maximum(h2[:-1, :], h2[1:, :])                    # (m2-1, 159)
    p2 = activation(dot(sel2_ref[...], v2) + b2_ref[...])      # (5*tb, 159) f32
    p2b = p2.astype(bf16)
    # sel2 emits rows r-major: p2b[r*tb + t, :] = pooled row r of image t.

    # ---- flatten (torch .view order folded into g1) + fc1 / fc2 / fc3 ------
    fcin = jnp.concatenate([p2b[r * tb:(r + 1) * tb, :] for r in range(5)],
                           axis=1)                             # (tb, 795)
    y = dot(fcin, g1_ref[...]) + fb1_ref[...]                  # (tb, 120)
    # TODO(synk): nn.Dropout skipped — default dropout_rate=None makes it identity.
    y = dot(y.astype(bf16), w2_ref[...]) + fb2_ref[...]        # (tb, 84)
    y = dot(y.astype(bf16), w3_ref[...]) + fb3_ref[...]        # (tb, 128) padded logits

    # ---- softmax(dim=1) over the padded 128 lanes (pads get prob 0) --------
    y = y - jnp.max(y, axis=-1, keepdims=True)
    e = jnp.exp(y)
    o_ref[...] = (e / jnp.sum(e, axis=-1, keepdims=True)).astype(o_ref.dtype)


# ----------------------------------------------------------------------------
# One-time weight preprocessing (plain JAX, outside the kernel)
# ----------------------------------------------------------------------------
def _conv_band(w, row_width, block_w, col_stride, ow_count):
    """Banded weight: for kernel row i and input row-matrix X with
    X[oh, k] = value at channel k//block_w, column col_stride*(k % block_w)...,
    the contribution of kernel row i is X_i @ band[i]; output column co*OW+ow.
    The pool column stride is folded in via col_stride."""
    c_out, c_in, kh, kw = w.shape
    k = jnp.arange(row_width)
    ci = jnp.arange(c_in)
    j = jnp.arange(kw)
    ow = jnp.arange(ow_count)
    target = (ci[:, None, None] * block_w
              + col_stride * (ow[None, None, :] + j[None, :, None]))   # (Cin,KW,OW)
    hit = (k[:, None, None, None] == target[None]).astype(w.dtype)     # (rw,Cin,KW,OW)
    band = jnp.einsum("kcjw,ocij->ikow", hit, w)                       # (KH,rw,Cout,OW)
    return band.reshape(kh, row_width, c_out * ow_count)


def _fc1_gather(fc1_w):
    """(5, 159, 120): folds pool2's stride-2 column pick and torch's NCHW
    .view(B, -1) flatten order (co*25 + r*5 + c) into the fc1 weight."""
    k = jnp.arange(159)
    co = jnp.arange(16)
    c = jnp.arange(5)
    target = co[:, None] * 10 + 2 * c[None, :]                         # (16, 5)
    hit = (k[:, None, None] == target[None]).astype(fc1_w.dtype)       # (159, 16, 5)
    w = fc1_w.reshape(16, 5, 5, 120)                                   # [co, r, c, n]
    return jnp.einsum("koc,orcn->rkn", hit, w)                         # (5, 159, 120)


def _pool_row_select(tb, in_rows_per_img, out_rows_per_img, n_in, row_major):
    """0/1 bf16 selection matrix picking row t*in_rows+2r for each (t, r).
    row_major=False -> output row t*out_rows + r (image-major, feeds conv2);
    row_major=True  -> output row r*tb + t (row-major, feeds the fc1 concat)."""
    out_rows = tb * out_rows_per_img
    o = jnp.arange(out_rows)
    if row_major:
        r, t = o // tb, o % tb
    else:
        t, r = o // out_rows_per_img, o % out_rows_per_img
    src = t * in_rows_per_img + 2 * r
    return (jnp.arange(n_in)[None, :] == src[:, None]).astype(jnp.bfloat16)


def prepare_params(params, tb):
    m1 = tb * 32 - 4
    m2 = tb * 14 - 4
    neg = jnp.full((118,), -1e30, jnp.float32)     # pad logits -> softmax prob 0
    return {
        "band1": _conv_band(params["conv1_w"], 32, 32, 1, 28)
                 .reshape(5 * 32, 6 * 28).astype(jnp.bfloat16),
        "b1": jnp.repeat(params["conv1_b"], 28)[:167][None, :].astype(jnp.float32),
        "sel1": _pool_row_select(tb, 32, 14, m1 - 1, row_major=False),
        "band2": _conv_band(params["conv2_w"], 167, 28, 2, 10)
                 .reshape(5 * 167, 16 * 10).astype(jnp.bfloat16),
        "b2": jnp.repeat(params["conv2_b"], 10)[:159][None, :].astype(jnp.float32),
        "sel2": _pool_row_select(tb, 14, 5, m2 - 1, row_major=True),
        "g1": _fc1_gather(params["fc1_w"]).reshape(5 * 159, 120).astype(jnp.bfloat16),
        "fb1": params["fc1_b"][None, :].astype(jnp.float32),
        "w2": params["fc2_w"].astype(jnp.bfloat16),
        "fb2": params["fc2_b"][None, :].astype(jnp.float32),
        "w3": jnp.pad(params["fc3_w"], ((0, 0), (0, 118))).astype(jnp.bfloat16),
        "fb3": jnp.concatenate([params["fc3_b"].astype(jnp.float32), neg])[None, :],
    }


# ----------------------------------------------------------------------------
# Forward: single pallas_call, grid over batch tiles of TB images
# ----------------------------------------------------------------------------
def lenet5_forward(x, prep, tb=8, activation="relu"):
    # tb: images per grid step (tune ~4-5 for v5e, ~8-16 for v6e/v7x).
    assert tb % 8 == 0, "tb must be a multiple of 8 (sublane-aligned output block)"
    B = x.shape[0]
    b_pad = ((B + tb - 1) // tb) * tb
    x3 = x.reshape(B, 32, 32).astype(jnp.float32)
    if b_pad != B:
        x3 = jnp.pad(x3, ((0, b_pad - B), (0, 0), (0, 0)))
    x2 = x3.reshape(b_pad * 32, 32)                 # images stacked along sublanes

    kernel = functools.partial(
        _lenet5_kernel, act="relu" if activation == "relu" else "sigmoid", tb=tb)

    def w_spec(arr):                                # resident weights, DMA'd once
        return pl.BlockSpec(arr.shape, lambda b: (0, 0))

    out = pl.pallas_call(
        kernel,
        out_shape=jax.ShapeDtypeStruct((b_pad, 128), jnp.float32),
        grid=(b_pad // tb,),
        in_specs=[
            pl.BlockSpec((tb * 32, 32), lambda b: (b, 0)),
            w_spec(prep["band1"]), w_spec(prep["b1"]), w_spec(prep["sel1"]),
            w_spec(prep["band2"]), w_spec(prep["b2"]), w_spec(prep["sel2"]),
            w_spec(prep["g1"]), w_spec(prep["fb1"]),
            w_spec(prep["w2"]), w_spec(prep["fb2"]),
            w_spec(prep["w3"]), w_spec(prep["fb3"]),
        ],
        out_specs=pl.BlockSpec((tb, 128), lambda b: (b, 0)),
        compiler_params=pltpu.CompilerParams(
            dimension_semantics=("parallel",)),
    )(x2, prep["band1"], prep["b1"], prep["sel1"], prep["band2"], prep["b2"],
      prep["sel2"], prep["g1"], prep["fb1"], prep["w2"], prep["fb2"],
      prep["w3"], prep["fb3"])
    return out[:B, :10]


# ----------------------------------------------------------------------------
# Params + plain-JAX reference (used only for the self-check)
# ----------------------------------------------------------------------------
def init_params(key):
    ks = jax.random.split(key, 10)

    def u(k, shape, fan_in):
        bound = 1.0 / float(fan_in) ** 0.5
        return jax.random.uniform(k, shape, jnp.float32, -bound, bound)

    return {
        "conv1_w": u(ks[0], (6, 1, 5, 5), 1 * 5 * 5),
        "conv1_b": u(ks[1], (6,), 1 * 5 * 5),
        "conv2_w": u(ks[2], (16, 6, 5, 5), 6 * 5 * 5),
        "conv2_b": u(ks[3], (16,), 6 * 5 * 5),
        # FC weights stored as (in, out): x @ W + b == torch's x @ W.T + b.
        "fc1_w": u(ks[4], (400, 120), 400),
        "fc1_b": u(ks[5], (120,), 400),
        "fc2_w": u(ks[6], (120, 84), 120),
        "fc2_b": u(ks[7], (84,), 120),
        "fc3_w": u(ks[8], (84, 10), 84),
        "fc3_b": u(ks[9], (10,), 84),
    }


def lenet5_reference(x, params, activation="relu"):
    act = (lambda v: jnp.maximum(v, 0.0)) if activation == "relu" else jax.nn.sigmoid

    def conv(inp, w, b):
        y = lax.conv_general_dilated(inp, w, (1, 1), "VALID",
                                     dimension_numbers=("NCHW", "OIHW", "NCHW"))
        return y + b[None, :, None, None]

    def pool(v):
        return lax.reduce_window(v, -jnp.inf, lax.max,
                                 (1, 1, 2, 2), (1, 1, 2, 2), "VALID")

    h = pool(act(conv(x, params["conv1_w"], params["conv1_b"])))
    h = pool(act(conv(h, params["conv2_w"], params["conv2_b"])))
    h = h.reshape(h.shape[0], -1)
    h = h @ params["fc1_w"] + params["fc1_b"]
    h = h @ params["fc2_w"] + params["fc2_b"]
    h = h @ params["fc3_w"] + params["fc3_b"]
    return jax.nn.softmax(h, axis=-1)


if __name__ == "__main__":
    key = jax.random.PRNGKey(0)
    pkey, xkey = jax.random.split(key)
    params = init_params(pkey)

    TB = 8                                     # images per grid step
    prep = prepare_params(params, TB)

    # LeNet5's fc1 (400 = 16*5*5) implies 32x32 single-channel input (NCHW);
    # B=16 -> 2 grid steps (exercises the parallel/megacore path).
    x = jax.random.normal(xkey, (16, 1, 32, 32), dtype=jnp.float32)

    fwd = jax.jit(functools.partial(lenet5_forward, tb=TB, activation="relu"))
    out = jax.block_until_ready(fwd(x, prep))

    assert out.shape == (16, 10), out.shape
    # Exact softmax division -> rows sum to 1 at f32 precision.
    assert jnp.allclose(jnp.sum(out, axis=1), 1.0, atol=1e-3), jnp.sum(out, axis=1)
    # bf16 MXU operands with f32 accumulation -> small tolerance vs f32 reference.
    ref = lenet5_reference(x, params, activation="relu")
    assert jnp.allclose(out, ref, atol=3e-2), jnp.max(jnp.abs(out - ref))
    print("KERNEL_OK")
</pallas_src>

<mosaic_0001>
module attributes {stable_mosaic.version = 11 : i64} {
  func.func @_lenet5_kernel(%arg0: i32, %arg1: memref<256x32xf32, #tpu.memory_space<vmem>>, %arg2: memref<160x168xbf16, #tpu.memory_space<vmem>>, %arg3: memref<1x167xf32, #tpu.memory_space<vmem>>, %arg4: memref<112x251xbf16, #tpu.memory_space<vmem>>, %arg5: memref<835x160xbf16, #tpu.memory_space<vmem>>, %arg6: memref<1x159xf32, #tpu.memory_space<vmem>>, %arg7: memref<40x107xbf16, #tpu.memory_space<vmem>>, %arg8: memref<795x120xbf16, #tpu.memory_space<vmem>>, %arg9: memref<1x120xf32, #tpu.memory_space<vmem>>, %arg10: memref<120x84xbf16, #tpu.memory_space<vmem>>, %arg11: memref<1x84xf32, #tpu.memory_space<vmem>>, %arg12: memref<84x128xbf16, #tpu.memory_space<vmem>>, %arg13: memref<1x128xf32, #tpu.memory_space<vmem>>, %arg14: memref<8x128xf32, #tpu.memory_space<vmem>>) attributes {dimension_semantics = [#tpu.dimension_semantics<parallel>], iteration_bounds = array<i64: 2>, scalar_prefetch = 0 : i64, scratch_operands = 0 : i64, tpu.core_type = #tpu.core_type<tc>, window_params = [{transform_indices = @transform_0, window_bounds = array<i64: 256, 32>}, {pipeline_mode = #tpu.pipeline_mode<synchronous>, transform_indices = @transform_1, window_bounds = array<i64: 160, 168>}, {pipeline_mode = #tpu.pipeline_mode<synchronous>, transform_indices = @transform_2, window_bounds = array<i64: 1, 167>}, {pipeline_mode = #tpu.pipeline_mode<synchronous>, transform_indices = @transform_3, window_bounds = array<i64: 112, 251>}, {pipeline_mode = #tpu.pipeline_mode<synchronous>, transform_indices = @transform_4, window_bounds = array<i64: 835, 160>}, {pipeline_mode = #tpu.pipeline_mode<synchronous>, transform_indices = @transform_5, window_bounds = array<i64: 1, 159>}, {pipeline_mode = #tpu.pipeline_mode<synchronous>, transform_indices = @transform_6, window_bounds = array<i64: 40, 107>}, {pipeline_mode = #tpu.pipeline_mode<synchronous>, transform_indices = @transform_7, window_bounds = array<i64: 795, 120>}, {pipeline_mode = #tpu.pipeline_mode<synchronous>, transform_indices = @transform_8, window_bounds = array<i64: 1, 120>}, {pipeline_mode = #tpu.pipeline_mode<synchronous>, transform_indices = @transform_9, window_bounds = array<i64: 120, 84>}, {pipeline_mode = #tpu.pipeline_mode<synchronous>, transform_indices = @transform_10, window_bounds = array<i64: 1, 84>}, {pipeline_mode = #tpu.pipeline_mode<synchronous>, transform_indices = @transform_11, window_bounds = array<i64: 84, 128>}, {pipeline_mode = #tpu.pipeline_mode<synchronous>, transform_indices = @transform_12, window_bounds = array<i64: 1, 128>}, {transform_indices = @transform_13, window_bounds = array<i64: 8, 128>}]} {
    %c0 = arith.constant 0 : index
    %c0_0 = arith.constant 0 : index
    %0 = vector.load %arg1[%c0, %c0_0] : memref<256x32xf32, #tpu.memory_space<vmem>>, vector<256x32xf32>
    %1 = arith.truncf %0 : vector<256x32xf32> to vector<256x32xbf16>
    %2 = vector.extract_strided_slice %1 {offsets = [0, 0], sizes = [252, 32], strides = [1, 1]} : vector<256x32xbf16> to vector<252x32xbf16>
    %3 = vector.extract_strided_slice %1 {offsets = [1, 0], sizes = [252, 32], strides = [1, 1]} : vector<256x32xbf16> to vector<252x32xbf16>
    %4 = vector.extract_strided_slice %1 {offsets = [2, 0], sizes = [252, 32], strides = [1, 1]} : vector<256x32xbf16> to vector<252x32xbf16>
    %5 = vector.extract_strided_slice %1 {offsets = [3, 0], sizes = [252, 32], strides = [1, 1]} : vector<256x32xbf16> to vector<252x32xbf16>
    %6 = vector.extract_strided_slice %1 {offsets = [4, 0], sizes = [252, 32], strides = [1, 1]} : vector<256x32xbf16> to vector<252x32xbf16>
    %7 = tpu.concatenate %2, %3, %4, %5, %6 in 1 : vector<252x32xbf16>, vector<252x32xbf16>, vector<252x32xbf16>, vector<252x32xbf16>, vector<252x32xbf16> -> vector<252x160xbf16>
    %c0_1 = arith.constant 0 : index
    %c0_2 = arith.constant 0 : index
    %8 = vector.load %arg2[%c0_1, %c0_2] : memref<160x168xbf16, #tpu.memory_space<vmem>>, vector<160x168xbf16>
    %cst = arith.constant dense<0.000000e+00> : vector<252x168xf32>
    %9 = tpu.matmul %7, %8, %cst {dimension_numbers = #tpu.dot_dimension_numbers<[1], [0], [0], [1], [0, 0, 1, 1], [], []>} : vector<252x160xbf16>, vector<160x168xbf16>, vector<252x168xf32> -> vector<252x168xf32>
    %10 = arith.truncf %9 : vector<252x168xf32> to vector<252x168xbf16>
    %11 = vector.extract_strided_slice %10 {offsets = [0, 0], sizes = [252, 167], strides = [1, 1]} : vector<252x168xbf16> to vector<252x167xbf16>
    %12 = vector.extract_strided_slice %10 {offsets = [0, 1], sizes = [252, 167], strides = [1, 1]} : vector<252x168xbf16> to vector<252x167xbf16>
    %13 = arith.maximumf %11, %12 : vector<252x167xbf16>
    %14 = vector.extract_strided_slice %13 {offsets = [0, 0], sizes = [251, 167], strides = [1, 1]} : vector<252x167xbf16> to vector<251x167xbf16>
    %15 = vector.extract_strided_slice %13 {offsets = [1, 0], sizes = [251, 167], strides = [1, 1]} : vector<252x167xbf16> to vector<251x167xbf16>
    %16 = arith.maximumf %14, %15 : vector<251x167xbf16>
    %c0_3 = arith.constant 0 : index
    %c0_4 = arith.constant 0 : index
    %17 = vector.load %arg4[%c0_3, %c0_4] : memref<112x251xbf16, #tpu.memory_space<vmem>>, vector<112x251xbf16>
    %cst_5 = arith.constant dense<0.000000e+00> : vector<112x167xf32>
    %18 = tpu.matmul %17, %16, %cst_5 {dimension_numbers = #tpu.dot_dimension_numbers<[1], [0], [0], [1], [0, 0, 1, 1], [], []>} : vector<112x251xbf16>, vector<251x167xbf16>, vector<112x167xf32> -> vector<112x167xf32>
    %c0_6 = arith.constant 0 : index
    %c0_7 = arith.constant 0 : index
    %19 = vector.load %arg3[%c0_6, %c0_7] : memref<1x167xf32, #tpu.memory_space<vmem>>, vector<1x167xf32>
    %20 = vector.broadcast %19 : vector<1x167xf32> to vector<112x167xf32>
    %21 = arith.addf %18, %20 : vector<112x167xf32>
    %cst_8 = arith.constant 0.000000e+00 : f32
    %22 = vector.broadcast %cst_8 : f32 to vector<112x167xf32>
    %23 = arith.maximumf %21, %22 : vector<112x167xf32>
    %24 = arith.truncf %23 : vector<112x167xf32> to vector<112x167xbf16>
    %25 = vector.extract_strided_slice %24 {offsets = [0, 0], sizes = [108, 167], strides = [1, 1]} : vector<112x167xbf16> to vector<108x167xbf16>
    %26 = vector.extract_strided_slice %24 {offsets = [1, 0], sizes = [108, 167], strides = [1, 1]} : vector<112x167xbf16> to vector<108x167xbf16>
    %27 = vector.extract_strided_slice %24 {offsets = [2, 0], sizes = [108, 167], strides = [1, 1]} : vector<112x167xbf16> to vector<108x167xbf16>
    %28 = vector.extract_strided_slice %24 {offsets = [3, 0], sizes = [108, 167], strides = [1, 1]} : vector<112x167xbf16> to vector<108x167xbf16>
    %29 = vector.extract_strided_slice %24 {offsets = [4, 0], sizes = [108, 167], strides = [1, 1]} : vector<112x167xbf16> to vector<108x167xbf16>
    %30 = tpu.concatenate %25, %26, %27, %28, %29 in 1 : vector<108x167xbf16>, vector<108x167xbf16>, vector<108x167xbf16>, vector<108x167xbf16>, vector<108x167xbf16> -> vector<108x835xbf16>
    %c0_9 = arith.constant 0 : index
    %c0_10 = arith.constant 0 : index
    %31 = vector.load %arg5[%c0_9, %c0_10] : memref<835x160xbf16, #tpu.memory_space<vmem>>, vector<835x160xbf16>
    %cst_11 = arith.constant dense<0.000000e+00> : vector<108x160xf32>
    %32 = tpu.matmul %30, %31, %cst_11 {dimension_numbers = #tpu.dot_dimension_numbers<[1], [0], [0], [1], [0, 0, 1, 1], [], []>} : vector<108x835xbf16>, vector<835x160xbf16>, vector<108x160xf32> -> vector<108x160xf32>
    %33 = arith.truncf %32 : vector<108x160xf32> to vector<108x160xbf16>
    %34 = vector.extract_strided_slice %33 {offsets = [0, 0], sizes = [108, 159], strides = [1, 1]} : vector<108x160xbf16> to vector<108x159xbf16>
    %35 = vector.extract_strided_slice %33 {offsets = [0, 1], sizes = [108, 159], strides = [1, 1]} : vector<108x160xbf16> to vector<108x159xbf16>
    %36 = arith.maximumf %34, %35 : vector<108x159xbf16>
    %37 = vector.extract_strided_slice %36 {offsets = [0, 0], sizes = [107, 159], strides = [1, 1]} : vector<108x159xbf16> to vector<107x159xbf16>
    %38 = vector.extract_strided_slice %36 {offsets = [1, 0], sizes = [107, 159], strides = [1, 1]} : vector<108x159xbf16> to vector<107x159xbf16>
    %39 = arith.maximumf %37, %38 : vector<107x159xbf16>
    %c0_12 = arith.constant 0 : index
    %c0_13 = arith.constant 0 : index
    %40 = vector.load %arg7[%c0_12, %c0_13] : memref<40x107xbf16, #tpu.memory_space<vmem>>, vector<40x107xbf16>
    %cst_14 = arith.constant dense<0.000000e+00> : vector<40x159xf32>
    %41 = tpu.matmul %40, %39, %cst_14 {dimension_numbers = #tpu.dot_dimension_numbers<[1], [0], [0], [1], [0, 0, 1, 1], [], []>} : vector<40x107xbf16>, vector<107x159xbf16>, vector<40x159xf32> -> vector<40x159xf32>
    %c0_15 = arith.constant 0 : index
    %c0_16 = arith.constant 0 : index
    %42 = vector.load %arg6[%c0_15, %c0_16] : memref<1x159xf32, #tpu.memory_space<vmem>>, vector<1x159xf32>
    %43 = vector.broadcast %42 : vector<1x159xf32> to vector<40x159xf32>
    %44 = arith.addf %41, %43 : vector<40x159xf32>
    %cst_17 = arith.constant 0.000000e+00 : f32
    %45 = vector.broadcast %cst_17 : f32 to vector<40x159xf32>
    %46 = arith.maximumf %44, %45 : vector<40x159xf32>
    %47 = arith.truncf %46 : vector<40x159xf32> to vector<40x159xbf16>
    %48 = vector.extract_strided_slice %47 {offsets = [0, 0], sizes = [8, 159], strides = [1, 1]} : vector<40x159xbf16> to vector<8x159xbf16>
    %49 = vector.extract_strided_slice %47 {offsets = [8, 0], sizes = [8, 159], strides = [1, 1]} : vector<40x159xbf16> to vector<8x159xbf16>
    %50 = vector.extract_strided_slice %47 {offsets = [16, 0], sizes = [8, 159], strides = [1, 1]} : vector<40x159xbf16> to vector<8x159xbf16>
    %51 = vector.extract_strided_slice %47 {offsets = [24, 0], sizes = [8, 159], strides = [1, 1]} : vector<40x159xbf16> to vector<8x159xbf16>
    %52 = vector.extract_strided_slice %47 {offsets = [32, 0], sizes = [8, 159], strides = [1, 1]} : vector<40x159xbf16> to vector<8x159xbf16>
    %53 = tpu.concatenate %48, %49, %50, %51, %52 in 1 : vector<8x159xbf16>, vector<8x159xbf16>, vector<8x159xbf16>, vector<8x159xbf16>, vector<8x159xbf16> -> vector<8x795xbf16>
    %c0_18 = arith.constant 0 : index
    %c0_19 = arith.constant 0 : index
    %54 = vector.load %arg8[%c0_18, %c0_19] : memref<795x120xbf16, #tpu.memory_space<vmem>>, vector<795x120xbf16>
    %cst_20 = arith.constant dense<0.000000e+00> : vector<8x120xf32>
    %55 = tpu.matmul %53, %54, %cst_20 {dimension_numbers = #tpu.dot_dimension_numbers<[1], [0], [0], [1], [0, 0, 1, 1], [], []>} : vector<8x795xbf16>, vector<795x120xbf16>, vector<8x120xf32> -> vector<8x120xf32>
    %c0_21 = arith.constant 0 : index
    %c0_22 = arith.constant 0 : index
    %56 = vector.load %arg9[%c0_21, %c0_22] : memref<1x120xf32, #tpu.memory_space<vmem>>, vector<1x120xf32>
    %57 = vector.broadcast %56 : vector<1x120xf32> to vector<8x120xf32>
    %58 = arith.addf %55, %57 : vector<8x120xf32>
    %59 = arith.truncf %58 : vector<8x120xf32> to vector<8x120xbf16>
    %c0_23 = arith.constant 0 : index
    %c0_24 = arith.constant 0 : index
    %60 = vector.load %arg10[%c0_23, %c0_24] : memref<120x84xbf16, #tpu.memory_space<vmem>>, vector<120x84xbf16>
    %cst_25 = arith.constant dense<0.000000e+00> : vector<8x84xf32>
    %61 = tpu.matmul %59, %60, %cst_25 {dimension_numbers = #tpu.dot_dimension_numbers<[1], [0], [0], [1], [0, 0, 1, 1], [], []>} : vector<8x120xbf16>, vector<120x84xbf16>, vector<8x84xf32> -> vector<8x84xf32>
    %c0_26 = arith.constant 0 : index
    %c0_27 = arith.constant 0 : index
    %62 = vector.load %arg11[%c0_26, %c0_27] : memref<1x84xf32, #tpu.memory_space<vmem>>, vector<1x84xf32>
    %63 = vector.broadcast %62 : vector<1x84xf32> to vector<8x84xf32>
    %64 = arith.addf %61, %63 : vector<8x84xf32>
    %65 = arith.truncf %64 : vector<8x84xf32> to vector<8x84xbf16>
    %c0_28 = arith.constant 0 : index
    %c0_29 = arith.constant 0 : index
    %66 = vector.load %arg12[%c0_28, %c0_29] : memref<84x128xbf16, #tpu.memory_space<vmem>>, vector<84x128xbf16>
    %cst_30 = arith.constant dense<0.000000e+00> : vector<8x128xf32>
    %67 = tpu.matmul %65, %66, %cst_30 {dimension_numbers = #tpu.dot_dimension_numbers<[1], [0], [0], [1], [0, 0, 1, 1], [], []>} : vector<8x84xbf16>, vector<84x128xbf16>, vector<8x128xf32> -> vector<8x128xf32>
    %c0_31 = arith.constant 0 : index
    %c0_32 = arith.constant 0 : index
    %68 = vector.load %arg13[%c0_31, %c0_32] : memref<1x128xf32, #tpu.memory_space<vmem>>, vector<1x128xf32>
    %69 = vector.broadcast %68 : vector<1x128xf32> to vector<8x128xf32>
    %70 = arith.addf %67, %69 : vector<8x128xf32>
    %cst_33 = arith.constant dense<0xFF800000> : vector<8xf32>
    %71 = vector.multi_reduction <maximumf>, %70, %cst_33 [1] : vector<8x128xf32> to vector<8xf32>
    %72 = vector.shape_cast %71 : vector<8xf32> to vector<8x1xf32>
    %73 = vector.broadcast %72 : vector<8x1xf32> to vector<8x128xf32>
    %74 = arith.subf %70, %73 : vector<8x128xf32>
    %75 = math.exp %74 : vector<8x128xf32>
    %cst_34 = arith.constant dense<0.000000e+00> : vector<8xf32>
    %76 = vector.multi_reduction <add>, %75, %cst_34 [1] : vector<8x128xf32> to vector<8xf32>
    %77 = vector.shape_cast %76 : vector<8xf32> to vector<8x1xf32>
    %78 = vector.broadcast %77 : vector<8x1xf32> to vector<8x128xf32>
    %79 = arith.divf %75, %78 : vector<8x128xf32>
    %c0_35 = arith.constant 0 : index
    %c0_36 = arith.constant 0 : index
    %80 = vector.load %arg14[%c0_35, %c0_36] : memref<8x128xf32, #tpu.memory_space<vmem>>, vector<8x128xf32>
    tpu.vector_store %arg14[%c0_35, %c0_36], %79 {strides = array<i32>} : memref<8x128xf32, #tpu.memory_space<vmem>>, vector<8x128xf32>,
    return
  }
  func.func @transform_0(%arg0: i32) -> (i32, i32) {
    %c0_i32 = arith.constant 0 : i32
    %c0_i32_0 = arith.constant 0 : i32
    return %arg0, %c0_i32 : i32, i32
  }
  func.func @transform_1(%arg0: i32) -> (i32, i32) {
    %c0_i32 = arith.constant 0 : i32
    %c0_i32_0 = arith.constant 0 : i32
    %c0_i32_1 = arith.constant 0 : i32
    return %c0_i32, %c0_i32_0 : i32, i32
  }
  func.func @transform_2(%arg0: i32) -> (i32, i32) {
    %c0_i32 = arith.constant 0 : i32
    %c0_i32_0 = arith.constant 0 : i32
    %c0_i32_1 = arith.constant 0 : i32
    return %c0_i32, %c0_i32_0 : i32, i32
  }
  func.func @transform_3(%arg0: i32) -> (i32, i32) {
    %c0_i32 = arith.constant 0 : i32
    %c0_i32_0 = arith.constant 0 : i32
    %c0_i32_1 = arith.constant 0 : i32
    return %c0_i32, %c0_i32_0 : i32, i32
  }
  func.func @transform_4(%arg0: i32) -> (i32, i32) {
    %c0_i32 = arith.constant 0 : i32
    %c0_i32_0 = arith.constant 0 : i32
    %c0_i32_1 = arith.constant 0 : i32
    return %c0_i32, %c0_i32_0 : i32, i32
  }
  func.func @transform_5(%arg0: i32) -> (i32, i32) {
    %c0_i32 = arith.constant 0 : i32
    %c0_i32_0 = arith.constant 0 : i32
    %c0_i32_1 = arith.constant 0 : i32
    return %c0_i32, %c0_i32_0 : i32, i32
  }
  func.func @transform_6(%arg0: i32) -> (i32, i32) {
    %c0_i32 = arith.constant 0 : i32
    %c0_i32_0 = arith.constant 0 : i32
    %c0_i32_1 = arith.constant 0 : i32
    return %c0_i32, %c0_i32_0 : i32, i32
  }
  func.func @transform_7(%arg0: i32) -> (i32, i32) {
    %c0_i32 = arith.constant 0 : i32
    %c0_i32_0 = arith.constant 0 : i32
    %c0_i32_1 = arith.constant 0 : i32
    return %c0_i32, %c0_i32_0 : i32, i32
  }
  func.func @transform_8(%arg0: i32) -> (i32, i32) {
    %c0_i32 = arith.constant 0 : i32
    %c0_i32_0 = arith.constant 0 : i32
    %c0_i32_1 = arith.constant 0 : i32
    return %c0_i32, %c0_i32_0 : i32, i32
  }
  func.func @transform_9(%arg0: i32) -> (i32, i32) {
    %c0_i32 = arith.constant 0 : i32
    %c0_i32_0 = arith.constant 0 : i32
    %c0_i32_1 = arith.constant 0 : i32
    return %c0_i32, %c0_i32_0 : i32, i32
  }
  func.func @transform_10(%arg0: i32) -> (i32, i32) {
    %c0_i32 = arith.constant 0 : i32
    %c0_i32_0 = arith.constant 0 : i32
    %c0_i32_1 = arith.constant 0 : i32
    return %c0_i32, %c0_i32_0 : i32, i32
  }
  func.func @transform_11(%arg0: i32) -> (i32, i32) {
    %c0_i32 = arith.constant 0 : i32
    %c0_i32_0 = arith.constant 0 : i32
    %c0_i32_1 = arith.constant 0 : i32
    return %c0_i32, %c0_i32_0 : i32, i32
  }
  func.func @transform_12(%arg0: i32) -> (i32, i32) {
    %c0_i32 = arith.constant 0 : i32
    %c0_i32_0 = arith.constant 0 : i32
    %c0_i32_1 = arith.constant 0 : i32
    return %c0_i32, %c0_i32_0 : i32, i32
  }
  func.func @transform_13(%arg0: i32) -> (i32, i32) {
    %c0_i32 = arith.constant 0 : i32
    %c0_i32_0 = arith.constant 0 : i32
    return %arg0, %c0_i32 : i32, i32
  }
}

</mosaic_0001>

<llo_original>
// kernel: lenet5_forward.1
$region0: #{lenet5_forward.1}
  #allocation0 [shape = 'u32[]', space=smem, size = 0x4, offset = 0x4, fixed_abs, tag = 'smem constant byte address 0x4 - core index']
  #allocation1 [shape = 'u32[144,128]{1,0:T(1,128)}', space=vmem, size = 0x12000, scoped, tag = 'internal scratch']
  %s0 = inlined_call_operand.vmem [shape: f32[512,32], index: 0, kind: input, shape index: {}]
  %s1 = inlined_call_operand.vmem [shape: bf16[160,168], index: 1, kind: input, shape index: {}]
  %s2 = inlined_call_operand.vmem [shape: f32[1,167], index: 2, kind: input, shape index: {}]
  %s3 = inlined_call_operand.vmem [shape: bf16[112,251], index: 3, kind: input, shape index: {}]
  %s4 = inlined_call_operand.vmem [shape: bf16[835,160], index: 4, kind: input, shape index: {}]
  %s5 = inlined_call_operand.vmem [shape: f32[1,159], index: 5, kind: input, shape index: {}]
  %s6 = inlined_call_operand.vmem [shape: bf16[40,107], index: 6, kind: input, shape index: {}]
  %s7 = inlined_call_operand.vmem [shape: bf16[795,120], index: 7, kind: input, shape index: {}]
  %s8 = inlined_call_operand.vmem [shape: f32[1,120], index: 8, kind: input, shape index: {}]
  %s9 = inlined_call_operand.vmem [shape: bf16[120,84], index: 9, kind: input, shape index: {}]
  %s10 = inlined_call_operand.vmem [shape: f32[1,84], index: 10, kind: input, shape index: {}]
  %s11 = inlined_call_operand.vmem [shape: bf16[84,128], index: 11, kind: input, shape index: {}]
  %s12 = inlined_call_operand.vmem [shape: f32[1,128], index: 12, kind: input, shape index: {}]
  %s13 = inlined_call_operand.hbm [shape: f32[16,128], index: 13, kind: output, shape index: {}]
  %s14 = sld [smem:[#allocation0]]
  $region85: #{lenet5_forward.1} parent=0
    _
  %s16 = ssub.s32 1, %s14
  %s17 = scalar_select 0, %s16, %s14
  $region1: #{lenet5_forward.1} parent=0
    #allocation2 [shape = 'u8[8192]{0}', space=vmem, size = 0x2000, scoped, tag = 'output window, operand 0']
    #allocation3 [shape = 's32[2]{0}', space=sflag, size = 0x8, scoped, tag = 'scoped memory for lenet5_forward.1']
    %18 = vsyncpa [#allocation3], 0
    %s19 = scalar_lea.sflag [#allocation3], 1
    %20 = vsyncpa %s19, 0
    loop: start=0, step=1, limit=4
    $region2: #{lenet5_forward.1} parent=1 // loop_pre_header
      _
    $region3: #{lenet5_forward.1} parent=1 // loop_header
      %s22 = sphi 0, %s26
      %p23 = scmp.ge.s32.totalorder %s22, 4
      %s32 = sphi 0, %s34
      %s35 = sphi 0, %s32
      %s36 = sphi 0, %s35
      %s52 = sphi 0, %s36
      %s56 = sphi 0, %s56
      %s58 = sphi 0, %s56
      %s59 = sphi 0, %s58
      %s73 = sphi 0, %s59
      %s77 = sphi 0, %s77
      %s79 = sphi 0, %s77
      %s80 = sphi 0, %s79
      %s94 = sphi 0, %s80
      %s98 = sphi 0, %s98
      %s100 = sphi 0, %s98
      %s101 = sphi 0, %s100
      %s115 = sphi 0, %s101
      %s119 = sphi 0, %s119
      %s121 = sphi 0, %s119
      %s122 = sphi 0, %s121
      %s136 = sphi 0, %s122
      %s140 = sphi 0, %s140
      %s142 = sphi 0, %s140
      %s143 = sphi 0, %s142
      %s157 = sphi 0, %s143
      %s161 = sphi 0, %s161
      %s163 = sphi 0, %s161
      %s164 = sphi 0, %s163
      %s178 = sphi 0, %s164
      %s182 = sphi 0, %s182
      %s184 = sphi 0, %s182
      %s185 = sphi 0, %s184
      %s199 = sphi 0, %s185
      %s203 = sphi 0, %s203
      %s205 = sphi 0, %s203
      %s206 = sphi 0, %s205
      %s220 = sphi 0, %s206
      %s224 = sphi 0, %s224
      %s226 = sphi 0, %s224
      %s227 = sphi 0, %s226
      %s241 = sphi 0, %s227
      %s245 = sphi 0, %s245
      %s247 = sphi 0, %s245
      %s248 = sphi 0, %s247
      %s262 = sphi 0, %s248
      %s266 = sphi 0, %s266
      %s268 = sphi 0, %s266
      %s269 = sphi 0, %s268
      %s283 = sphi 0, %s269
      %s287 = sphi 0, %s287
      %s289 = sphi 0, %s287
      %s290 = sphi 0, %s289
      %s304 = sphi 0, %s290
      %s310 = sphi 0, %s312
      %s313 = sphi 0, %s310
      %s314 = sphi 0, %s313
      %s330 = sphi 0, %s314
    $region4: #{lenet5_forward.1} parent=1 // loop_header_branch
      %25 = sbr.rel (%p23) target = $region8
    $region5: #{lenet5_forward.1} parent=1 // loop_body
      %s27 = ssub.s32 %s22, 1
      %s28 = ssub.s32 %s22, 2
      %s29 = sadd.s32 %s22, 1
      %s30 = ssub.s32 %s22, %s29
      %p31 = scmp.eq.s32.totalorder %s30, 0
      %s33 = sadd.s32 %s32, 1
      %s34 = scalar_select %p31, %s32, %s33
      %p37 = pneg %p31
      %p38 = scmp.eq.s32.totalorder %s22, 1
      %p39 = por %p37, %p38
      %p40 = scmp.ne.s32.totalorder %s32, %s35
      %p41 = scmp.eq.s32.totalorder %s22, 0
      %p42 = por %p40, %p41
      %p43 = scmp.ne.s32.totalorder %s32, %s35
      %p44 = scmp.eq.s32.totalorder %s27, 1
      %p45 = por %p43, %p44
      %p46 = scmp.ne.s32.totalorder %s35, %s36
      %p47 = scmp.eq.s32.totalorder %s27, 0
      %p48 = por %p46, %p47
      %p49 = scmp.ne.s32.totalorder %s35, %s36
      %p50 = scmp.eq.s32.totalorder %s28, 1
      %p51 = por %p49, %p50
      %p53 = scmp.ne.s32.totalorder %s36, %s52
      %p54 = scmp.eq.s32.totalorder %s28, 0
      %p55 = por %p53, %p54
      %s57 = sadd.s32 %s56, 1
      %p60 = scmp.eq.s32.totalorder %s22, 1
      %p61 = scmp.ne.s32.totalorder %s56, %s58
      %p62 = scmp.eq.s32.totalorder %s22, 0
      %p63 = por %p61, %p62
      %p64 = scmp.ne.s32.totalorder %s56, %s58
      %p65 = scmp.eq.s32.totalorder %s27, 1
      %p66 = por %p64, %p65
      %p67 = scmp.ne.s32.totalorder %s58, %s59
      %p68 = scmp.eq.s32.totalorder %s27, 0
      %p69 = por %p67, %p68
      %p70 = scmp.ne.s32.totalorder %s58, %s59
      %p71 = scmp.eq.s32.totalorder %s28, 1
      %p72 = por %p70, %p71
      %p74 = scmp.ne.s32.totalorder %s59, %s73
      %p75 = scmp.eq.s32.totalorder %s28, 0
      %p76 = por %p74, %p75
      %s78 = sadd.s32 %s77, 1
      %p81 = scmp.eq.s32.totalorder %s22, 1
      %p82 = scmp.ne.s32.totalorder %s77, %s79
      %p83 = scmp.eq.s32.totalorder %s22, 0
      %p84 = por %p82, %p83
      %p85 = scmp.ne.s32.totalorder %s77, %s79
      %p86 = scmp.eq.s32.totalorder %s27, 1
      %p87 = por %p85, %p86
      %p88 = scmp.ne.s32.totalorder %s79, %s80
      %p89 = scmp.eq.s32.totalorder %s27, 0
      %p90 = por %p88, %p89
      %p91 = scmp.ne.s32.totalorder %s79, %s80
      %p92 = scmp.eq.s32.totalorder %s28, 1
      %p93 = por %p91, %p92
      %p95 = scmp.ne.s32.totalorder %s80, %s94
      %p96 = scmp.eq.s32.totalorder %s28, 0
      %p97 = por %p95, %p96
      %s99 = sadd.s32 %s98, 1
      %p102 = scmp.eq.s32.totalorder %s22, 1
      %p103 = scmp.ne.s32.totalorder %s98, %s100
      %p104 = scmp.eq.s32.totalorder %s22, 0
      %p105 = por %p103, %p104
      %p106 = scmp.ne.s32.totalorder %s98, %s100
      %p107 = scmp.eq.s32.totalorder %s27, 1
      %p108 = por %p106, %p107
      %p109 = scmp.ne.s32.totalorder %s100, %s101
      %p110 = scmp.eq.s32.totalorder %s27, 0
      %p111 = por %p109, %p110
      %p112 = scmp.ne.s32.totalorder %s100, %s101
      %p113 = scmp.eq.s32.totalorder %s28, 1
      %p114 = por %p112, %p113
      %p116 = scmp.ne.s32.totalorder %s101, %s115
      %p117 = scmp.eq.s32.totalorder %s28, 0
      %p118 = por %p116, %p117
      %s120 = sadd.s32 %s119, 1
      %p123 = scmp.eq.s32.totalorder %s22, 1
      %p124 = scmp.ne.s32.totalorder %s119, %s121
      %p125 = scmp.eq.s32.totalorder %s22, 0
      %p126 = por %p124, %p125
      %p127 = scmp.ne.s32.totalorder %s119, %s121
      %p128 = scmp.eq.s32.totalorder %s27, 1
      %p129 = por %p127, %p128
      %p130 = scmp.ne.s32.totalorder %s121, %s122
      %p131 = scmp.eq.s32.totalorder %s27, 0
      %p132 = por %p130, %p131
      %p133 = scmp.ne.s32.totalorder %s121, %s122
      %p134 = scmp.eq.s32.totalorder %s28, 1
      %p135 = por %p133, %p134
      %p137 = scmp.ne.s32.totalorder %s122, %s136
      %p138 = scmp.eq.s32.totalorder %s28, 0
      %p139 = por %p137, %p138
      %s141 = sadd.s32 %s140, 1
      %p144 = scmp.eq.s32.totalorder %s22, 1
      %p145 = scmp.ne.s32.totalorder %s140, %s142
      %p146 = scmp.eq.s32.totalorder %s22, 0
      %p147 = por %p145, %p146
      %p148 = scmp.ne.s32.totalorder %s140, %s142
      %p149 = scmp.eq.s32.totalorder %s27, 1
      %p150 = por %p148, %p149
      %p151 = scmp.ne.s32.totalorder %s142, %s143
      %p152 = scmp.eq.s32.totalorder %s27, 0
      %p153 = por %p151, %p152
      %p154 = scmp.ne.s32.totalorder %s142, %s143
      %p155 = scmp.eq.s32.totalorder %s28, 1
      %p156 = por %p154, %p155
      %p158 = scmp.ne.s32.totalorder %s143, %s157
      %p159 = scmp.eq.s32.totalorder %s28, 0
      %p160 = por %p158, %p159
      %s162 = sadd.s32 %s161, 1
      %p165 = scmp.eq.s32.totalorder %s22, 1
      %p166 = scmp.ne.s32.totalorder %s161, %s163
      %p167 = scmp.eq.s32.totalorder %s22, 0
      %p168 = por %p166, %p167
      %p169 = scmp.ne.s32.totalorder %s161, %s163
      %p170 = scmp.eq.s32.totalorder %s27, 1
      %p171 = por %p169, %p170
      %p172 = scmp.ne.s32.totalorder %s163, %s164
      %p173 = scmp.eq.s32.totalorder %s27, 0
      %p174 = por %p172, %p173
      %p175 = scmp.ne.s32.totalorder %s163, %s164
      %p176 = scmp.eq.s32.totalorder %s28, 1
      %p177 = por %p175, %p176
      %p179 = scmp.ne.s32.totalorder %s164, %s178
      %p180 = scmp.eq.s32.totalorder %s28, 0
      %p181 = por %p179, %p180
      %s183 = sadd.s32 %s182, 1
      %p186 = scmp.eq.s32.totalorder %s22, 1
      %p187 = scmp.ne.s32.totalorder %s182, %s184
      %p188 = scmp.eq.s32.totalorder %s22, 0
      %p189 = por %p187, %p188
      %p190 = scmp.ne.s32.totalorder %s182, %s184
      %p191 = scmp.eq.s32.totalorder %s27, 1
      %p192 = por %p190, %p191
      %p193 = scmp.ne.s32.totalorder %s184, %s185
      %p194 = scmp.eq.s32.totalorder %s27, 0
      %p195 = por %p193, %p194
      %p196 = scmp.ne.s32.totalorder %s184, %s185
      %p197 = scmp.eq.s32.totalorder %s28, 1
      %p198 = por %p196, %p197
      %p200 = scmp.ne.s32.totalorder %s185, %s199
      %p201 = scmp.eq.s32.totalorder %s28, 0
      %p202 = por %p200, %p201
      %s204 = sadd.s32 %s203, 1
      %p207 = scmp.eq.s32.totalorder %s22, 1
      %p208 = scmp.ne.s32.totalorder %s203, %s205
      %p209 = scmp.eq.s32.totalorder %s22, 0
      %p210 = por %p208, %p209
      %p211 = scmp.ne.s32.totalorder %s203, %s205
      %p212 = scmp.eq.s32.totalorder %s27, 1
      %p213 = por %p211, %p212
      %p214 = scmp.ne.s32.totalorder %s205, %s206
      %p215 = scmp.eq.s32.totalorder %s27, 0
      %p216 = por %p214, %p215
      %p217 = scmp.ne.s32.totalorder %s205, %s206
      %p218 = scmp.eq.s32.totalorder %s28, 1
      %p219 = por %p217, %p218
      %p221 = scmp.ne.s32.totalorder %s206, %s220
      %p222 = scmp.eq.s32.totalorder %s28, 0
      %p223 = por %p221, %p222
      %s225 = sadd.s32 %s224, 1
      %p228 = scmp.eq.s32.totalorder %s22, 1
      %p229 = scmp.ne.s32.totalorder %s224, %s226
      %p230 = scmp.eq.s32.totalorder %s22, 0
      %p231 = por %p229, %p230
      %p232 = scmp.ne.s32.totalorder %s224, %s226
      %p233 = scmp.eq.s32.totalorder %s27, 1
      %p234 = por %p232, %p233
      %p235 = scmp.ne.s32.totalorder %s226, %s227
      %p236 = scmp.eq.s32.totalorder %s27, 0
      %p237 = por %p235, %p236
      %p238 = scmp.ne.s32.totalorder %s226, %s227
      %p239 = scmp.eq.s32.totalorder %s28, 1
      %p240 = por %p238, %p239
      %p242 = scmp.ne.s32.totalorder %s227, %s241
      %p243 = scmp.eq.s32.totalorder %s28, 0
      %p244 = por %p242, %p243
      %s246 = sadd.s32 %s245, 1
      %p249 = scmp.eq.s32.totalorder %s22, 1
      %p250 = scmp.ne.s32.totalorder %s245, %s247
      %p251 = scmp.eq.s32.totalorder %s22, 0
      %p252 = por %p250, %p251
      %p253 = scmp.ne.s32.totalorder %s245, %s247
      %p254 = scmp.eq.s32.totalorder %s27, 1
      %p255 = por %p253, %p254
      %p256 = scmp.ne.s32.totalorder %s247, %s248
      %p257 = scmp.eq.s32.totalorder %s27, 0
      %p258 = por %p256, %p257
      %p259 = scmp.ne.s32.totalorder %s247, %s248
      %p260 = scmp.eq.s32.totalorder %s28, 1
      %p261 = por %p259, %p260
      %p263 = scmp.ne.s32.totalorder %s248, %s262
      %p264 = scmp.eq.s32.totalorder %s28, 0
      %p265 = por %p263, %p264
      %s267 = sadd.s32 %s266, 1
      %p270 = scmp.eq.s32.totalorder %s22, 1
      %p271 = scmp.ne.s32.totalorder %s266, %s268
      %p272 = scmp.eq.s32.totalorder %s22, 0
      %p273 = por %p271, %p272
      %p274 = scmp.ne.s32.totalorder %s266, %s268
      %p275 = scmp.eq.s32.totalorder %s27, 1
      %p276 = por %p274, %p275
      %p277 = scmp.ne.s32.totalorder %s268, %s269
      %p278 = scmp.eq.s32.totalorder %s27, 0
      %p279 = por %p277, %p278
      %p280 = scmp.ne.s32.totalorder %s268, %s269
      %p281 = scmp.eq.s32.totalorder %s28, 1
      %p282 = por %p280, %p281
      %p284 = scmp.ne.s32.totalorder %s269, %s283
      %p285 = scmp.eq.s32.totalorder %s28, 0
      %p286 = por %p284, %p285
      %s288 = sadd.s32 %s287, 1
      %p291 = scmp.eq.s32.totalorder %s22, 1
      %p292 = scmp.ne.s32.totalorder %s287, %s289
      %p293 = scmp.eq.s32.totalorder %s22, 0
      %p294 = por %p292, %p293
      %p295 = scmp.ne.s32.totalorder %s287, %s289
      %p296 = scmp.eq.s32.totalorder %s27, 1
      %p297 = por %p295, %p296
      %p298 = scmp.ne.s32.totalorder %s289, %s290
      %p299 = scmp.eq.s32.totalorder %s27, 0
      %p300 = por %p298, %p299
      %p301 = scmp.ne.s32.totalorder %s289, %s290
      %p302 = scmp.eq.s32.totalorder %s28, 1
      %p303 = por %p301, %p302
      %p305 = scmp.ne.s32.totalorder %s290, %s304
      %p306 = scmp.eq.s32.totalorder %s28, 0
      %p307 = por %p305, %p306
      %s308 = ssub.s32 %s22, %s29
      %p309 = scmp.eq.s32.totalorder %s308, 0
      %s311 = sadd.s32 %s310, 1
      %s312 = scalar_select %p309, %s310, %s311
      %p315 = pneg %p309
      %p316 = scmp.eq.s32.totalorder %s22, 1
      %p317 = por %p315, %p316
      %p318 = scmp.ne.s32.totalorder %s310, %s313
      %p319 = scmp.eq.s32.totalorder %s22, 0
      %p320 = por %p318, %p319
      %p321 = scmp.ne.s32.totalorder %s310, %s313
      %p322 = scmp.eq.s32.totalorder %s27, 1
      %p323 = por %p321, %p322
      %p324 = scmp.ne.s32.totalorder %s313, %s314
      %p325 = scmp.eq.s32.totalorder %s27, 0
      %p326 = por %p324, %p325
      %p327 = scmp.ne.s32.totalorder %s313, %s314
      %p328 = scmp.eq.s32.totalorder %s28, 1
      %p329 = por %p327, %p328
      %p331 = scmp.ne.s32.totalorder %s314, %s330
      %p332 = scmp.eq.s32.totalorder %s28, 0
      %p333 = por %p331, %p332
      %p334 = scmp.le.s32.totalorder 1, %s22
      %p335 = scmp.lt.s32.totalorder %s22, 3
      %p336 = pnand %p334, %p335
      %p337 = pneg %p336
      // Predicated region
      $region9: #{lenet5_forward.1} parent=5 // pred_check
        _
      $region10: #{lenet5_forward.1} parent=5 // pred_check_branch
        %339 = sbr.rel (%p336) target = $region12
      $region11: #{lenet5_forward.1} parent=5 // pred_region
        %s340 = ssub.s32 %s22, 1
        // Predicated region
        $region13: #{lenet5_forward.1} parent=11 // pred_check
          %p341 = pneg %p69
        $region14: #{lenet5_forward.1} parent=11 // pred_check_branch
          %343 = sbr.rel (%p341) target = $region16
        $region15: #{lenet5_forward.1} parent=11 // pred_region
          _
        $region16: #{lenet5_forward.1} parent=11 // pred_fallthru
          _
        // Predicated region
        $region17: #{lenet5_forward.1} parent=11 // pred_check
          %p344 = pneg %p90
        $region18: #{lenet5_forward.1} parent=11 // pred_check_branch
          %346 = sbr.rel (%p344) target = $region20
        $region19: #{lenet5_forward.1} parent=11 // pred_region
          _
        $region20: #{lenet5_forward.1} parent=11 // pred_fallthru
          _
        // Predicated region
        $region21: #{lenet5_forward.1} parent=11 // pred_check
          %p347 = pneg %p111
        $region22: #{lenet5_forward.1} parent=11 // pred_check_branch
          %349 = sbr.rel (%p347) target = $region24
        $region23: #{lenet5_forward.1} parent=11 // pred_region
          _
        $region24: #{lenet5_forward.1} parent=11 // pred_fallthru
          _
        // Predicated region
        $region25: #{lenet5_forward.1} parent=11 // pred_check
          %p350 = pneg %p132
        $region26: #{lenet5_forward.1} parent=11 // pred_check_branch
          %352 = sbr.rel (%p350) target = $region28
        $region27: #{lenet5_forward.1} parent=11 // pred_region
          _
        $region28: #{lenet5_forward.1} parent=11 // pred_fallthru
          _
        // Predicated region
        $region29: #{lenet5_forward.1} parent=11 // pred_check
          %p353 = pneg %p153
        $region30: #{lenet5_forward.1} parent=11 // pred_check_branch
          %355 = sbr.rel (%p353) target = $region32
        $region31: #{lenet5_forward.1} parent=11 // pred_region
          _
        $region32: #{lenet5_forward.1} parent=11 // pred_fallthru
          _
        // Predicated region
        $region33: #{lenet5_forward.1} parent=11 // pred_check
          %p356 = pneg %p174
        $region34: #{lenet5_forward.1} parent=11 // pred_check_branch
          %358 = sbr.rel (%p356) target = $region36
        $region35: #{lenet5_forward.1} parent=11 // pred_region
          _
        $region36: #{lenet5_forward.1} parent=11 // pred_fallthru
          _
        // Predicated region
        $region37: #{lenet5_forward.1} parent=11 // pred_check
          %p359 = pneg %p195
        $region38: #{lenet5_forward.1} parent=11 // pred_check_branch
          %361 = sbr.rel (%p359) target = $region40
        $region39: #{lenet5_forward.1} parent=11 // pred_region
          _
        $region40: #{lenet5_forward.1} parent=11 // pred_fallthru
          _
        // Predicated region
        $region41: #{lenet5_forward.1} parent=11 // pred_check
          %p362 = pneg %p216
        $region42: #{lenet5_forward.1} parent=11 // pred_check_branch
          %364 = sbr.rel (%p362) target = $region44
        $region43: #{lenet5_forward.1} parent=11 // pred_region
          _
        $region44: #{lenet5_forward.1} parent=11 // pred_fallthru
          _
        // Predicated region
        $region45: #{lenet5_forward.1} parent=11 // pred_check
          %p365 = pneg %p237
        $region46: #{lenet5_forward.1} parent=11 // pred_check_branch
          %367 = sbr.rel (%p365) target = $region48
        $region47: #{lenet5_forward.1} parent=11 // pred_region
          _
        $region48: #{lenet5_forward.1} parent=11 // pred_fallthru
          _
        // Predicated region
        $region49: #{lenet5_forward.1} parent=11 // pred_check
          %p368 = pneg %p258
        $region50: #{lenet5_forward.1} parent=11 // pred_check_branch
          %370 = sbr.rel (%p368) target = $region52
        $region51: #{lenet5_forward.1} parent=11 // pred_region
          _
        $region52: #{lenet5_forward.1} parent=11 // pred_fallthru
          _
        // Predicated region
        $region53: #{lenet5_forward.1} parent=11 // pred_check
          %p371 = pneg %p279
        $region54: #{lenet5_forward.1} parent=11 // pred_check_branch
          %373 = sbr.rel (%p371) target = $region56
        $region55: #{lenet5_forward.1} parent=11 // pred_region
          _
        $region56: #{lenet5_forward.1} parent=11 // pred_fallthru
          _
        // Predicated region
        $region57: #{lenet5_forward.1} parent=11 // pred_check
          %p374 = pneg %p300
        $region58: #{lenet5_forward.1} parent=11 // pred_check_branch
          %376 = sbr.rel (%p374) target = $region60
        $region59: #{lenet5_forward.1} parent=11 // pred_region
          _
        $region60: #{lenet5_forward.1} parent=11 // pred_fallthru
          _
      $region12: #{lenet5_forward.1} parent=5 // pred_fallthru
        _
      %p377 = scmp.lt.s32.totalorder %s22, 2
      // Predicated region
      $region61: #{lenet5_forward.1} parent=5 // pred_check
        %p378 = pneg %p377
      $region62: #{lenet5_forward.1} parent=5 // pred_check_branch
        %380 = sbr.rel (%p378) target = $region64
      $region63: #{lenet5_forward.1} parent=5 // pred_region
        // Predicated region
        $region65: #{lenet5_forward.1} parent=63 // pred_check
          %p381 = pneg %p42
        $region66: #{lenet5_forward.1} parent=63 // pred_check_branch
          %383 = sbr.rel (%p381) target = $region68
        $region67: #{lenet5_forward.1} parent=63 // pred_region
          %s384 = smul.u32 32, %s22
          %p385 = scmp.lt.s32.totalorder %s384, 63
          %s386 = scalar_select %p385, %s384, 63
          %s387 = smul.addr %s386, 8
          %s388 = scalar_lea.vmem %s0, %s387
          %s389 = smul.u32 32, %s22
        $region68: #{lenet5_forward.1} parent=63 // pred_fallthru
          _
      $region64: #{lenet5_forward.1} parent=5 // pred_fallthru
        _
      %p390 = scmp.le.s32.totalorder 1, %s22
      %p391 = scmp.lt.s32.totalorder %s22, 3
      %p392 = pnand %p390, %p391
      %p393 = pneg %p392
      // Predicated region
      $region69: #{lenet5_forward.1} parent=5 // pred_check
        _
      $region70: #{lenet5_forward.1} parent=5 // pred_check_branch
        %395 = sbr.rel (%p392) target = $region72
      $region71: #{lenet5_forward.1} parent=5 // pred_region
        %s396 = ssub.s32 %s22, 1
        %s397 = smul.u32 32, %s27
        %p398 = scmp.lt.s32.totalorder %s397, 63
        %s399 = scalar_select %p398, %s397, 63
        %s400 = smul.addr %s399, 8
        %s401 = scalar_lea.vmem %s0, %s400
        %p402 = pneg %p48
        %p403 = pneg %p45
        %p404 = pneg %p69
        %p405 = pneg %p66
        %p406 = pneg %p90
        %p407 = pneg %p87
        %p408 = pneg %p111
        %p409 = pneg %p108
        %p410 = pneg %p132
        %p411 = pneg %p129
        %p412 = pneg %p153
        %p413 = pneg %p150
        %p414 = pneg %p174
        %p415 = pneg %p171
        %p416 = pneg %p195
        %p417 = pneg %p192
        %p418 = pneg %p216
        %p419 = pneg %p213
        %p420 = pneg %p237
        %p421 = pneg %p234
        %p422 = pneg %p258
        %p423 = pneg %p255
        %p424 = pneg %p279
        %p425 = pneg %p276
        %p426 = pneg %p300
        %p427 = pneg %p297
        %p428 = pneg %p326
        %p429 = pneg %p323
        %s430 = sand.u32 %s313, 1
        %s431 = scalar_lea.sflag [#allocation3], %s430
        %s432 = sand.u32 %s313, 1
        %s433 = smul.addr %s432, 8
        %s434 = scalar_lea.vmem [#allocation2], %s433
        %s435 = smul.u32 32, %s27
        %p436 = scmp.lt.s32.totalorder %s435, 63
        %s437 = scalar_select %p436, %s435, 63
        %s438 = smul.addr %s437, 8
        %s439 = scalar_lea.vmem %s0, %s438
        %s440 = smul.u32 32, %s27
        %v442 = vld [vmem:[%s439] sm:$0xff]
        %v443 = vld [vmem:[%s439 + $0x8] sm:$0xff]
        %v444 = vld [vmem:[%s439 + $0x10] sm:$0xff]
        %v445 = vld [vmem:[%s439 + $0x18] sm:$0xff]
        %v446 = vld [vmem:[%s439 + $0x20] sm:$0xff]
        %v447 = vld [vmem:[%s439 + $0x28] sm:$0xff]
        %v448 = vld [vmem:[%s439 + $0x30] sm:$0xff]
        %v449 = vld [vmem:[%s439 + $0x38] sm:$0xff]
        %v450 = vld [vmem:[%s439 + $0x40] sm:$0xff]
        %v451 = vld [vmem:[%s439 + $0x48] sm:$0xff]
        %v452 = vld [vmem:[%s439 + $0x50] sm:$0xff]
        %v453 = vld [vmem:[%s439 + $0x58] sm:$0xff]
        %v454 = vld [vmem:[%s439 + $0x60] sm:$0xff]
        %v455 = vld [vmem:[%s439 + $0x68] sm:$0xff]
        %v456 = vld [vmem:[%s439 + $0x70] sm:$0xff]
        %v457 = vld [vmem:[%s439 + $0x78] sm:$0xff]
        %v458 = vld [vmem:[%s439 + $0x80] sm:$0xff]
        %v459 = vld [vmem:[%s439 + $0x88] sm:$0xff]
        %v460 = vld [vmem:[%s439 + $0x90] sm:$0xff]
        %v461 = vld [vmem:[%s439 + $0x98] sm:$0xff]
        %v462 = vld [vmem:[%s439 + $0xa0] sm:$0xff]
        %v463 = vld [vmem:[%s439 + $0xa8] sm:$0xff]
        %v464 = vld [vmem:[%s439 + $0xb0] sm:$0xff]
        %v465 = vld [vmem:[%s439 + $0xb8] sm:$0xff]
        %v466 = vld [vmem:[%s439 + $0xc0] sm:$0xff]
        %v467 = vld [vmem:[%s439 + $0xc8] sm:$0xff]
        %v468 = vld [vmem:[%s439 + $0xd0] sm:$0xff]
        %v469 = vld [vmem:[%s439 + $0xd8] sm:$0xff]
        %v470 = vld [vmem:[%s439 + $0xe0] sm:$0xff]
        %v471 = vld [vmem:[%s439 + $0xe8] sm:$0xff]
        %v472 = vld [vmem:[%s439 + $0xf0] sm:$0xff]
        %v473 = vld [vmem:[%s439 + $0xf8] sm:$0xff]
        %v474 = vpack.c.bf16 %v443, %v442
        %v475 = vpack.c.bf16 %v445, %v444
        %v476 = vpack.c.bf16 %v447, %v446
        %v477 = vpack.c.bf16 %v449, %v448
        %v478 = vpack.c.bf16 %v451, %v450
        %v479 = vpack.c.bf16 %v453, %v452
        %v480 = vpack.c.bf16 %v455, %v454
        %v481 = vpack.c.bf16 %v457, %v456
        %v482 = vpack.c.bf16 %v459, %v458
        %v483 = vpack.c.bf16 %v461, %v460
        %v484 = vpack.c.bf16 %v463, %v462
        %v485 = vpack.c.bf16 %v465, %v464
        %v486 = vpack.c.bf16 %v467, %v466
        %v487 = vpack.c.bf16 %v469, %v468
        %v488 = vpack.c.bf16 %v471, %v470
        %v489 = vpack.c.bf16 %v473, %v472
        %vm490 = vsmask.f32 7424
        %v492 = vshrl.u32 %v474, 16
        %v494 = vshll.u32 %v474, 16
        %v496 = vrot.slane %v494, 1
        %v497 = vor.u32 %v492, %v496
        %v499 = vshll.u32 %v475, 16
        %v501 = vrot.slane %v499, 1
        %v502 = vsel %vm490, %v497, %v501
        %v503 = vshrl.u32 %v475, 16
        %v505 = vor.u32 %v503, %v501
        %v507 = vshll.u32 %v476, 16
        %v509 = vrot.slane %v507, 1
        %v510 = vsel %vm490, %v505, %v509
        %v511 = vshrl.u32 %v476, 16
        %v513 = vor.u32 %v511, %v509
        %v515 = vshll.u32 %v477, 16
        %v517 = vrot.slane %v515, 1
        %v518 = vsel %vm490, %v513, %v517
        %v519 = vshrl.u32 %v477, 16
        %v521 = vor.u32 %v519, %v517
        %v523 = vshll.u32 %v478, 16
        %v525 = vrot.slane %v523, 1
        %v526 = vsel %vm490, %v521, %v525
        %v527 = vshrl.u32 %v478, 16
        %v529 = vor.u32 %v527, %v525
        %v531 = vshll.u32 %v479, 16
        %v533 = vrot.slane %v531, 1
        %v534 = vsel %vm490, %v529, %v533
        %v535 = vshrl.u32 %v479, 16
        %v537 = vor.u32 %v535, %v533
        %v539 = vshll.u32 %v480, 16
        %v541 = vrot.slane %v539, 1
        %v542 = vsel %vm490, %v537, %v541
        %v543 = vshrl.u32 %v480, 16
        %v545 = vor.u32 %v543, %v541
        %v547 = vshll.u32 %v481, 16
        %v549 = vrot.slane %v547, 1
        %v550 = vsel %vm490, %v545, %v549
        %v551 = vshrl.u32 %v481, 16
        %v553 = vor.u32 %v551, %v549
        %v555 = vshll.u32 %v482, 16
        %v557 = vrot.slane %v555, 1
        %v558 = vsel %vm490, %v553, %v557
        %v559 = vshrl.u32 %v482, 16
        %v561 = vor.u32 %v559, %v557
        %v563 = vshll.u32 %v483, 16
        %v565 = vrot.slane %v563, 1
        %v566 = vsel %vm490, %v561, %v565
        %v567 = vshrl.u32 %v483, 16
        %v569 = vor.u32 %v567, %v565
        %v571 = vshll.u32 %v484, 16
        %v573 = vrot.slane %v571, 1
        %v574 = vsel %vm490, %v569, %v573
        %v575 = vshrl.u32 %v484, 16
        %v577 = vor.u32 %v575, %v573
        %v579 = vshll.u32 %v485, 16
        %v581 = vrot.slane %v579, 1
        %v582 = vsel %vm490, %v577, %v581
        %v583 = vshrl.u32 %v485, 16
        %v585 = vor.u32 %v583, %v581
        %v587 = vshll.u32 %v486, 16
        %v589 = vrot.slane %v587, 1
        %v590 = vsel %vm490, %v585, %v589
        %v591 = vshrl.u32 %v486, 16
        %v593 = vor.u32 %v591, %v589
        %v595 = vshll.u32 %v487, 16
        %v597 = vrot.slane %v595, 1
        %v598 = vsel %vm490, %v593, %v597
        %v599 = vshrl.u32 %v487, 16
        %v601 = vor.u32 %v599, %v597
        %v603 = vshll.u32 %v488, 16
        %v605 = vrot.slane %v603, 1
        %v606 = vsel %vm490, %v601, %v605
        %v607 = vshrl.u32 %v488, 16
        %v609 = vor.u32 %v607, %v605
        %v611 = vshll.u32 %v489, 16
        %v613 = vrot.slane %v611, 1
        %v614 = vsel %vm490, %v609, %v613
        %v615 = vshrl.u32 %v489, 16
        %v617 = vor.u32 %v615, %v613
        %618 = vrot.lane.b32.xlu0 %v502, 32
        %v619 = vpop.permute.xlu0 %618
        %620 = vrot.lane.b32.xlu0 %v510, 32
        %v621 = vpop.permute.xlu0 %620
        %622 = vrot.lane.b32.xlu0 %v518, 32
        %v623 = vpop.permute.xlu0 %622
        %624 = vrot.lane.b32.xlu0 %v526, 32
        %v625 = vpop.permute.xlu0 %624
        %626 = vrot.lane.b32.xlu0 %v534, 32
        %v627 = vpop.permute.xlu0 %626
        %628 = vrot.lane.b32.xlu0 %v542, 32
        %v629 = vpop.permute.xlu0 %628
        %630 = vrot.lane.b32.xlu0 %v550, 32
        %v631 = vpop.permute.xlu0 %630
        %632 = vrot.lane.b32.xlu0 %v558, 32
        %v633 = vpop.permute.xlu0 %632
        %634 = vrot.lane.b32.xlu0 %v566, 32
        %v635 = vpop.permute.xlu0 %634
        %636 = vrot.lane.b32.xlu0 %v574, 32
        %v637 = vpop.permute.xlu0 %636
        %638 = vrot.lane.b32.xlu0 %v582, 32
        %v639 = vpop.permute.xlu0 %638
        %640 = vrot.lane.b32.xlu0 %v590, 32
        %v641 = vpop.permute.xlu0 %640
        %642 = vrot.lane.b32.xlu0 %v598, 32
        %v643 = vpop.permute.xlu0 %642
        %644 = vrot.lane.b32.xlu0 %v606, 32
        %v645 = vpop.permute.xlu0 %644
        %646 = vrot.lane.b32.xlu0 %v614, 32
        %v647 = vpop.permute.xlu0 %646
        %648 = vrot.lane.b32.xlu0 %v617, 32
        %v649 = vpop.permute.xlu0 %648
        %vm666 = vcmask 1046528
        %v667 = vrot.slane %v474, 1
        %v668 = vrot.slane %v475, 1
        %v669 = vsel %vm666, %v667, %v668
        %v670 = vrot.slane %v476, 1
        %v671 = vsel %vm666, %v668, %v670
        %v672 = vrot.slane %v477, 1
        %v673 = vsel %vm666, %v670, %v672
        %v674 = vrot.slane %v478, 1
        %v675 = vsel %vm666, %v672, %v674
        %v676 = vrot.slane %v479, 1
        %v677 = vsel %vm666, %v674, %v676
        %v678 = vrot.slane %v480, 1
        %v679 = vsel %vm666, %v676, %v678
        %v680 = vrot.slane %v481, 1
        %v681 = vsel %vm666, %v678, %v680
        %v682 = vrot.slane %v482, 1
        %v683 = vsel %vm666, %v680, %v682
        %v684 = vrot.slane %v483, 1
        %v685 = vsel %vm666, %v682, %v684
        %v686 = vrot.slane %v484, 1
        %v687 = vsel %vm666, %v684, %v686
        %v688 = vrot.slane %v485, 1
        %v689 = vsel %vm666, %v686, %v688
        %v690 = vrot.slane %v486, 1
        %v691 = vsel %vm666, %v688, %v690
        %v692 = vrot.slane %v487, 1
        %v693 = vsel %vm666, %v690, %v692
        %v694 = vrot.slane %v488, 1
        %v695 = vsel %vm666, %v692, %v694
        %v696 = vrot.slane %v489, 1
        %v697 = vsel %vm666, %v694, %v696
        %698 = vrot.lane.b32.xlu0 %v669, 64
        %v699 = vpop.permute.xlu0 %698
        %700 = vrot.lane.b32.xlu0 %v671, 64
        %v701 = vpop.permute.xlu0 %700
        %702 = vrot.lane.b32.xlu0 %v673, 64
        %v703 = vpop.permute.xlu0 %702
        %704 = vrot.lane.b32.xlu0 %v675, 64
        %v705 = vpop.permute.xlu0 %704
        %706 = vrot.lane.b32.xlu0 %v677, 64
        %v707 = vpop.permute.xlu0 %706
        %708 = vrot.lane.b32.xlu0 %v679, 64
        %v709 = vpop.permute.xlu0 %708
        %710 = vrot.lane.b32.xlu0 %v681, 64
        %v711 = vpop.permute.xlu0 %710
        %712 = vrot.lane.b32.xlu0 %v683, 64
        %v713 = vpop.permute.xlu0 %712
        %714 = vrot.lane.b32.xlu0 %v685, 64
        %v715 = vpop.permute.xlu0 %714
        %716 = vrot.lane.b32.xlu0 %v687, 64
        %v717 = vpop.permute.xlu0 %716
        %718 = vrot.lane.b32.xlu0 %v689, 64
        %v719 = vpop.permute.xlu0 %718
        %720 = vrot.lane.b32.xlu0 %v691, 64
        %v721 = vpop.permute.xlu0 %720
        %722 = vrot.lane.b32.xlu0 %v693, 64
        %v723 = vpop.permute.xlu0 %722
        %724 = vrot.lane.b32.xlu0 %v695, 64
        %v725 = vpop.permute.xlu0 %724
        %726 = vrot.lane.b32.xlu0 %v697, 64
        %v727 = vpop.permute.xlu0 %726
        %728 = vrot.lane.b32.xlu0 %v696, 64
        %v729 = vpop.permute.xlu0 %728
        %vm730 = vsmask.f32 6400
        %v731 = vrot.slane %v492, 1
        %v732 = vrot.slane %v494, 2
        %v733 = vor.u32 %v731, %v732
        %v734 = vrot.slane %v503, 1
        %v735 = vrot.slane %v499, 2
        %v736 = vor.u32 %v734, %v735
        %v737 = vsel %vm730, %v733, %v736
        %v738 = vrot.slane %v511, 1
        %v739 = vrot.slane %v507, 2
        %v740 = vor.u32 %v738, %v739
        %v741 = vsel %vm730, %v736, %v740
        %v742 = vrot.slane %v519, 1
        %v743 = vrot.slane %v515, 2
        %v744 = vor.u32 %v742, %v743
        %v745 = vsel %vm730, %v740, %v744
        %v746 = vrot.slane %v527, 1
        %v747 = vrot.slane %v523, 2
        %v748 = vor.u32 %v746, %v747
        %v749 = vsel %vm730, %v744, %v748
        %v750 = vrot.slane %v535, 1
        %v751 = vrot.slane %v531, 2
        %v752 = vor.u32 %v750, %v751
        %v753 = vsel %vm730, %v748, %v752
        %v754 = vrot.slane %v543, 1
        %v755 = vrot.slane %v539, 2
        %v756 = vor.u32 %v754, %v755
        %v757 = vsel %vm730, %v752, %v756
        %v758 = vrot.slane %v551, 1
        %v759 = vrot.slane %v547, 2
        %v760 = vor.u32 %v758, %v759
        %v761 = vsel %vm730, %v756, %v760
        %v762 = vrot.slane %v559, 1
        %v763 = vrot.slane %v555, 2
        %v764 = vor.u32 %v762, %v763
        %v765 = vsel %vm730, %v760, %v764
        %v766 = vrot.slane %v567, 1
        %v767 = vrot.slane %v563, 2
        %v768 = vor.u32 %v766, %v767
        %v769 = vsel %vm730, %v764, %v768
        %v770 = vrot.slane %v575, 1
        %v771 = vrot.slane %v571, 2
        %v772 = vor.u32 %v770, %v771
        %v773 = vsel %vm730, %v768, %v772
        %v774 = vrot.slane %v583, 1
        %v775 = vrot.slane %v579, 2
        %v776 = vor.u32 %v774, %v775
        %v777 = vsel %vm730, %v772, %v776
        %v778 = vrot.slane %v591, 1
        %v779 = vrot.slane %v587, 2
        %v780 = vor.u32 %v778, %v779
        %v781 = vsel %vm730, %v776, %v780
        %v782 = vrot.slane %v599, 1
        %v783 = vrot.slane %v595, 2
        %v784 = vor.u32 %v782, %v783
        %v785 = vsel %vm730, %v780, %v784
        %v786 = vrot.slane %v607, 1
        %v787 = vrot.slane %v603, 2
        %v788 = vor.u32 %v786, %v787
        %v789 = vsel %vm730, %v784, %v788
        %v790 = vrot.slane %v615, 1
        %v791 = vrot.slane %v611, 2
        %v792 = vor.u32 %v790, %v791
        %v793 = vsel %vm730, %v788, %v792
        %794 = vrot.lane.b32.xlu0 %v737, 96
        %v795 = vpop.permute.xlu0 %794
        %796 = vrot.lane.b32.xlu0 %v741, 96
        %v797 = vpop.permute.xlu0 %796
        %798 = vrot.lane.b32.xlu0 %v745, 96
        %v799 = vpop.permute.xlu0 %798
        %800 = vrot.lane.b32.xlu0 %v749, 96
        %v801 = vpop.permute.xlu0 %800
        %802 = vrot.lane.b32.xlu0 %v753, 96
        %v803 = vpop.permute.xlu0 %802
        %804 = vrot.lane.b32.xlu0 %v757, 96
        %v805 = vpop.permute.xlu0 %804
        %806 = vrot.lane.b32.xlu0 %v761, 96
        %v807 = vpop.permute.xlu0 %806
        %808 = vrot.lane.b32.xlu0 %v765, 96
        %v809 = vpop.permute.xlu0 %808
        %810 = vrot.lane.b32.xlu0 %v769, 96
        %v811 = vpop.permute.xlu0 %810
        %812 = vrot.lane.b32.xlu0 %v773, 96
        %v813 = vpop.permute.xlu0 %812
        %814 = vrot.lane.b32.xlu0 %v777, 96
        %v815 = vpop.permute.xlu0 %814
        %816 = vrot.lane.b32.xlu0 %v781, 96
        %v817 = vpop.permute.xlu0 %816
        %818 = vrot.lane.b32.xlu0 %v785, 96
        %v819 = vpop.permute.xlu0 %818
        %820 = vrot.lane.b32.xlu0 %v789, 96
        %v821 = vpop.permute.xlu0 %820
        %822 = vrot.lane.b32.xlu0 %v793, 96
        %v823 = vpop.permute.xlu0 %822
        %824 = vrot.lane.b32.xlu0 %v792, 96
        %v825 = vpop.permute.xlu0 %824
        %vm826 = vcmask 1045504
        %v827 = vrot.slane %v474, 2
        %v828 = vrot.slane %v475, 2
        %v829 = vsel %vm826, %v827, %v828
        %v830 = vrot.slane %v476, 2
        %v831 = vsel %vm826, %v828, %v830
        %v832 = vrot.slane %v477, 2
        %v833 = vsel %vm826, %v830, %v832
        %v834 = vrot.slane %v478, 2
        %v835 = vsel %vm826, %v832, %v834
        %v836 = vrot.slane %v479, 2
        %v837 = vsel %vm826, %v834, %v836
        %v838 = vrot.slane %v480, 2
        %v839 = vsel %vm826, %v836, %v838
        %v840 = vrot.slane %v481, 2
        %v841 = vsel %vm826, %v838, %v840
        %v842 = vrot.slane %v482, 2
        %v843 = vsel %vm826, %v840, %v842
        %v844 = vrot.slane %v483, 2
        %v845 = vsel %vm826, %v842, %v844
        %v846 = vrot.slane %v484, 2
        %v847 = vsel %vm826, %v844, %v846
        %v848 = vrot.slane %v485, 2
        %v849 = vsel %vm826, %v846, %v848
        %v850 = vrot.slane %v486, 2
        %v851 = vsel %vm826, %v848, %v850
        %v852 = vrot.slane %v487, 2
        %v853 = vsel %vm826, %v850, %v852
        %v854 = vrot.slane %v488, 2
        %v855 = vsel %vm826, %v852, %v854
        %v856 = vrot.slane %v489, 2
        %v857 = vsel %vm826, %v854, %v856
        %vm858 = vcmask 261120
        %v860 = vsel %vm858, %v474, %v619
        %v862 = vsel %vm858, %v475, %v621
        %v864 = vsel %vm858, %v476, %v623
        %v866 = vsel %vm858, %v477, %v625
        %v868 = vsel %vm858, %v478, %v627
        %v870 = vsel %vm858, %v479, %v629
        %v872 = vsel %vm858, %v480, %v631
        %v874 = vsel %vm858, %v481, %v633
        %v876 = vsel %vm858, %v482, %v635
        %v878 = vsel %vm858, %v483, %v637
        %v880 = vsel %vm858, %v484, %v639
        %v882 = vsel %vm858, %v485, %v641
        %v884 = vsel %vm858, %v486, %v643
        %v886 = vsel %vm858, %v487, %v645
        %v888 = vsel %vm858, %v488, %v647
        %v890 = vsel %vm858, %v489, %v649
        %vm891 = vcmask 523264
        %v893 = vsel %vm891, %v860, %v699
        %v895 = vsel %vm891, %v862, %v701
        %v897 = vsel %vm891, %v864, %v703
        %v899 = vsel %vm891, %v866, %v705
        %v901 = vsel %vm891, %v868, %v707
        %v903 = vsel %vm891, %v870, %v709
        %v905 = vsel %vm891, %v872, %v711
        %v907 = vsel %vm891, %v874, %v713
        %v909 = vsel %vm891, %v876, %v715
        %v911 = vsel %vm891, %v878, %v717
        %v913 = vsel %vm891, %v880, %v719
        %v915 = vsel %vm891, %v882, %v721
        %v917 = vsel %vm891, %v884, %v723
        %v919 = vsel %vm891, %v886, %v725
        %v921 = vsel %vm891, %v888, %v727
        %v923 = vsel %vm891, %v890, %v729
        %vm924 = vcmask 785408
        %v926 = vsel %vm924, %v893, %v795
        %v929 = vsel %vm924, %v895, %v797
        %v932 = vsel %vm924, %v897, %v799
        %v935 = vsel %vm924, %v899, %v801
        %v938 = vsel %vm924, %v901, %v803
        %v941 = vsel %vm924, %v903, %v805
        %v944 = vsel %vm924, %v905, %v807
        %v947 = vsel %vm924, %v907, %v809
        %v950 = vsel %vm924, %v909, %v811
        %v953 = vsel %vm924, %v911, %v813
        %v956 = vsel %vm924, %v913, %v815
        %v959 = vsel %vm924, %v915, %v817
        %v962 = vsel %vm924, %v917, %v819
        %v965 = vsel %vm924, %v919, %v821
        %v968 = vsel %vm924, %v921, %v823
        %v971 = vsel %vm924, %v923, %v825
        %v973 = vld [vmem:[%s1] sm:$0xff]
        %v974 = vld [vmem:[%s1 + $0x8] sm:$0xff]
        %v975 = vld [vmem:[%s1 + $0x10] sm:$0xff]
        %v976 = vld [vmem:[%s1 + $0x18] sm:$0xff]
        %v977 = vld [vmem:[%s1 + $0x20] sm:$0xff]
        %v978 = vld [vmem:[%s1 + $0x28] sm:$0xff]
        %v979 = vld [vmem:[%s1 + $0x30] sm:$0xff]
        %v980 = vld [vmem:[%s1 + $0x38] sm:$0xff]
        %v981 = vld [vmem:[%s1 + $0x40] sm:$0xff]
        %v982 = vld [vmem:[%s1 + $0x48] sm:$0xff]
        %v983 = vld [vmem:[%s1 + $0x50] sm:$0xff]
        %v984 = vld [vmem:[%s1 + $0x58] sm:$0xff]
        %v985 = vld [vmem:[%s1 + $0x60] sm:$0xff]
        %v986 = vld [vmem:[%s1 + $0x68] sm:$0xff]
        %v987 = vld [vmem:[%s1 + $0x70] sm:$0xff]
        %v988 = vld [vmem:[%s1 + $0x78] sm:$0xff]
        %v989 = vld [vmem:[%s1 + $0x80] sm:$0xff]
        %v990 = vld [vmem:[%s1 + $0x88] sm:$0xff]
        %v991 = vld [vmem:[%s1 + $0x90] sm:$0xff]
        %v992 = vld [vmem:[%s1 + $0x98] sm:$0xff]
        %v1013 = vunpack.c.l.b16 %v973
        %v1014 = vunpack.c.h.b16 %v973
        %v1015 = vunpack.c.l.b16 %v974
        %v1016 = vunpack.c.h.b16 %v974
        %v1017 = vunpack.c.l.b16 %v975
        %v1018 = vunpack.c.h.b16 %v975
        %v1019 = vunpack.c.l.b16 %v976
        %v1020 = vunpack.c.h.b16 %v976
        %v1021 = vunpack.c.l.b16 %v977
        %v1022 = vunpack.c.h.b16 %v977
        %v1023 = vunpack.c.l.b16 %v978
        %v1024 = vunpack.c.h.b16 %v978
        %v1025 = vunpack.c.l.b16 %v979
        %v1026 = vunpack.c.h.b16 %v979
        %v1027 = vunpack.c.l.b16 %v980
        %v1028 = vunpack.c.h.b16 %v980
        %v1029 = vunpack.c.l.b16 %v981
        %v1030 = vunpack.c.h.b16 %v981
        %v1031 = vunpack.c.l.b16 %v982
        %v1032 = vunpack.c.h.b16 %v982
        %v1033 = vunpack.c.l.b16 %v983
        %v1034 = vunpack.c.h.b16 %v983
        %v1035 = vunpack.c.l.b16 %v984
        %v1036 = vunpack.c.h.b16 %v984
        %v1037 = vunpack.c.l.b16 %v985
        %v1038 = vunpack.c.h.b16 %v985
        %v1039 = vunpack.c.l.b16 %v986
        %v1040 = vunpack.c.h.b16 %v986
        %v1041 = vunpack.c.l.b16 %v987
        %v1042 = vunpack.c.h.b16 %v987
        %v1043 = vunpack.c.l.b16 %v988
        %v1044 = vunpack.c.h.b16 %v988
        %v1045 = vunpack.c.l.b16 %v989
        %v1046 = vunpack.c.h.b16 %v989
        %v1047 = vunpack.c.l.b16 %v990
        %v1048 = vunpack.c.h.b16 %v990
        %v1049 = vunpack.c.l.b16 %v991
        %v1050 = vunpack.c.h.b16 %v991
        %v1051 = vunpack.c.l.b16 %v992
        %v1052 = vunpack.c.h.b16 %v992
        %v1053 = vpack.c.b16 %v1015, %v1013
        %v1054 = vpack.c.b16 %v1016, %v1014
        %v1055 = vpack.c.b16 %v1019, %v1017
        %v1056 = vpack.c.b16 %v1020, %v1018
        %v1057 = vpack.c.b16 %v1023, %v1021
        %v1058 = vpack.c.b16 %v1024, %v1022
        %v1059 = vpack.c.b16 %v1027, %v1025
        %v1060 = vpack.c.b16 %v1028, %v1026
        %v1061 = vpack.c.b16 %v1031, %v1029
        %v1062 = vpack.c.b16 %v1032, %v1030
        %v1063 = vpack.c.b16 %v1035, %v1033
        %v1064 = vpack.c.b16 %v1036, %v1034
        %v1065 = vpack.c.b16 %v1039, %v1037
        %v1066 = vpack.c.b16 %v1040, %v1038
        %v1067 = vpack.c.b16 %v1043, %v1041
        %v1068 = vpack.c.b16 %v1044, %v1042
        %v1069 = vpack.c.b16 %v1047, %v1045
        %v1070 = vpack.c.b16 %v1048, %v1046
        %v1071 = vpack.c.b16 %v1051, %v1049
        %v1072 = vpack.c.b16 %v1052, %v1050
        %v1094 = vsel %vm858, %v829, 0
        %v1097 = vsel %vm858, %v831, 0
        %v1100 = vsel %vm858, %v833, 0
        %v1103 = vsel %vm858, %v835, 0
        %v1106 = vsel %vm858, %v837, 0
        %v1109 = vsel %vm858, %v839, 0
        %v1112 = vsel %vm858, %v841, 0
        %v1115 = vsel %vm858, %v843, 0
        %v1118 = vsel %vm858, %v845, 0
        %v1121 = vsel %vm858, %v847, 0
        %v1124 = vsel %vm858, %v849, 0
        %v1127 = vsel %vm858, %v851, 0
        %v1130 = vsel %vm858, %v853, 0
        %v1133 = vsel %vm858, %v855, 0
        %v1136 = vsel %vm858, %v857, 0
        %v1139 = vsel %vm858, %v856, 0
        %1141 = vmatprep.subr.bf16.mxu0 %v1068
        %1142 = vmatpush1.bf16.msra.mxu0 %v1067
        %1143 = vmatprep.subr.bf16.mxu0 %v1066
        %1144 = vmatpush1.bf16.msra.mxu0 %v1065
        %1145 = vmatprep.subr.bf16.mxu0 %v1064
        %1146 = vmatpush1.bf16.msra.mxu0 %v1063
        %1147 = vmatprep.subr.bf16.mxu0 %v1062
        %1148 = vmatpush1.bf16.msra.mxu0 %v1061
        %1149 = vmatprep.subr.bf16.mxu0 %v1060
        %1150 = vmatpush1.bf16.msra.mxu0 %v1059
        %1151 = vmatprep.subr.bf16.mxu0 %v1058
        %1152 = vmatpush1.bf16.msra.mxu0 %v1057
        %1153 = vmatprep.subr.bf16.mxu0 %v1056
        %1154 = vmatpush1.bf16.msra.mxu0 %v1055
        %1155 = vmatprep.subr.bf16.mxu0 %v1054
        %1156 = vmatpush1.bf16.msra.mxu0 %v1053
        %1157 = vmatprep.subr.bf16.mxu0 0
        %1158 = vmatpush2.bf16.msra.mxu0 0
        %1159 = vmatprep.subr.bf16.mxu0 0
        %1160 = vmatpush2.bf16.msra.mxu0 0
        %1161 = vmatprep.subr.bf16.mxu0 0
        %1162 = vmatpush2.bf16.msra.mxu0 0
        %1163 = vmatprep.subr.bf16.mxu0 0
        %1164 = vmatpush2.bf16.msra.mxu0 0
        %1165 = vmatprep.subr.bf16.mxu0 0
        %1166 = vmatpush2.bf16.msra.mxu0 0
        %1167 = vmatprep.subr.bf16.mxu0 0
        %1168 = vmatpush2.bf16.msra.mxu0 0
        %1169 = vmatprep.subr.bf16.mxu0 %v1072
        %1170 = vmatpush2.bf16.msra.mxu0 %v1071
        %1171 = vmatprep.subr.bf16.mxu0 %v1070
        %1172 = vmatpush2.bf16.msra.mxu0 %v1069
        %1173 = vmatprep.mubr.bf16.mxu0 %v1094
        %1174 = vmatmul.mubr.bf16.gmra.mxu0 %v926
        %v1175 = vpop.f32.mrf.mxu0
        %v1176 = vadd.f32 0.0, %v1175
        %v1177 = vpop.f32.mrf.mxu0
        %v1178 = vadd.f32 0.0, %v1177
        %v1179 = vpop.f32.mrf.mxu0
        %v1180 = vadd.f32 0.0, %v1179
        %v1181 = vpop.f32.mrf.mxu0
        %v1182 = vadd.f32 0.0, %v1181
        %1183 = vmatprep.mubr.bf16.mxu0 %v1097
        %1184 = vmatmul.mubr.bf16.gmra.mxu0 %v929
        %v1185 = vpop.f32.mrf.mxu0
        %v1186 = vadd.f32 0.0, %v1185
        %v1187 = vpop.f32.mrf.mxu0
        %v1188 = vadd.f32 0.0, %v1187
        %v1189 = vpop.f32.mrf.mxu0
        %v1190 = vadd.f32 0.0, %v1189
        %v1191 = vpop.f32.mrf.mxu0
        %v1192 = vadd.f32 0.0, %v1191
        %1193 = vmatprep.mubr.bf16.mxu0 %v1100
        %1194 = vmatmul.mubr.bf16.gmra.mxu0 %v932
        %v1195 = vpop.f32.mrf.mxu0
        %v1196 = vadd.f32 0.0, %v1195
        %v1197 = vpop.f32.mrf.mxu0
        %v1198 = vadd.f32 0.0, %v1197
        %v1199 = vpop.f32.mrf.mxu0
        %v1200 = vadd.f32 0.0, %v1199
        %v1201 = vpop.f32.mrf.mxu0
        %v1202 = vadd.f32 0.0, %v1201
        %1203 = vmatprep.mubr.bf16.mxu0 %v1103
        %1204 = vmatmul.mubr.bf16.gmra.mxu0 %v935
        %v1205 = vpop.f32.mrf.mxu0
        %v1206 = vadd.f32 0.0, %v1205
        %v1207 = vpop.f32.mrf.mxu0
        %v1208 = vadd.f32 0.0, %v1207
        %v1209 = vpop.f32.mrf.mxu0
        %v1210 = vadd.f32 0.0, %v1209
        %v1211 = vpop.f32.mrf.mxu0
        %v1212 = vadd.f32 0.0, %v1211
        %1213 = vmatprep.mubr.bf16.mxu0 %v1106
        %1214 = vmatmul.mubr.bf16.gmra.mxu0 %v938
        %v1215 = vpop.f32.mrf.mxu0
        %v1216 = vadd.f32 0.0, %v1215
        %v1217 = vpop.f32.mrf.mxu0
        %v1218 = vadd.f32 0.0, %v1217
        %v1219 = vpop.f32.mrf.mxu0
        %v1220 = vadd.f32 0.0, %v1219
        %v1221 = vpop.f32.mrf.mxu0
        %v1222 = vadd.f32 0.0, %v1221
        %1223 = vmatprep.mubr.bf16.mxu0 %v1109
        %1224 = vmatmul.mubr.bf16.gmra.mxu0 %v941
        %v1225 = vpop.f32.mrf.mxu0
        %v1226 = vadd.f32 0.0, %v1225
        %v1227 = vpop.f32.mrf.mxu0
        %v1228 = vadd.f32 0.0, %v1227
        %v1229 = vpop.f32.mrf.mxu0
        %v1230 = vadd.f32 0.0, %v1229
        %v1231 = vpop.f32.mrf.mxu0
        %v1232 = vadd.f32 0.0, %v1231
        %1233 = vmatprep.mubr.bf16.mxu0 %v1112
        %1234 = vmatmul.mubr.bf16.gmra.mxu0 %v944
        %v1235 = vpop.f32.mrf.mxu0
        %v1236 = vadd.f32 0.0, %v1235
        %v1237 = vpop.f32.mrf.mxu0
        %v1238 = vadd.f32 0.0, %v1237
        %v1239 = vpop.f32.mrf.mxu0
        %v1240 = vadd.f32 0.0, %v1239
        %v1241 = vpop.f32.mrf.mxu0
        %v1242 = vadd.f32 0.0, %v1241
        %1243 = vmatprep.mubr.bf16.mxu0 %v1115
        %1244 = vmatmul.mubr.bf16.gmra.mxu0 %v947
        %v1245 = vpop.f32.mrf.mxu0
        %v1246 = vadd.f32 0.0, %v1245
        %v1247 = vpop.f32.mrf.mxu0
        %v1248 = vadd.f32 0.0, %v1247
        %v1249 = vpop.f32.mrf.mxu0
        %v1250 = vadd.f32 0.0, %v1249
        %v1251 = vpop.f32.mrf.mxu0
        %v1252 = vadd.f32 0.0, %v1251
        %1253 = vmatprep.mubr.bf16.mxu0 %v1118
        %1254 = vmatmul.mubr.bf16.gmra.mxu0 %v950
        %v1255 = vpop.f32.mrf.mxu0
        %v1256 = vadd.f32 0.0, %v1255
        %v1257 = vpop.f32.mrf.mxu0
        %v1258 = vadd.f32 0.0, %v1257
        %v1259 = vpop.f32.mrf.mxu0
        %v1260 = vadd.f32 0.0, %v1259
        %v1261 = vpop.f32.mrf.mxu0
        %v1262 = vadd.f32 0.0, %v1261
        %1263 = vmatprep.mubr.bf16.mxu0 %v1121
        %1264 = vmatmul.mubr.bf16.gmra.mxu0 %v953
        %v1265 = vpop.f32.mrf.mxu0
        %v1266 = vadd.f32 0.0, %v1265
        %v1267 = vpop.f32.mrf.mxu0
        %v1268 = vadd.f32 0.0, %v1267
        %v1269 = vpop.f32.mrf.mxu0
        %v1270 = vadd.f32 0.0, %v1269
        %v1271 = vpop.f32.mrf.mxu0
        %v1272 = vadd.f32 0.0, %v1271
        %1273 = vmatprep.mubr.bf16.mxu0 %v1124
        %1274 = vmatmul.mubr.bf16.gmra.mxu0 %v956
        %v1275 = vpop.f32.mrf.mxu0
        %v1276 = vadd.f32 0.0, %v1275
        %v1277 = vpop.f32.mrf.mxu0
        %v1278 = vadd.f32 0.0, %v1277
        %v1279 = vpop.f32.mrf.mxu0
        %v1280 = vadd.f32 0.0, %v1279
        %v1281 = vpop.f32.mrf.mxu0
        %v1282 = vadd.f32 0.0, %v1281
        %1283 = vmatprep.mubr.bf16.mxu0 %v1127
        %1284 = vmatmul.mubr.bf16.gmra.mxu0 %v959
        %v1285 = vpop.f32.mrf.mxu0
        %v1286 = vadd.f32 0.0, %v1285
        %v1287 = vpop.f32.mrf.mxu0
        %v1288 = vadd.f32 0.0, %v1287
        %v1289 = vpop.f32.mrf.mxu0
        %v1290 = vadd.f32 0.0, %v1289
        %v1291 = vpop.f32.mrf.mxu0
        %v1292 = vadd.f32 0.0, %v1291
        %1293 = vmatprep.mubr.bf16.mxu0 %v1130
        %1294 = vmatmul.mubr.bf16.gmra.mxu0 %v962
        %v1295 = vpop.f32.mrf.mxu0
        %v1296 = vadd.f32 0.0, %v1295
        %v1297 = vpop.f32.mrf.mxu0
        %v1298 = vadd.f32 0.0, %v1297
        %v1299 = vpop.f32.mrf.mxu0
        %v1300 = vadd.f32 0.0, %v1299
        %v1301 = vpop.f32.mrf.mxu0
        %v1302 = vadd.f32 0.0, %v1301
        %1303 = vmatprep.mubr.bf16.mxu0 %v1133
        %1304 = vmatmul.mubr.bf16.gmra.mxu0 %v965
        %v1305 = vpop.f32.mrf.mxu0
        %v1306 = vadd.f32 0.0, %v1305
        %v1307 = vpop.f32.mrf.mxu0
        %v1308 = vadd.f32 0.0, %v1307
        %v1309 = vpop.f32.mrf.mxu0
        %v1310 = vadd.f32 0.0, %v1309
        %v1311 = vpop.f32.mrf.mxu0
        %v1312 = vadd.f32 0.0, %v1311
        %1313 = vmatprep.mubr.bf16.mxu0 %v1136
        %1314 = vmatmul.mubr.bf16.gmra.mxu0 %v968
        %v1315 = vpop.f32.mrf.mxu0
        %v1316 = vadd.f32 0.0, %v1315
        %v1317 = vpop.f32.mrf.mxu0
        %v1318 = vadd.f32 0.0, %v1317
        %v1319 = vpop.f32.mrf.mxu0
        %v1320 = vadd.f32 0.0, %v1319
        %v1321 = vpop.f32.mrf.mxu0
        %v1322 = vadd.f32 0.0, %v1321
        %1323 = vmatprep.mubr.bf16.mxu0 %v1139
        %1324 = vmatmul.mubr.bf16.gmra.mxu0 %v971
        %v1325 = vpop.f32.mrf.mxu0
        %v1326 = vadd.f32 0.0, %v1325
        %v1327 = vpop.f32.mrf.mxu0
        %v1328 = vadd.f32 0.0, %v1327
        %v1329 = vpop.f32.mrf.mxu0
        %v1330 = vadd.f32 0.0, %v1329
        %v1331 = vpop.f32.mrf.mxu0
        %v1332 = vadd.f32 0.0, %v1331
        %1333 = vdwg.mxu0
        %v1334 = vpack.c.bf16 %v1180, %v1176
        %v1335 = vpack.c.bf16 %v1182, %v1178
        %v1336 = vpack.c.bf16 %v1190, %v1186
        %v1337 = vpack.c.bf16 %v1192, %v1188
        %v1338 = vpack.c.bf16 %v1200, %v1196
        %v1339 = vpack.c.bf16 %v1202, %v1198
        %v1340 = vpack.c.bf16 %v1210, %v1206
        %v1341 = vpack.c.bf16 %v1212, %v1208
        %v1342 = vpack.c.bf16 %v1220, %v1216
        %v1343 = vpack.c.bf16 %v1222, %v1218
        %v1344 = vpack.c.bf16 %v1230, %v1226
        %v1345 = vpack.c.bf16 %v1232, %v1228
        %v1346 = vpack.c.bf16 %v1240, %v1236
        %v1347 = vpack.c.bf16 %v1242, %v1238
        %v1348 = vpack.c.bf16 %v1250, %v1246
        %v1349 = vpack.c.bf16 %v1252, %v1248
        %v1350 = vpack.c.bf16 %v1260, %v1256
        %v1351 = vpack.c.bf16 %v1262, %v1258
        %v1352 = vpack.c.bf16 %v1270, %v1266
        %v1353 = vpack.c.bf16 %v1272, %v1268
        %v1354 = vpack.c.bf16 %v1280, %v1276
        %v1355 = vpack.c.bf16 %v1282, %v1278
        %v1356 = vpack.c.bf16 %v1290, %v1286
        %v1357 = vpack.c.bf16 %v1292, %v1288
        %v1358 = vpack.c.bf16 %v1300, %v1296
        %v1359 = vpack.c.bf16 %v1302, %v1298
        %v1360 = vpack.c.bf16 %v1310, %v1306
        %v1361 = vpack.c.bf16 %v1312, %v1308
        %v1362 = vpack.c.bf16 %v1320, %v1316
        %v1363 = vpack.c.bf16 %v1322, %v1318
        %v1364 = vpack.c.bf16 %v1330, %v1326
        %v1365 = vpack.c.bf16 %v1332, %v1328
        %1398 = vrot.lane.b32.xlu0 %v1334, 127
        %v1399 = vpop.permute.xlu0 %1398
        %1400 = vrot.lane.b32.xlu0 %v1335, 127
        %v1401 = vpop.permute.xlu0 %1400
        %1402 = vrot.lane.b32.xlu0 %v1336, 127
        %v1403 = vpop.permute.xlu0 %1402
        %1404 = vrot.lane.b32.xlu0 %v1337, 127
        %v1405 = vpop.permute.xlu0 %1404
        %1406 = vrot.lane.b32.xlu0 %v1338, 127
        %v1407 = vpop.permute.xlu0 %1406
        %1408 = vrot.lane.b32.xlu0 %v1339, 127
        %v1409 = vpop.permute.xlu0 %1408
        %1410 = vrot.lane.b32.xlu0 %v1340, 127
        %v1411 = vpop.permute.xlu0 %1410
        %1412 = vrot.lane.b32.xlu0 %v1341, 127
        %v1413 = vpop.permute.xlu0 %1412
        %1414 = vrot.lane.b32.xlu0 %v1342, 127
        %v1415 = vpop.permute.xlu0 %1414
        %1416 = vrot.lane.b32.xlu0 %v1343, 127
        %v1417 = vpop.permute.xlu0 %1416
        %1418 = vrot.lane.b32.xlu0 %v1344, 127
        %v1419 = vpop.permute.xlu0 %1418
        %1420 = vrot.lane.b32.xlu0 %v1345, 127
        %v1421 = vpop.permute.xlu0 %1420
        %1422 = vrot.lane.b32.xlu0 %v1346, 127
        %v1423 = vpop.permute.xlu0 %1422
        %1424 = vrot.lane.b32.xlu0 %v1347, 127
        %v1425 = vpop.permute.xlu0 %1424
        %1426 = vrot.lane.b32.xlu0 %v1348, 127
        %v1427 = vpop.permute.xlu0 %1426
        %1428 = vrot.lane.b32.xlu0 %v1349, 127
        %v1429 = vpop.permute.xlu0 %1428
        %1430 = vrot.lane.b32.xlu0 %v1350, 127
        %v1431 = vpop.permute.xlu0 %1430
        %1432 = vrot.lane.b32.xlu0 %v1351, 127
        %v1433 = vpop.permute.xlu0 %1432
        %1434 = vrot.lane.b32.xlu0 %v1352, 127
        %v1435 = vpop.permute.xlu0 %1434
        %1436 = vrot.lane.b32.xlu0 %v1353, 127
        %v1437 = vpop.permute.xlu0 %1436
        %1438 = vrot.lane.b32.xlu0 %v1354, 127
        %v1439 = vpop.permute.xlu0 %1438
        %1440 = vrot.lane.b32.xlu0 %v1355, 127
        %v1441 = vpop.permute.xlu0 %1440
        %1442 = vrot.lane.b32.xlu0 %v1356, 127
        %v1443 = vpop.permute.xlu0 %1442
        %1444 = vrot.lane.b32.xlu0 %v1357, 127
        %v1445 = vpop.permute.xlu0 %1444
        %1446 = vrot.lane.b32.xlu0 %v1358, 127
        %v1447 = vpop.permute.xlu0 %1446
        %1448 = vrot.lane.b32.xlu0 %v1359, 127
        %v1449 = vpop.permute.xlu0 %1448
        %1450 = vrot.lane.b32.xlu0 %v1360, 127
        %v1451 = vpop.permute.xlu0 %1450
        %1452 = vrot.lane.b32.xlu0 %v1361, 127
        %v1453 = vpop.permute.xlu0 %1452
        %1454 = vrot.lane.b32.xlu0 %v1362, 127
        %v1455 = vpop.permute.xlu0 %1454
        %1456 = vrot.lane.b32.xlu0 %v1363, 127
        %v1457 = vpop.permute.xlu0 %1456
        %1458 = vrot.lane.b32.xlu0 %v1364, 127
        %v1459 = vpop.permute.xlu0 %1458
        %1460 = vrot.lane.b32.xlu0 %v1365, 127
        %v1461 = vpop.permute.xlu0 %1460
        %vm1462 = vcmask 1039360
        %v1463 = vsel %vm1462, %v1399, %v1401
        %v1464 = vsel %vm1462, %v1403, %v1405
        %v1465 = vsel %vm1462, %v1407, %v1409
        %v1466 = vsel %vm1462, %v1411, %v1413
        %v1467 = vsel %vm1462, %v1415, %v1417
        %v1468 = vsel %vm1462, %v1419, %v1421
        %v1469 = vsel %vm1462, %v1423, %v1425
        %v1470 = vsel %vm1462, %v1427, %v1429
        %v1471 = vsel %vm1462, %v1431, %v1433
        %v1472 = vsel %vm1462, %v1435, %v1437
        %v1473 = vsel %vm1462, %v1439, %v1441
        %v1474 = vsel %vm1462, %v1443, %v1445
        %v1475 = vsel %vm1462, %v1447, %v1449
        %v1476 = vsel %vm1462, %v1451, %v1453
        %v1477 = vsel %vm1462, %v1455, %v1457
        %v1478 = vsel %vm1462, %v1459, %v1461
        %v1511 = vmax.bf16 %v1334, %v1463
        %v1512 = vmax.bf16 %v1335, %v1401
        %v1513 = vmax.bf16 %v1336, %v1464
        %v1514 = vmax.bf16 %v1337, %v1405
        %v1515 = vmax.bf16 %v1338, %v1465
        %v1516 = vmax.bf16 %v1339, %v1409
        %v1517 = vmax.bf16 %v1340, %v1466
        %v1518 = vmax.bf16 %v1341, %v1413
        %v1519 = vmax.bf16 %v1342, %v1467
        %v1520 = vmax.bf16 %v1343, %v1417
        %v1521 = vmax.bf16 %v1344, %v1468
        %v1522 = vmax.bf16 %v1345, %v1421
        %v1523 = vmax.bf16 %v1346, %v1469
        %v1524 = vmax.bf16 %v1347, %v1425
        %v1525 = vmax.bf16 %v1348, %v1470
        %v1526 = vmax.bf16 %v1349, %v1429
        %v1527 = vmax.bf16 %v1350, %v1471
        %v1528 = vmax.bf16 %v1351, %v1433
        %v1529 = vmax.bf16 %v1352, %v1472
        %v1530 = vmax.bf16 %v1353, %v1437
        %v1531 = vmax.bf16 %v1354, %v1473
        %v1532 = vmax.bf16 %v1355, %v1441
        %v1533 = vmax.bf16 %v1356, %v1474
        %v1534 = vmax.bf16 %v1357, %v1445
        %v1535 = vmax.bf16 %v1358, %v1475
        %v1536 = vmax.bf16 %v1359, %v1449
        %v1537 = vmax.bf16 %v1360, %v1476
        %v1538 = vmax.bf16 %v1361, %v1453
        %v1539 = vmax.bf16 %v1362, %v1477
        %v1540 = vmax.bf16 %v1363, %v1457
        %v1541 = vmax.bf16 %v1364, %v1478
        %v1542 = vmax.bf16 %v1365, %v1461
        %v1544 = vshrl.u32 %v1511, 16
        %v1546 = vshll.u32 %v1511, 16
        %v1548 = vrot.slane %v1546, 1
        %v1549 = vor.u32 %v1544, %v1548
        %v1551 = vshll.u32 %v1513, 16
        %v1553 = vrot.slane %v1551, 1
        %v1554 = vsel %vm490, %v1549, %v1553
        %v1556 = vshrl.u32 %v1512, 16
        %v1558 = vshll.u32 %v1512, 16
        %v1560 = vrot.slane %v1558, 1
        %v1561 = vor.u32 %v1556, %v1560
        %v1563 = vshll.u32 %v1514, 16
        %v1565 = vrot.slane %v1563, 1
        %v1566 = vsel %vm490, %v1561, %v1565
        %v1567 = vshrl.u32 %v1513, 16
        %v1569 = vor.u32 %v1567, %v1553
        %v1571 = vshll.u32 %v1515, 16
        %v1573 = vrot.slane %v1571, 1
        %v1574 = vsel %vm490, %v1569, %v1573
        %v1575 = vshrl.u32 %v1514, 16
        %v1577 = vor.u32 %v1575, %v1565
        %v1579 = vshll.u32 %v1516, 16
        %v1581 = vrot.slane %v1579, 1
        %v1582 = vsel %vm490, %v1577, %v1581
        %v1583 = vshrl.u32 %v1515, 16
        %v1585 = vor.u32 %v1583, %v1573
        %v1587 = vshll.u32 %v1517, 16
        %v1589 = vrot.slane %v1587, 1
        %v1590 = vsel %vm490, %v1585, %v1589
        %v1591 = vshrl.u32 %v1516, 16
        %v1593 = vor.u32 %v1591, %v1581
        %v1595 = vshll.u32 %v1518, 16
        %v1597 = vrot.slane %v1595, 1
        %v1598 = vsel %vm490, %v1593, %v1597
        %v1599 = vshrl.u32 %v1517, 16
        %v1601 = vor.u32 %v1599, %v1589
        %v1603 = vshll.u32 %v1519, 16
        %v1605 = vrot.slane %v1603, 1
        %v1606 = vsel %vm490, %v1601, %v1605
        %v1607 = vshrl.u32 %v1518, 16
        %v1609 = vor.u32 %v1607, %v1597
        %v1611 = vshll.u32 %v1520, 16
        %v1613 = vrot.slane %v1611, 1
        %v1614 = vsel %vm490, %v1609, %v1613
        %v1615 = vshrl.u32 %v1519, 16
        %v1617 = vor.u32 %v1615, %v1605
        %v1619 = vshll.u32 %v1521, 16
        %v1621 = vrot.slane %v1619, 1
        %v1622 = vsel %vm490, %v1617, %v1621
        %v1623 = vshrl.u32 %v1520, 16
        %v1625 = vor.u32 %v1623, %v1613
        %v1627 = vshll.u32 %v1522, 16
        %v1629 = vrot.slane %v1627, 1
        %v1630 = vsel %vm490, %v1625, %v1629
        %v1631 = vshrl.u32 %v1521, 16
        %v1633 = vor.u32 %v1631, %v1621
        %v1635 = vshll.u32 %v1523, 16
        %v1637 = vrot.slane %v1635, 1
        %v1638 = vsel %vm490, %v1633, %v1637
        %v1639 = vshrl.u32 %v1522, 16
        %v1641 = vor.u32 %v1639, %v1629
        %v1643 = vshll.u32 %v1524, 16
        %v1645 = vrot.slane %v1643, 1
        %v1646 = vsel %vm490, %v1641, %v1645
        %v1647 = vshrl.u32 %v1523, 16
        %v1649 = vor.u32 %v1647, %v1637
        %v1651 = vshll.u32 %v1525, 16
        %v1653 = vrot.slane %v1651, 1
        %v1654 = vsel %vm490, %v1649, %v1653
        %v1655 = vshrl.u32 %v1524, 16
        %v1657 = vor.u32 %v1655, %v1645
        %v1659 = vshll.u32 %v1526, 16
        %v1661 = vrot.slane %v1659, 1
        %v1662 = vsel %vm490, %v1657, %v1661
        %v1663 = vshrl.u32 %v1525, 16
        %v1665 = vor.u32 %v1663, %v1653
        %v1667 = vshll.u32 %v1527, 16
        %v1669 = vrot.slane %v1667, 1
        %v1670 = vsel %vm490, %v1665, %v1669
        %v1671 = vshrl.u32 %v1526, 16
        %v1673 = vor.u32 %v1671, %v1661
        %v1675 = vshll.u32 %v1528, 16
        %v1677 = vrot.slane %v1675, 1
        %v1678 = vsel %vm490, %v1673, %v1677
        %v1679 = vshrl.u32 %v1527, 16
        %v1681 = vor.u32 %v1679, %v1669
        %v1683 = vshll.u32 %v1529, 16
        %v1685 = vrot.slane %v1683, 1
        %v1686 = vsel %vm490, %v1681, %v1685
        %v1687 = vshrl.u32 %v1528, 16
        %v1689 = vor.u32 %v1687, %v1677
        %v1691 = vshll.u32 %v1530, 16
        %v1693 = vrot.slane %v1691, 1
        %v1694 = vsel %vm490, %v1689, %v1693
        %v1695 = vshrl.u32 %v1529, 16
        %v1697 = vor.u32 %v1695, %v1685
        %v1699 = vshll.u32 %v1531, 16
        %v1701 = vrot.slane %v1699, 1
        %v1702 = vsel %vm490, %v1697, %v1701
        %v1703 = vshrl.u32 %v1530, 16
        %v1705 = vor.u32 %v1703, %v1693
        %v1707 = vshll.u32 %v1532, 16
        %v1709 = vrot.slane %v1707, 1
        %v1710 = vsel %vm490, %v1705, %v1709
        %v1711 = vshrl.u32 %v1531, 16
        %v1713 = vor.u32 %v1711, %v1701
        %v1715 = vshll.u32 %v1533, 16
        %v1717 = vrot.slane %v1715, 1
        %v1718 = vsel %vm490, %v1713, %v1717
        %v1719 = vshrl.u32 %v1532, 16
        %v1721 = vor.u32 %v1719, %v1709
        %v1723 = vshll.u32 %v1534, 16
        %v1725 = vrot.slane %v1723, 1
        %v1726 = vsel %vm490, %v1721, %v1725
        %v1727 = vshrl.u32 %v1533, 16
        %v1729 = vor.u32 %v1727, %v1717
        %v1731 = vshll.u32 %v1535, 16
        %v1733 = vrot.slane %v1731, 1
        %v1734 = vsel %vm490, %v1729, %v1733
        %v1735 = vshrl.u32 %v1534, 16
        %v1737 = vor.u32 %v1735, %v1725
        %v1739 = vshll.u32 %v1536, 16
        %v1741 = vrot.slane %v1739, 1
        %v1742 = vsel %vm490, %v1737, %v1741
        %v1743 = vshrl.u32 %v1535, 16
        %v1745 = vor.u32 %v1743, %v1733
        %v1747 = vshll.u32 %v1537, 16
        %v1749 = vrot.slane %v1747, 1
        %v1750 = vsel %vm490, %v1745, %v1749
        %v1751 = vshrl.u32 %v1536, 16
        %v1753 = vor.u32 %v1751, %v1741
        %v1755 = vshll.u32 %v1538, 16
        %v1757 = vrot.slane %v1755, 1
        %v1758 = vsel %vm490, %v1753, %v1757
        %v1759 = vshrl.u32 %v1537, 16
        %v1761 = vor.u32 %v1759, %v1749
        %v1763 = vshll.u32 %v1539, 16
        %v1765 = vrot.slane %v1763, 1
        %v1766 = vsel %vm490, %v1761, %v1765
        %v1767 = vshrl.u32 %v1538, 16
        %v1769 = vor.u32 %v1767, %v1757
        %v1771 = vshll.u32 %v1540, 16
        %v1773 = vrot.slane %v1771, 1
        %v1774 = vsel %vm490, %v1769, %v1773
        %v1775 = vshrl.u32 %v1539, 16
        %v1777 = vor.u32 %v1775, %v1765
        %v1779 = vshll.u32 %v1541, 16
        %v1781 = vrot.slane %v1779, 1
        %v1782 = vsel %vm490, %v1777, %v1781
        %v1783 = vshrl.u32 %v1540, 16
        %v1785 = vor.u32 %v1783, %v1773
        %v1787 = vshll.u32 %v1542, 16
        %v1789 = vrot.slane %v1787, 1
        %v1790 = vsel %vm490, %v1785, %v1789
        %v1791 = vshrl.u32 %v1541, 16
        %v1793 = vor.u32 %v1791, %v1781
        %v1794 = vshrl.u32 %v1542, 16
        %v1796 = vor.u32 %v1794, %v1789
        %v1829 = vmax.bf16 %v1511, %v1554
        %v1830 = vmax.bf16 %v1512, %v1566
        %v1831 = vmax.bf16 %v1513, %v1574
        %v1832 = vmax.bf16 %v1514, %v1582
        %v1833 = vmax.bf16 %v1515, %v1590
        %v1834 = vmax.bf16 %v1516, %v1598
        %v1835 = vmax.bf16 %v1517, %v1606
        %v1836 = vmax.bf16 %v1518, %v1614
        %v1837 = vmax.bf16 %v1519, %v1622
        %v1838 = vmax.bf16 %v1520, %v1630
        %v1839 = vmax.bf16 %v1521, %v1638
        %v1840 = vmax.bf16 %v1522, %v1646
        %v1841 = vmax.bf16 %v1523, %v1654
        %v1842 = vmax.bf16 %v1524, %v1662
        %v1843 = vmax.bf16 %v1525, %v1670
        %v1844 = vmax.bf16 %v1526, %v1678
        %v1845 = vmax.bf16 %v1527, %v1686
        %v1846 = vmax.bf16 %v1528, %v1694
        %v1847 = vmax.bf16 %v1529, %v1702
        %v1848 = vmax.bf16 %v1530, %v1710
        %v1849 = vmax.bf16 %v1531, %v1718
        %v1850 = vmax.bf16 %v1532, %v1726
        %v1851 = vmax.bf16 %v1533, %v1734
        %v1852 = vmax.bf16 %v1534, %v1742
        %v1853 = vmax.bf16 %v1535, %v1750
        %v1854 = vmax.bf16 %v1536, %v1758
        %v1855 = vmax.bf16 %v1537, %v1766
        %v1856 = vmax.bf16 %v1538, %v1774
        %v1857 = vmax.bf16 %v1539, %v1782
        %v1858 = vmax.bf16 %v1540, %v1790
        %v1859 = vmax.bf16 %v1541, %v1793
        %v1860 = vmax.bf16 %v1542, %v1796
        %v1861 = vld [vmem:[%s3] sm:$0xff]
        %v1862 = vld [vmem:[%s3 + $0x8] sm:$0xff]
        %v1863 = vld [vmem:[%s3 + $0x10] sm:$0xff]
        %v1864 = vld [vmem:[%s3 + $0x18] sm:$0xff]
        %v1865 = vld [vmem:[%s3 + $0x20] sm:$0xff]
        %v1866 = vld [vmem:[%s3 + $0x28] sm:$0xff]
        %v1867 = vld [vmem:[%s3 + $0x30] sm:$0xff]
        %v1868 = vld [vmem:[%s3 + $0x38] sm:$0xff]
        %v1869 = vld [vmem:[%s3 + $0x40] sm:$0xff]
        %v1870 = vld [vmem:[%s3 + $0x48] sm:$0xff]
        %v1871 = vld [vmem:[%s3 + $0x50] sm:$0xff]
        %v1872 = vld [vmem:[%s3 + $0x58] sm:$0xff]
        %v1873 = vld [vmem:[%s3 + $0x60] sm:$0xff]
        %v1874 = vld [vmem:[%s3 + $0x68] sm:$0xff]
        %v1875 = vld [vmem:[%s2] sm:$0x3]
        %v1877 = vlaneseq
        %v1878 = vshrl.u32 %v1877, 7
        %v1879 = vsub.s32 0, %v1878
        %v1880 = vrot.slane %v1875, %v1879
        %v1881 = vlaneseq
        %v1882 = vshrl.u32 %v1881, 7
        %v1883 = vsub.s32 1, %v1882
        %v1884 = vrot.slane %v1875, %v1883
        %v1901 = vunpack.c.l.b16 %v1861
        %v1902 = vunpack.c.h.b16 %v1861
        %v1903 = vunpack.c.l.b16 %v1862
        %v1904 = vunpack.c.h.b16 %v1862
        %v1905 = vunpack.c.l.b16 %v1863
        %v1906 = vunpack.c.h.b16 %v1863
        %v1907 = vunpack.c.l.b16 %v1864
        %v1908 = vunpack.c.h.b16 %v1864
        %v1909 = vunpack.c.l.b16 %v1865
        %v1910 = vunpack.c.h.b16 %v1865
        %v1911 = vunpack.c.l.b16 %v1866
        %v1912 = vunpack.c.h.b16 %v1866
        %v1913 = vunpack.c.l.b16 %v1867
        %v1914 = vunpack.c.h.b16 %v1867
        %v1915 = vunpack.c.l.b16 %v1868
        %v1916 = vunpack.c.h.b16 %v1868
        %v1917 = vunpack.c.l.b16 %v1869
        %v1918 = vunpack.c.h.b16 %v1869
        %v1919 = vunpack.c.l.b16 %v1870
        %v1920 = vunpack.c.h.b16 %v1870
        %v1921 = vunpack.c.l.b16 %v1871
        %v1922 = vunpack.c.h.b16 %v1871
        %v1923 = vunpack.c.l.b16 %v1872
        %v1924 = vunpack.c.h.b16 %v1872
        %v1925 = vunpack.c.l.b16 %v1873
        %v1926 = vunpack.c.h.b16 %v1873
        %v1927 = vunpack.c.l.b16 %v1874
        %v1928 = vunpack.c.h.b16 %v1874
        %v1929 = vpack.c.b16 %v1903, %v1901
        %v1930 = vpack.c.b16 %v1904, %v1902
        %v1931 = vpack.c.b16 %v1907, %v1905
        %v1932 = vpack.c.b16 %v1908, %v1906
        %v1933 = vpack.c.b16 %v1911, %v1909
        %v1934 = vpack.c.b16 %v1912, %v1910
        %v1935 = vpack.c.b16 %v1915, %v1913
        %v1936 = vpack.c.b16 %v1916, %v1914
        %v1937 = vpack.c.b16 %v1919, %v1917
        %v1938 = vpack.c.b16 %v1920, %v1918
        %v1939 = vpack.c.b16 %v1923, %v1921
        %v1940 = vpack.c.b16 %v1924, %v1922
        %v1941 = vpack.c.b16 %v1927, %v1925
        %v1942 = vpack.c.b16 %v1928, %v1926
        %vm1950 = vcmask 1006592
        %v1952 = vsel %vm1950, %v1930, 0
        %v1955 = vsel %vm1950, %v1932, 0
        %v1958 = vsel %vm1950, %v1934, 0
        %v1961 = vsel %vm1950, %v1936, 0
        %v1964 = vsel %vm1950, %v1938, 0
        %v1967 = vsel %vm1950, %v1940, 0
        %v1970 = vsel %vm1950, %v1942, 0
        %vm1972 = vcmask 1044480
        %vm1973 = vcmask 1045504
        %v1974 = vsel %vm1972, 4294967295, 65535
        %v1975 = vsel %vm1973, %v1974, 0
        %v1977 = vand.u32 %v1859, %v1975
        %v1980 = vand.u32 %v1860, %v1975
        %1982 = vmatprep.subr.bf16.mxu0 %v1844
        %1983 = vmatpush1.bf16.msra.mxu0 %v1843
        %1984 = vmatprep.subr.bf16.mxu0 %v1842
        %1985 = vmatpush1.bf16.msra.mxu0 %v1841
        %1986 = vmatprep.subr.bf16.mxu0 %v1840
        %1987 = vmatpush1.bf16.msra.mxu0 %v1839
        %1988 = vmatprep.subr.bf16.mxu0 %v1838
        %1989 = vmatpush1.bf16.msra.mxu0 %v1837
        %1990 = vmatprep.subr.bf16.mxu0 %v1836
        %1991 = vmatpush1.bf16.msra.mxu0 %v1835
        %1992 = vmatprep.subr.bf16.mxu0 %v1834
        %1993 = vmatpush1.bf16.msra.mxu0 %v1833
        %1994 = vmatprep.subr.bf16.mxu0 %v1832
        %1995 = vmatpush1.bf16.msra.mxu0 %v1831
        %1996 = vmatprep.subr.bf16.mxu0 %v1830
        %1997 = vmatpush1.bf16.msra.mxu0 %v1829
        %1998 = vmatprep.subr.bf16.mxu0 %v1980
        %1999 = vmatpush2.bf16.msra.mxu0 %v1977
        %2000 = vmatprep.subr.bf16.mxu0 %v1858
        %2001 = vmatpush2.bf16.msra.mxu0 %v1857
        %2002 = vmatprep.subr.bf16.mxu0 %v1856
        %2003 = vmatpush2.bf16.msra.mxu0 %v1855
        %2004 = vmatprep.subr.bf16.mxu0 %v1854
        %2005 = vmatpush2.bf16.msra.mxu0 %v1853
        %2006 = vmatprep.subr.bf16.mxu0 %v1852
        %2007 = vmatpush2.bf16.msra.mxu0 %v1851
        %2008 = vmatprep.subr.bf16.mxu0 %v1850
        %2009 = vmatpush2.bf16.msra.mxu0 %v1849
        %2010 = vmatprep.subr.bf16.mxu0 %v1848
        %2011 = vmatpush2.bf16.msra.mxu0 %v1847
        %2012 = vmatprep.subr.bf16.mxu0 %v1846
        %2013 = vmatpush2.bf16.msra.mxu0 %v1845
        %2014 = vmatprep.mubr.bf16.mxu0 %v1952
        %2015 = vmatmul.mubr.bf16.gmra.mxu0 %v1929
        %v2016 = vpop.f32.mrf.mxu0
        %v2017 = vadd.f32 %v1880, %v2016
        %v2018 = vpop.f32.mrf.mxu0
        %v2019 = vadd.f32 %v1884, %v2018
        %v2020 = vpop.f32.mrf.mxu0
        %v2021 = vadd.f32 %v1880, %v2020
        %v2022 = vpop.f32.mrf.mxu0
        %v2023 = vadd.f32 %v1884, %v2022
        %2024 = vmatprep.mubr.bf16.mxu0 %v1955
        %2025 = vmatmul.mubr.bf16.gmra.mxu0 %v1931
        %v2026 = vpop.f32.mrf.mxu0
        %v2027 = vadd.f32 %v1880, %v2026
        %v2028 = vpop.f32.mrf.mxu0
        %v2029 = vadd.f32 %v1884, %v2028
        %v2030 = vpop.f32.mrf.mxu0
        %v2031 = vadd.f32 %v1880, %v2030
        %v2032 = vpop.f32.mrf.mxu0
        %v2033 = vadd.f32 %v1884, %v2032
        %2034 = vmatprep.mubr.bf16.mxu0 %v1958
        %2035 = vmatmul.mubr.bf16.gmra.mxu0 %v1933
        %v2036 = vpop.f32.mrf.mxu0
        %v2037 = vadd.f32 %v1880, %v2036
        %v2038 = vpop.f32.mrf.mxu0
        %v2039 = vadd.f32 %v1884, %v2038
        %v2040 = vpop.f32.mrf.mxu0
        %v2041 = vadd.f32 %v1880, %v2040
        %v2042 = vpop.f32.mrf.mxu0
        %v2043 = vadd.f32 %v1884, %v2042
        %2044 = vmatprep.mubr.bf16.mxu0 %v1961
        %2045 = vmatmul.mubr.bf16.gmra.mxu0 %v1935
        %v2046 = vpop.f32.mrf.mxu0
        %v2047 = vadd.f32 %v1880, %v2046
        %v2048 = vpop.f32.mrf.mxu0
        %v2049 = vadd.f32 %v1884, %v2048
        %v2050 = vpop.f32.mrf.mxu0
        %v2051 = vadd.f32 %v1880, %v2050
        %v2052 = vpop.f32.mrf.mxu0
        %v2053 = vadd.f32 %v1884, %v2052
        %2054 = vmatprep.mubr.bf16.mxu0 %v1964
        %2055 = vmatmul.mubr.bf16.gmra.mxu0 %v1937
        %v2056 = vpop.f32.mrf.mxu0
        %v2057 = vadd.f32 %v1880, %v2056
        %v2058 = vpop.f32.mrf.mxu0
        %v2059 = vadd.f32 %v1884, %v2058
        %v2060 = vpop.f32.mrf.mxu0
        %v2061 = vadd.f32 %v1880, %v2060
        %v2062 = vpop.f32.mrf.mxu0
        %v2063 = vadd.f32 %v1884, %v2062
        %2064 = vmatprep.mubr.bf16.mxu0 %v1967
        %2065 = vmatmul.mubr.bf16.gmra.mxu0 %v1939
        %v2066 = vpop.f32.mrf.mxu0
        %v2067 = vadd.f32 %v1880, %v2066
        %v2068 = vpop.f32.mrf.mxu0
        %v2069 = vadd.f32 %v1884, %v2068
        %v2070 = vpop.f32.mrf.mxu0
        %v2071 = vadd.f32 %v1880, %v2070
        %v2072 = vpop.f32.mrf.mxu0
        %v2073 = vadd.f32 %v1884, %v2072
        %2074 = vmatprep.mubr.bf16.mxu0 %v1970
        %2075 = vmatmul.mubr.bf16.gmra.mxu0 %v1941
        %v2076 = vpop.f32.mrf.mxu0
        %v2077 = vadd.f32 %v1880, %v2076
        %v2078 = vpop.f32.mrf.mxu0
        %v2079 = vadd.f32 %v1884, %v2078
        %v2080 = vpop.f32.mrf.mxu0
        %v2081 = vadd.f32 %v1880, %v2080
        %v2082 = vpop.f32.mrf.mxu0
        %v2083 = vadd.f32 %v1884, %v2082
        %2084 = vdwg.mxu0
        %v2085 = vmax.f32 %v2017, 0.0
        %v2086 = vmax.f32 %v2019, 0.0
        %v2087 = vmax.f32 %v2021, 0.0
        %v2088 = vmax.f32 %v2023, 0.0
        %v2089 = vmax.f32 %v2027, 0.0
        %v2090 = vmax.f32 %v2029, 0.0
        %v2091 = vmax.f32 %v2031, 0.0
        %v2092 = vmax.f32 %v2033, 0.0
        %v2093 = vmax.f32 %v2037, 0.0
        %v2094 = vmax.f32 %v2039, 0.0
        %v2095 = vmax.f32 %v2041, 0.0
        %v2096 = vmax.f32 %v2043, 0.0
        %v2097 = vmax.f32 %v2047, 0.0
        %v2098 = vmax.f32 %v2049, 0.0
        %v2099 = vmax.f32 %v2051, 0.0
        %v2100 = vmax.f32 %v2053, 0.0
        %v2101 = vmax.f32 %v2057, 0.0
        %v2102 = vmax.f32 %v2059, 0.0
        %v2103 = vmax.f32 %v2061, 0.0
        %v2104 = vmax.f32 %v2063, 0.0
        %v2105 = vmax.f32 %v2067, 0.0
        %v2106 = vmax.f32 %v2069, 0.0
        %v2107 = vmax.f32 %v2071, 0.0
        %v2108 = vmax.f32 %v2073, 0.0
        %v2109 = vmax.f32 %v2077, 0.0
        %v2110 = vmax.f32 %v2079, 0.0
        %v2111 = vmax.f32 %v2081, 0.0
        %v2112 = vmax.f32 %v2083, 0.0
        %v2113 = vpack.c.bf16 %v2087, %v2085
        %v2114 = vpack.c.bf16 %v2088, %v2086
        %v2115 = vpack.c.bf16 %v2091, %v2089
        %v2116 = vpack.c.bf16 %v2092, %v2090
        %v2117 = vpack.c.bf16 %v2095, %v2093
        %v2118 = vpack.c.bf16 %v2096, %v2094
        %v2119 = vpack.c.bf16 %v2099, %v2097
        %v2120 = vpack.c.bf16 %v2100, %v2098
        %v2121 = vpack.c.bf16 %v2103, %v2101
        %v2122 = vpack.c.bf16 %v2104, %v2102
        %v2123 = vpack.c.bf16 %v2107, %v2105
        %v2124 = vpack.c.bf16 %v2108, %v2106
        %v2125 = vpack.c.bf16 %v2111, %v2109
        %v2126 = vpack.c.bf16 %v2112, %v2110
        %v2128 = vshrl.u32 %v2113, 16
        %v2130 = vshll.u32 %v2113, 16
        %v2132 = vrot.slane %v2130, 1
        %v2133 = vor.u32 %v2128, %v2132
        %v2135 = vshll.u32 %v2115, 16
        %v2137 = vrot.slane %v2135, 1
        %v2138 = vsel %vm490, %v2133, %v2137
        %v2140 = vshrl.u32 %v2114, 16
        %v2142 = vshll.u32 %v2114, 16
        %v2144 = vrot.slane %v2142, 1
        %v2145 = vor.u32 %v2140, %v2144
        %v2147 = vshll.u32 %v2116, 16
        %v2149 = vrot.slane %v2147, 1
        %v2150 = vsel %vm490, %v2145, %v2149
        %v2151 = vshrl.u32 %v2115, 16
        %v2153 = vor.u32 %v2151, %v2137
        %v2155 = vshll.u32 %v2117, 16
        %v2157 = vrot.slane %v2155, 1
        %v2158 = vsel %vm490, %v2153, %v2157
        %v2159 = vshrl.u32 %v2116, 16
        %v2161 = vor.u32 %v2159, %v2149
        %v2163 = vshll.u32 %v2118, 16
        %v2165 = vrot.slane %v2163, 1
        %v2166 = vsel %vm490, %v2161, %v2165
        %v2167 = vshrl.u32 %v2117, 16
        %v2169 = vor.u32 %v2167, %v2157
        %v2171 = vshll.u32 %v2119, 16
        %v2173 = vrot.slane %v2171, 1
        %v2174 = vsel %vm490, %v2169, %v2173
        %v2175 = vshrl.u32 %v2118, 16
        %v2177 = vor.u32 %v2175, %v2165
        %v2179 = vshll.u32 %v2120, 16
        %v2181 = vrot.slane %v2179, 1
        %v2182 = vsel %vm490, %v2177, %v2181
        %v2183 = vshrl.u32 %v2119, 16
        %v2185 = vor.u32 %v2183, %v2173
        %v2187 = vshll.u32 %v2121, 16
        %v2189 = vrot.slane %v2187, 1
        %v2190 = vsel %vm490, %v2185, %v2189
        %v2191 = vshrl.u32 %v2120, 16
        %v2193 = vor.u32 %v2191, %v2181
        %v2195 = vshll.u32 %v2122, 16
        %v2197 = vrot.slane %v2195, 1
        %v2198 = vsel %vm490, %v2193, %v2197
        %v2199 = vshrl.u32 %v2121, 16
        %v2201 = vor.u32 %v2199, %v2189
        %v2203 = vshll.u32 %v2123, 16
        %v2205 = vrot.slane %v2203, 1
        %v2206 = vsel %vm490, %v2201, %v2205
        %v2207 = vshrl.u32 %v2122, 16
        %v2209 = vor.u32 %v2207, %v2197
        %v2211 = vshll.u32 %v2124, 16
        %v2213 = vrot.slane %v2211, 1
        %v2214 = vsel %vm490, %v2209, %v2213
        %v2215 = vshrl.u32 %v2123, 16
        %v2217 = vor.u32 %v2215, %v2205
        %v2219 = vshll.u32 %v2125, 16
        %v2221 = vrot.slane %v2219, 1
        %v2222 = vsel %vm490, %v2217, %v2221
        %v2223 = vshrl.u32 %v2124, 16
        %v2225 = vor.u32 %v2223, %v2213
        %v2227 = vshll.u32 %v2126, 16
        %v2229 = vrot.slane %v2227, 1
        %v2230 = vsel %vm490, %v2225, %v2229
        %v2231 = vshrl.u32 %v2125, 16
        %v2233 = vor.u32 %v2231, %v2221
        %v2234 = vshrl.u32 %v2126, 16
        %v2236 = vor.u32 %v2234, %v2229
        %2237 = vrot.lane.b32.xlu0 %v2138, 39
        %v2238 = vpop.permute.xlu0 %2237
        %2239 = vrot.lane.b32.xlu0 %v2150, 39
        %v2240 = vpop.permute.xlu0 %2239
        %2241 = vrot.lane.b32.xlu0 %v2158, 39
        %v2242 = vpop.permute.xlu0 %2241
        %2243 = vrot.lane.b32.xlu0 %v2166, 39
        %v2244 = vpop.permute.xlu0 %2243
        %2245 = vrot.lane.b32.xlu0 %v2174, 39
        %v2246 = vpop.permute.xlu0 %2245
        %2247 = vrot.lane.b32.xlu0 %v2182, 39
        %v2248 = vpop.permute.xlu0 %2247
        %2249 = vrot.lane.b32.xlu0 %v2190, 39
        %v2250 = vpop.permute.xlu0 %2249
        %2251 = vrot.lane.b32.xlu0 %v2198, 39
        %v2252 = vpop.permute.xlu0 %2251
        %2253 = vrot.lane.b32.xlu0 %v2206, 39
        %v2254 = vpop.permute.xlu0 %2253
        %2255 = vrot.lane.b32.xlu0 %v2214, 39
        %v2256 = vpop.permute.xlu0 %2255
        %2257 = vrot.lane.b32.xlu0 %v2222, 39
        %v2258 = vpop.permute.xlu0 %2257
        %2259 = vrot.lane.b32.xlu0 %v2230, 39
        %v2260 = vpop.permute.xlu0 %2259
        %2261 = vrot.lane.b32.xlu0 %v2233, 39
        %v2262 = vpop.permute.xlu0 %2261
        %2263 = vrot.lane.b32.xlu0 %v2236, 39
        %v2264 = vpop.permute.xlu0 %2263
        %vm2265 = vcmask 318464
        %v2266 = vsel %vm2265, %v2238, %v2240
        %v2267 = vsel %vm2265, %v2242, %v2244
        %v2268 = vsel %vm2265, %v2246, %v2248
        %v2269 = vsel %vm2265, %v2250, %v2252
        %v2270 = vsel %vm2265, %v2254, %v2256
        %v2271 = vsel %vm2265, %v2258, %v2260
        %v2272 = vsel %vm2265, %v2262, %v2264
        %v2287 = vrot.slane %v2113, 1
        %v2288 = vrot.slane %v2115, 1
        %v2289 = vsel %vm666, %v2287, %v2288
        %v2290 = vrot.slane %v2114, 1
        %v2291 = vrot.slane %v2116, 1
        %v2292 = vsel %vm666, %v2290, %v2291
        %v2293 = vrot.slane %v2117, 1
        %v2294 = vsel %vm666, %v2288, %v2293
        %v2295 = vrot.slane %v2118, 1
        %v2296 = vsel %vm666, %v2291, %v2295
        %v2297 = vrot.slane %v2119, 1
        %v2298 = vsel %vm666, %v2293, %v2297
        %v2299 = vrot.slane %v2120, 1
        %v2300 = vsel %vm666, %v2295, %v2299
        %v2301 = vrot.slane %v2121, 1
        %v2302 = vsel %vm666, %v2297, %v2301
        %v2303 = vrot.slane %v2122, 1
        %v2304 = vsel %vm666, %v2299, %v2303
        %v2305 = vrot.slane %v2123, 1
        %v2306 = vsel %vm666, %v2301, %v2305
        %v2307 = vrot.slane %v2124, 1
        %v2308 = vsel %vm666, %v2303, %v2307
        %v2309 = vrot.slane %v2125, 1
        %v2310 = vsel %vm666, %v2305, %v2309
        %v2311 = vrot.slane %v2126, 1
        %v2312 = vsel %vm666, %v2307, %v2311
        %2313 = vrot.lane.b32.xlu0 %v2289, 78
        %v2314 = vpop.permute.xlu0 %2313
        %2315 = vrot.lane.b32.xlu0 %v2292, 78
        %v2316 = vpop.permute.xlu0 %2315
        %2317 = vrot.lane.b32.xlu0 %v2294, 78
        %v2318 = vpop.permute.xlu0 %2317
        %2319 = vrot.lane.b32.xlu0 %v2296, 78
        %v2320 = vpop.permute.xlu0 %2319
        %2321 = vrot.lane.b32.xlu0 %v2298, 78
        %v2322 = vpop.permute.xlu0 %2321
        %2323 = vrot.lane.b32.xlu0 %v2300, 78
        %v2324 = vpop.permute.xlu0 %2323
        %2325 = vrot.lane.b32.xlu0 %v2302, 78
        %v2326 = vpop.permute.xlu0 %2325
        %2327 = vrot.lane.b32.xlu0 %v2304, 78
        %v2328 = vpop.permute.xlu0 %2327
        %2329 = vrot.lane.b32.xlu0 %v2306, 78
        %v2330 = vpop.permute.xlu0 %2329
        %2331 = vrot.lane.b32.xlu0 %v2308, 78
        %v2332 = vpop.permute.xlu0 %2331
        %2333 = vrot.lane.b32.xlu0 %v2310, 78
        %v2334 = vpop.permute.xlu0 %2333
        %2335 = vrot.lane.b32.xlu0 %v2312, 78
        %v2336 = vpop.permute.xlu0 %2335
        %2337 = vrot.lane.b32.xlu0 %v2309, 78
        %v2338 = vpop.permute.xlu0 %2337
        %2339 = vrot.lane.b32.xlu0 %v2311, 78
        %v2340 = vpop.permute.xlu0 %2339
        %vm2341 = vcmask 637952
        %v2342 = vsel %vm2341, %v2314, %v2316
        %v2343 = vsel %vm2341, %v2318, %v2320
        %v2344 = vsel %vm2341, %v2322, %v2324
        %v2345 = vsel %vm2341, %v2326, %v2328
        %v2346 = vsel %vm2341, %v2330, %v2332
        %v2347 = vsel %vm2341, %v2334, %v2336
        %v2348 = vsel %vm2341, %v2338, %v2340
        %v2349 = vrot.slane %v2128, 1
        %v2350 = vrot.slane %v2130, 2
        %v2351 = vor.u32 %v2349, %v2350
        %v2352 = vrot.slane %v2151, 1
        %v2353 = vrot.slane %v2135, 2
        %v2354 = vor.u32 %v2352, %v2353
        %v2355 = vsel %vm730, %v2351, %v2354
        %v2356 = vrot.slane %v2140, 1
        %v2357 = vrot.slane %v2142, 2
        %v2358 = vor.u32 %v2356, %v2357
        %v2359 = vrot.slane %v2159, 1
        %v2360 = vrot.slane %v2147, 2
        %v2361 = vor.u32 %v2359, %v2360
        %v2362 = vsel %vm730, %v2358, %v2361
        %v2363 = vrot.slane %v2167, 1
        %v2364 = vrot.slane %v2155, 2
        %v2365 = vor.u32 %v2363, %v2364
        %v2366 = vsel %vm730, %v2354, %v2365
        %v2367 = vrot.slane %v2175, 1
        %v2368 = vrot.slane %v2163, 2
        %v2369 = vor.u32 %v2367, %v2368
        %v2370 = vsel %vm730, %v2361, %v2369
        %v2371 = vrot.slane %v2183, 1
        %v2372 = vrot.slane %v2171, 2
        %v2373 = vor.u32 %v2371, %v2372
        %v2374 = vsel %vm730, %v2365, %v2373
        %v2375 = vrot.slane %v2191, 1
        %v2376 = vrot.slane %v2179, 2
        %v2377 = vor.u32 %v2375, %v2376
        %v2378 = vsel %vm730, %v2369, %v2377
        %v2379 = vrot.slane %v2199, 1
        %v2380 = vrot.slane %v2187, 2
        %v2381 = vor.u32 %v2379, %v2380
        %v2382 = vsel %vm730, %v2373, %v2381
        %v2383 = vrot.slane %v2207, 1
        %v2384 = vrot.slane %v2195, 2
        %v2385 = vor.u32 %v2383, %v2384
        %v2386 = vsel %vm730, %v2377, %v2385
        %v2387 = vrot.slane %v2215, 1
        %v2388 = vrot.slane %v2203, 2
        %v2389 = vor.u32 %v2387, %v2388
        %v2390 = vsel %vm730, %v2381, %v2389
        %v2391 = vrot.slane %v2223, 1
        %v2392 = vrot.slane %v2211, 2
        %v2393 = vor.u32 %v2391, %v2392
        %v2394 = vsel %vm730, %v2385, %v2393
        %v2395 = vrot.slane %v2231, 1
        %v2396 = vrot.slane %v2219, 2
        %v2397 = vor.u32 %v2395, %v2396
        %v2398 = vsel %vm730, %v2389, %v2397
        %v2399 = vrot.slane %v2234, 1
        %v2400 = vrot.slane %v2227, 2
        %v2401 = vor.u32 %v2399, %v2400
        %v2402 = vsel %vm730, %v2393, %v2401
        %2403 = vrot.lane.b32.xlu0 %v2355, 117
        %v2404 = vpop.permute.xlu0 %2403
        %2405 = vrot.lane.b32.xlu0 %v2362, 117
        %v2406 = vpop.permute.xlu0 %2405
        %2407 = vrot.lane.b32.xlu0 %v2366, 117
        %v2408 = vpop.permute.xlu0 %2407
        %2409 = vrot.lane.b32.xlu0 %v2370, 117
        %v2410 = vpop.permute.xlu0 %2409
        %2411 = vrot.lane.b32.xlu0 %v2374, 117
        %v2412 = vpop.permute.xlu0 %2411
        %2413 = vrot.lane.b32.xlu0 %v2378, 117
        %v2414 = vpop.permute.xlu0 %2413
        %2415 = vrot.lane.b32.xlu0 %v2382, 117
        %v2416 = vpop.permute.xlu0 %2415
        %2417 = vrot.lane.b32.xlu0 %v2386, 117
        %v2418 = vpop.permute.xlu0 %2417
        %2419 = vrot.lane.b32.xlu0 %v2390, 117
        %v2420 = vpop.permute.xlu0 %2419
        %2421 = vrot.lane.b32.xlu0 %v2394, 117
        %v2422 = vpop.permute.xlu0 %2421
        %2423 = vrot.lane.b32.xlu0 %v2398, 117
        %v2424 = vpop.permute.xlu0 %2423
        %2425 = vrot.lane.b32.xlu0 %v2402, 117
        %v2426 = vpop.permute.xlu0 %2425
        %2427 = vrot.lane.b32.xlu0 %v2397, 117
        %v2428 = vpop.permute.xlu0 %2427
        %2429 = vrot.lane.b32.xlu0 %v2401, 117
        %v2430 = vpop.permute.xlu0 %2429
        %vm2431 = vcmask 957440
        %v2432 = vsel %vm2431, %v2404, %v2406
        %v2433 = vsel %vm2431, %v2408, %v2410
        %v2434 = vsel %vm2431, %v2412, %v2414
        %v2435 = vsel %vm2431, %v2416, %v2418
        %v2436 = vsel %vm2431, %v2420, %v2422
        %v2437 = vsel %vm2431, %v2424, %v2426
        %v2438 = vsel %vm2431, %v2428, %v2430
        %v2446 = vrot.slane %v2113, 2
        %v2447 = vrot.slane %v2115, 2
        %v2448 = vsel %vm826, %v2446, %v2447
        %v2449 = vrot.slane %v2114, 2
        %v2450 = vrot.slane %v2116, 2
        %v2451 = vsel %vm826, %v2449, %v2450
        %v2452 = vrot.slane %v2117, 2
        %v2453 = vsel %vm826, %v2447, %v2452
        %v2454 = vrot.slane %v2118, 2
        %v2455 = vsel %vm826, %v2450, %v2454
        %v2456 = vrot.slane %v2119, 2
        %v2457 = vsel %vm826, %v2452, %v2456
        %v2458 = vrot.slane %v2120, 2
        %v2459 = vsel %vm826, %v2454, %v2458
        %v2460 = vrot.slane %v2121, 2
        %v2461 = vsel %vm826, %v2456, %v2460
        %v2462 = vrot.slane %v2122, 2
        %v2463 = vsel %vm826, %v2458, %v2462
        %v2464 = vrot.slane %v2123, 2
        %v2465 = vsel %vm826, %v2460, %v2464
        %v2466 = vrot.slane %v2124, 2
        %v2467 = vsel %vm826, %v2462, %v2466
        %v2468 = vrot.slane %v2125, 2
        %v2469 = vsel %vm826, %v2464, %v2468
        %v2470 = vrot.slane %v2126, 2
        %v2471 = vsel %vm826, %v2466, %v2470
        %2472 = vrot.lane.b32.xlu0 %v2448, 28
        %v2473 = vpop.permute.xlu0 %2472
        %2474 = vrot.lane.b32.xlu0 %v2451, 28
        %v2475 = vpop.permute.xlu0 %2474
        %2476 = vrot.lane.b32.xlu0 %v2453, 28
        %v2477 = vpop.permute.xlu0 %2476
        %2478 = vrot.lane.b32.xlu0 %v2455, 28
        %v2479 = vpop.permute.xlu0 %2478
        %2480 = vrot.lane.b32.xlu0 %v2457, 28
        %v2481 = vpop.permute.xlu0 %2480
        %2482 = vrot.lane.b32.xlu0 %v2459, 28
        %v2483 = vpop.permute.xlu0 %2482
        %2484 = vrot.lane.b32.xlu0 %v2461, 28
        %v2485 = vpop.permute.xlu0 %2484
        %2486 = vrot.lane.b32.xlu0 %v2463, 28
        %v2487 = vpop.permute.xlu0 %2486
        %2488 = vrot.lane.b32.xlu0 %v2465, 28
        %v2489 = vpop.permute.xlu0 %2488
        %2490 = vrot.lane.b32.xlu0 %v2467, 28
        %v2491 = vpop.permute.xlu0 %2490
        %2492 = vrot.lane.b32.xlu0 %v2469, 28
        %v2493 = vpop.permute.xlu0 %2492
        %2494 = vrot.lane.b32.xlu0 %v2471, 28
        %v2495 = vpop.permute.xlu0 %2494
        %2496 = vrot.lane.b32.xlu0 %v2468, 28
        %v2497 = vpop.permute.xlu0 %2496
        %2498 = vrot.lane.b32.xlu0 %v2470, 28
        %v2499 = vpop.permute.xlu0 %2498
        %vm2500 = vcmask 228352
        %v2501 = vsel %vm2500, %v2473, %v2475
        %v2502 = vsel %vm2500, %v2477, %v2479
        %v2503 = vsel %vm2500, %v2481, %v2483
        %v2504 = vsel %vm2500, %v2485, %v2487
        %v2505 = vsel %vm2500, %v2489, %v2491
        %v2506 = vsel %vm2500, %v2493, %v2495
        %v2507 = vsel %vm2500, %v2497, %v2499
        %vm2508 = vcmask 318464
        %v2510 = vsel %vm2508, %v2114, %v2238
        %v2513 = vsel %vm2508, %v2116, %v2242
        %v2516 = vsel %vm2508, %v2118, %v2246
        %v2519 = vsel %vm2508, %v2120, %v2250
        %v2522 = vsel %vm2508, %v2122, %v2254
        %v2525 = vsel %vm2508, %v2124, %v2258
        %v2528 = vsel %vm2508, %v2126, %v2262
        %vm2530 = vcmask 637952
        %v2533 = vsel %vm2530, %v2266, %v2314
        %v2537 = vsel %vm2530, %v2267, %v2318
        %v2541 = vsel %vm2530, %v2268, %v2322
        %v2545 = vsel %vm2530, %v2269, %v2326
        %v2549 = vsel %vm2530, %v2270, %v2330
        %v2553 = vsel %vm2530, %v2271, %v2334
        %v2557 = vsel %vm2530, %v2272, %v2338
        %vm2559 = vcmask 957440
        %v2562 = vsel %vm2559, %v2342, %v2404
        %v2566 = vsel %vm2559, %v2343, %v2408
        %v2570 = vsel %vm2559, %v2344, %v2412
        %v2574 = vsel %vm2559, %v2345, %v2416
        %v2578 = vsel %vm2559, %v2346, %v2420
        %v2582 = vsel %vm2559, %v2347, %v2424
        %v2586 = vsel %vm2559, %v2348, %v2428
        %vm2588 = vcmask 228352
        %v2591 = vsel %vm2588, %v2406, %v2473
        %v2595 = vsel %vm2588, %v2410, %v2477
        %v2599 = vsel %vm2588, %v2414, %v2481
        %v2603 = vsel %vm2588, %v2418, %v2485
        %v2607 = vsel %vm2588, %v2422, %v2489
        %v2611 = vsel %vm2588, %v2426, %v2493
        %v2615 = vsel %vm2588, %v2430, %v2497
        %v2617 = vld [vmem:[%s4] sm:$0xff]
        %v2618 = vld [vmem:[%s4 + $0x8] sm:$0xff]
        %v2619 = vld [vmem:[%s4 + $0x10] sm:$0xff]
        %v2620 = vld [vmem:[%s4 + $0x18] sm:$0xff]
        %v2621 = vld [vmem:[%s4 + $0x20] sm:$0xff]
        %v2622 = vld [vmem:[%s4 + $0x28] sm:$0xff]
        %v2623 = vld [vmem:[%s4 + $0x30] sm:$0xff]
        %v2624 = vld [vmem:[%s4 + $0x38] sm:$0xff]
        %v2625 = vld [vmem:[%s4 + $0x40] sm:$0xff]
        %v2626 = vld [vmem:[%s4 + $0x48] sm:$0xff]
        %v2627 = vld [vmem:[%s4 + $0x50] sm:$0xff]
        %v2628 = vld [vmem:[%s4 + $0x58] sm:$0xff]
        %v2629 = vld [vmem:[%s4 + $0x60] sm:$0xff]
        %v2630 = vld [vmem:[%s4 + $0x68] sm:$0xff]
        %v2631 = vld [vmem:[%s4 + $0x70] sm:$0xff]
        %v2632 = vld [vmem:[%s4 + $0x78] sm:$0xff]
        %v2633 = vld [vmem:[%s4 + $0x80] sm:$0xff]
        %v2634 = vld [vmem:[%s4 + $0x88] sm:$0xff]
        %v2635 = vld [vmem:[%s4 + $0x90] sm:$0xff]
        %v2636 = vld [vmem:[%s4 + $0x98] sm:$0xff]
        %v2637 = vld [vmem:[%s4 + $0xa0] sm:$0xff]
        %v2638 = vld [vmem:[%s4 + $0xa8] sm:$0xff]
        %v2639 = vld [vmem:[%s4 + $0xb0] sm:$0xff]
        %v2640 = vld [vmem:[%s4 + $0xb8] sm:$0xff]
        %v2641 = vld [vmem:[%s4 + $0xc0] sm:$0xff]
        %v2642 = vld [vmem:[%s4 + $0xc8] sm:$0xff]
        %v2643 = vld [vmem:[%s4 + $0xd0] sm:$0xff]
        %v2644 = vld [vmem:[%s4 + $0xd8] sm:$0xff]
        %v2645 = vld [vmem:[%s4 + $0xe0] sm:$0xff]
        %v2646 = vld [vmem:[%s4 + $0xe8] sm:$0xff]
        %v2647 = vld [vmem:[%s4 + $0xf0] sm:$0xff]
        %v2648 = vld [vmem:[%s4 + $0xf8] sm:$0xff]
        %v2649 = vld [vmem:[%s4 + $0x100] sm:$0xff]
        %v2650 = vld [vmem:[%s4 + $0x108] sm:$0xff]
        %v2651 = vld [vmem:[%s4 + $0x110] sm:$0xff]
        %v2652 = vld [vmem:[%s4 + $0x118] sm:$0xff]
        %v2653 = vld [vmem:[%s4 + $0x120] sm:$0xff]
        %v2654 = vld [vmem:[%s4 + $0x128] sm:$0xff]
        %v2655 = vld [vmem:[%s4 + $0x130] sm:$0xff]
        %v2656 = vld [vmem:[%s4 + $0x138] sm:$0xff]
        %v2657 = vld [vmem:[%s4 + $0x140] sm:$0xff]
        %v2658 = vld [vmem:[%s4 + $0x148] sm:$0xff]
        %v2659 = vld [vmem:[%s4 + $0x150] sm:$0xff]
        %v2660 = vld [vmem:[%s4 + $0x158] sm:$0xff]
        %v2661 = vld [vmem:[%s4 + $0x160] sm:$0xff]
        %v2662 = vld [vmem:[%s4 + $0x168] sm:$0xff]
        %v2663 = vld [vmem:[%s4 + $0x170] sm:$0xff]
        %v2664 = vld [vmem:[%s4 + $0x178] sm:$0xff]
        %v2665 = vld [vmem:[%s4 + $0x180] sm:$0xff]
        %v2666 = vld [vmem:[%s4 + $0x188] sm:$0xff]
        %v2667 = vld [vmem:[%s4 + $0x190] sm:$0xff]
        %v2668 = vld [vmem:[%s4 + $0x198] sm:$0xff]
        %v2669 = vld [vmem:[%s4 + $0x1a0] sm:$0xff]
        %v2670 = vld [vmem:[%s4 + $0x1a8] sm:$0xff]
        %v2671 = vld [vmem:[%s4 + $0x1b0] sm:$0xff]
        %v2672 = vld [vmem:[%s4 + $0x1b8] sm:$0xff]
        %v2673 = vld [vmem:[%s4 + $0x1c0] sm:$0xff]
        %v2674 = vld [vmem:[%s4 + $0x1c8] sm:$0xff]
        %v2675 = vld [vmem:[%s4 + $0x1d0] sm:$0xff]
        %v2676 = vld [vmem:[%s4 + $0x1d8] sm:$0xff]
        %v2677 = vld [vmem:[%s4 + $0x1e0] sm:$0xff]
        %v2678 = vld [vmem:[%s4 + $0x1e8] sm:$0xff]
        %v2679 = vld [vmem:[%s4 + $0x1f0] sm:$0xff]
        %v2680 = vld [vmem:[%s4 + $0x1f8] sm:$0xff]
        %v2681 = vld [vmem:[%s4 + $0x200] sm:$0xff]
        %v2682 = vld [vmem:[%s4 + $0x208] sm:$0xff]
        %v2683 = vld [vmem:[%s4 + $0x210] sm:$0xff]
        %v2684 = vld [vmem:[%s4 + $0x218] sm:$0xff]
        %v2685 = vld [vmem:[%s4 + $0x220] sm:$0xff]
        %v2686 = vld [vmem:[%s4 + $0x228] sm:$0xff]
        %v2687 = vld [vmem:[%s4 + $0x230] sm:$0xff]
        %v2688 = vld [vmem:[%s4 + $0x238] sm:$0xff]
        %v2689 = vld [vmem:[%s4 + $0x240] sm:$0xff]
        %v2690 = vld [vmem:[%s4 + $0x248] sm:$0xff]
        %v2691 = vld [vmem:[%s4 + $0x250] sm:$0xff]
        %v2692 = vld [vmem:[%s4 + $0x258] sm:$0xff]
        %v2693 = vld [vmem:[%s4 + $0x260] sm:$0xff]
        %v2694 = vld [vmem:[%s4 + $0x268] sm:$0xff]
        %v2695 = vld [vmem:[%s4 + $0x270] sm:$0xff]
        %v2696 = vld [vmem:[%s4 + $0x278] sm:$0xff]
        %v2697 = vld [vmem:[%s4 + $0x280] sm:$0xff]
        %v2698 = vld [vmem:[%s4 + $0x288] sm:$0xff]
        %v2699 = vld [vmem:[%s4 + $0x290] sm:$0xff]
        %v2700 = vld [vmem:[%s4 + $0x298] sm:$0xff]
        %v2701 = vld [vmem:[%s4 + $0x2a0] sm:$0xff]
        %v2702 = vld [vmem:[%s4 + $0x2a8] sm:$0xff]
        %v2703 = vld [vmem:[%s4 + $0x2b0] sm:$0xff]
        %v2704 = vld [vmem:[%s4 + $0x2b8] sm:$0xff]
        %v2705 = vld [vmem:[%s4 + $0x2c0] sm:$0xff]
        %v2706 = vld [vmem:[%s4 + $0x2c8] sm:$0xff]
        %v2707 = vld [vmem:[%s4 + $0x2d0] sm:$0xff]
        %v2708 = vld [vmem:[%s4 + $0x2d8] sm:$0xff]
        %v2709 = vld [vmem:[%s4 + $0x2e0] sm:$0xff]
        %v2710 = vld [vmem:[%s4 + $0x2e8] sm:$0xff]
        %v2711 = vld [vmem:[%s4 + $0x2f0] sm:$0xff]
        %v2712 = vld [vmem:[%s4 + $0x2f8] sm:$0xff]
        %v2713 = vld [vmem:[%s4 + $0x300] sm:$0xff]
        %v2714 = vld [vmem:[%s4 + $0x308] sm:$0xff]
        %v2715 = vld [vmem:[%s4 + $0x310] sm:$0xff]
        %v2716 = vld [vmem:[%s4 + $0x318] sm:$0xff]
        %v2717 = vld [vmem:[%s4 + $0x320] sm:$0xff]
        %v2718 = vld [vmem:[%s4 + $0x328] sm:$0xff]
        %v2719 = vld [vmem:[%s4 + $0x330] sm:$0xff]
        %v2720 = vld [vmem:[%s4 + $0x338] sm:$0xff]
        %v2721 = vld [vmem:[%s4 + $0x340] sm:$0x33]
        %v2827 = vunpack.c.l.b16 %v2617
        %v2828 = vunpack.c.h.b16 %v2617
        %v2829 = vunpack.c.l.b16 %v2618
        %v2830 = vunpack.c.h.b16 %v2618
        %v2831 = vunpack.c.l.b16 %v2619
        %v2832 = vunpack.c.h.b16 %v2619
        %v2833 = vunpack.c.l.b16 %v2620
        %v2834 = vunpack.c.h.b16 %v2620
        %v2835 = vunpack.c.l.b16 %v2621
        %v2836 = vunpack.c.h.b16 %v2621
        %v2837 = vunpack.c.l.b16 %v2622
        %v2838 = vunpack.c.h.b16 %v2622
        %v2839 = vunpack.c.l.b16 %v2623
        %v2840 = vunpack.c.h.b16 %v2623
        %v2841 = vunpack.c.l.b16 %v2624
        %v2842 = vunpack.c.h.b16 %v2624
        %v2843 = vunpack.c.l.b16 %v2625
        %v2844 = vunpack.c.h.b16 %v2625
        %v2845 = vunpack.c.l.b16 %v2626
        %v2846 = vunpack.c.h.b16 %v2626
        %v2847 = vunpack.c.l.b16 %v2627
        %v2848 = vunpack.c.h.b16 %v2627
        %v2849 = vunpack.c.l.b16 %v2628
        %v2850 = vunpack.c.h.b16 %v2628
        %v2851 = vunpack.c.l.b16 %v2629
        %v2852 = vunpack.c.h.b16 %v2629
        %v2853 = vunpack.c.l.b16 %v2630
        %v2854 = vunpack.c.h.b16 %v2630
        %v2855 = vunpack.c.l.b16 %v2631
        %v2856 = vunpack.c.h.b16 %v2631
        %v2857 = vunpack.c.l.b16 %v2632
        %v2858 = vunpack.c.h.b16 %v2632
        %v2859 = vunpack.c.l.b16 %v2633
        %v2860 = vunpack.c.h.b16 %v2633
        %v2861 = vunpack.c.l.b16 %v2634
        %v2862 = vunpack.c.h.b16 %v2634
        %v2863 = vunpack.c.l.b16 %v2635
        %v2864 = vunpack.c.h.b16 %v2635
        %v2865 = vunpack.c.l.b16 %v2636
        %v2866 = vunpack.c.h.b16 %v2636
        %v2867 = vunpack.c.l.b16 %v2637
        %v2868 = vunpack.c.h.b16 %v2637
        %v2869 = vunpack.c.l.b16 %v2638
        %v2870 = vunpack.c.h.b16 %v2638
        %v2871 = vunpack.c.l.b16 %v2639
        %v2872 = vunpack.c.h.b16 %v2639
        %v2873 = vunpack.c.l.b16 %v2640
        %v2874 = vunpack.c.h.b16 %v2640
        %v2875 = vunpack.c.l.b16 %v2641
        %v2876 = vunpack.c.h.b16 %v2641
        %v2877 = vunpack.c.l.b16 %v2642
        %v2878 = vunpack.c.h.b16 %v2642
        %v2879 = vunpack.c.l.b16 %v2643
        %v2880 = vunpack.c.h.b16 %v2643
        %v2881 = vunpack.c.l.b16 %v2644
        %v2882 = vunpack.c.h.b16 %v2644
        %v2883 = vunpack.c.l.b16 %v2645
        %v2884 = vunpack.c.h.b16 %v2645
        %v2885 = vunpack.c.l.b16 %v2646
        %v2886 = vunpack.c.h.b16 %v2646
        %v2887 = vunpack.c.l.b16 %v2647
        %v2888 = vunpack.c.h.b16 %v2647
        %v2889 = vunpack.c.l.b16 %v2648
        %v2890 = vunpack.c.h.b16 %v2648
        %v2891 = vunpack.c.l.b16 %v2649
        %v2892 = vunpack.c.h.b16 %v2649
        %v2893 = vunpack.c.l.b16 %v2650
        %v2894 = vunpack.c.h.b16 %v2650
        %v2895 = vunpack.c.l.b16 %v2651
        %v2896 = vunpack.c.h.b16 %v2651
        %v2897 = vunpack.c.l.b16 %v2652
        %v2898 = vunpack.c.h.b16 %v2652
        %v2899 = vunpack.c.l.b16 %v2653
        %v2900 = vunpack.c.h.b16 %v2653
        %v2901 = vunpack.c.l.b16 %v2654
        %v2902 = vunpack.c.h.b16 %v2654
        %v2903 = vunpack.c.l.b16 %v2655
        %v2904 = vunpack.c.h.b16 %v2655
        %v2905 = vunpack.c.l.b16 %v2656
        %v2906 = vunpack.c.h.b16 %v2656
        %v2907 = vunpack.c.l.b16 %v2657
        %v2908 = vunpack.c.h.b16 %v2657
        %v2909 = vunpack.c.l.b16 %v2658
        %v2910 = vunpack.c.h.b16 %v2658
        %v2911 = vunpack.c.l.b16 %v2659
        %v2912 = vunpack.c.h.b16 %v2659
        %v2913 = vunpack.c.l.b16 %v2660
        %v2914 = vunpack.c.h.b16 %v2660
        %v2915 = vunpack.c.l.b16 %v2661
        %v2916 = vunpack.c.h.b16 %v2661
        %v2917 = vunpack.c.l.b16 %v2662
        %v2918 = vunpack.c.h.b16 %v2662
        %v2919 = vunpack.c.l.b16 %v2663
        %v2920 = vunpack.c.h.b16 %v2663
        %v2921 = vunpack.c.l.b16 %v2664
        %v2922 = vunpack.c.h.b16 %v2664
        %v2923 = vunpack.c.l.b16 %v2665
        %v2924 = vunpack.c.h.b16 %v2665
        %v2925 = vunpack.c.l.b16 %v2666
        %v2926 = vunpack.c.h.b16 %v2666
        %v2927 = vunpack.c.l.b16 %v2667
        %v2928 = vunpack.c.h.b16 %v2667
        %v2929 = vunpack.c.l.b16 %v2668
        %v2930 = vunpack.c.h.b16 %v2668
        %v2931 = vunpack.c.l.b16 %v2669
        %v2932 = vunpack.c.h.b16 %v2669
        %v2933 = vunpack.c.l.b16 %v2670
        %v2934 = vunpack.c.h.b16 %v2670
        %v2935 = vunpack.c.l.b16 %v2671
        %v2936 = vunpack.c.h.b16 %v2671
        %v2937 = vunpack.c.l.b16 %v2672
        %v2938 = vunpack.c.h.b16 %v2672
        %v2939 = vunpack.c.l.b16 %v2673
        %v2940 = vunpack.c.h.b16 %v2673
        %v2941 = vunpack.c.l.b16 %v2674
        %v2942 = vunpack.c.h.b16 %v2674
        %v2943 = vunpack.c.l.b16 %v2675
        %v2944 = vunpack.c.h.b16 %v2675
        %v2945 = vunpack.c.l.b16 %v2676
        %v2946 = vunpack.c.h.b16 %v2676
        %v2947 = vunpack.c.l.b16 %v2677
        %v2948 = vunpack.c.h.b16 %v2677
        %v2949 = vunpack.c.l.b16 %v2678
        %v2950 = vunpack.c.h.b16 %v2678
        %v2951 = vunpack.c.l.b16 %v2679
        %v2952 = vunpack.c.h.b16 %v2679
        %v2953 = vunpack.c.l.b16 %v2680
        %v2954 = vunpack.c.h.b16 %v2680
        %v2955 = vunpack.c.l.b16 %v2681
        %v2956 = vunpack.c.h.b16 %v2681
        %v2957 = vunpack.c.l.b16 %v2682
        %v2958 = vunpack.c.h.b16 %v2682
        %v2959 = vunpack.c.l.b16 %v2683
        %v2960 = vunpack.c.h.b16 %v2683
        %v2961 = vunpack.c.l.b16 %v2684
        %v2962 = vunpack.c.h.b16 %v2684
        %v2963 = vunpack.c.l.b16 %v2685
        %v2964 = vunpack.c.h.b16 %v2685
        %v2965 = vunpack.c.l.b16 %v2686
        %v2966 = vunpack.c.h.b16 %v2686
        %v2967 = vunpack.c.l.b16 %v2687
        %v2968 = vunpack.c.h.b16 %v2687
        %v2969 = vunpack.c.l.b16 %v2688
        %v2970 = vunpack.c.h.b16 %v2688
        %v2971 = vunpack.c.l.b16 %v2689
        %v2972 = vunpack.c.h.b16 %v2689
        %v2973 = vunpack.c.l.b16 %v2690
        %v2974 = vunpack.c.h.b16 %v2690
        %v2975 = vunpack.c.l.b16 %v2691
        %v2976 = vunpack.c.h.b16 %v2691
        %v2977 = vunpack.c.l.b16 %v2692
        %v2978 = vunpack.c.h.b16 %v2692
        %v2979 = vunpack.c.l.b16 %v2693
        %v2980 = vunpack.c.h.b16 %v2693
        %v2981 = vunpack.c.l.b16 %v2694
        %v2982 = vunpack.c.h.b16 %v2694
        %v2983 = vunpack.c.l.b16 %v2695
        %v2984 = vunpack.c.h.b16 %v2695
        %v2985 = vunpack.c.l.b16 %v2696
        %v2986 = vunpack.c.h.b16 %v2696
        %v2987 = vunpack.c.l.b16 %v2697
        %v2988 = vunpack.c.h.b16 %v2697
        %v2989 = vunpack.c.l.b16 %v2698
        %v2990 = vunpack.c.h.b16 %v2698
        %v2991 = vunpack.c.l.b16 %v2699
        %v2992 = vunpack.c.h.b16 %v2699
        %v2993 = vunpack.c.l.b16 %v2700
        %v2994 = vunpack.c.h.b16 %v2700
        %v2995 = vunpack.c.l.b16 %v2701
        %v2996 = vunpack.c.h.b16 %v2701
        %v2997 = vunpack.c.l.b16 %v2702
        %v2998 = vunpack.c.h.b16 %v2702
        %v2999 = vunpack.c.l.b16 %v2703
        %v3000 = vunpack.c.h.b16 %v2703
        %v3001 = vunpack.c.l.b16 %v2704
        %v3002 = vunpack.c.h.b16 %v2704
        %v3003 = vunpack.c.l.b16 %v2705
        %v3004 = vunpack.c.h.b16 %v2705
        %v3005 = vunpack.c.l.b16 %v2706
        %v3006 = vunpack.c.h.b16 %v2706
        %v3007 = vunpack.c.l.b16 %v2707
        %v3008 = vunpack.c.h.b16 %v2707
        %v3009 = vunpack.c.l.b16 %v2708
        %v3010 = vunpack.c.h.b16 %v2708
        %v3011 = vunpack.c.l.b16 %v2709
        %v3012 = vunpack.c.h.b16 %v2709
        %v3013 = vunpack.c.l.b16 %v2710
        %v3014 = vunpack.c.h.b16 %v2710
        %v3015 = vunpack.c.l.b16 %v2711
        %v3016 = vunpack.c.h.b16 %v2711
        %v3017 = vunpack.c.l.b16 %v2712
        %v3018 = vunpack.c.h.b16 %v2712
        %v3019 = vunpack.c.l.b16 %v2713
        %v3020 = vunpack.c.h.b16 %v2713
        %v3021 = vunpack.c.l.b16 %v2714
        %v3022 = vunpack.c.h.b16 %v2714
        %v3023 = vunpack.c.l.b16 %v2715
        %v3024 = vunpack.c.h.b16 %v2715
        %v3025 = vunpack.c.l.b16 %v2716
        %v3026 = vunpack.c.h.b16 %v2716
        %v3027 = vunpack.c.l.b16 %v2717
        %v3028 = vunpack.c.h.b16 %v2717
        %v3029 = vunpack.c.l.b16 %v2718
        %v3030 = vunpack.c.h.b16 %v2718
        %v3031 = vunpack.c.l.b16 %v2719
        %v3032 = vunpack.c.h.b16 %v2719
        %v3033 = vunpack.c.l.b16 %v2720
        %v3034 = vunpack.c.h.b16 %v2720
        %v3035 = vunpack.c.l.b16 %v2721
        %v3036 = vunpack.c.h.b16 %v2721
        %v3037 = vpack.c.b16 %v2829, %v2827
        %v3038 = vpack.c.b16 %v2830, %v2828
        %v3039 = vpack.c.b16 %v2833, %v2831
        %v3040 = vpack.c.b16 %v2834, %v2832
        %v3041 = vpack.c.b16 %v2837, %v2835
        %v3042 = vpack.c.b16 %v2838, %v2836
        %v3043 = vpack.c.b16 %v2841, %v2839
        %v3044 = vpack.c.b16 %v2842, %v2840
        %v3045 = vpack.c.b16 %v2845, %v2843
        %v3046 = vpack.c.b16 %v2846, %v2844
        %v3047 = vpack.c.b16 %v2849, %v2847
        %v3048 = vpack.c.b16 %v2850, %v2848
        %v3049 = vpack.c.b16 %v2853, %v2851
        %v3050 = vpack.c.b16 %v2854, %v2852
        %v3051 = vpack.c.b16 %v2857, %v2855
        %v3052 = vpack.c.b16 %v2858, %v2856
        %v3053 = vpack.c.b16 %v2861, %v2859
        %v3054 = vpack.c.b16 %v2862, %v2860
        %v3055 = vpack.c.b16 %v2865, %v2863
        %v3056 = vpack.c.b16 %v2866, %v2864
        %v3057 = vpack.c.b16 %v2869, %v2867
        %v3058 = vpack.c.b16 %v2870, %v2868
        %v3059 = vpack.c.b16 %v2873, %v2871
        %v3060 = vpack.c.b16 %v2874, %v2872
        %v3061 = vpack.c.b16 %v2877, %v2875
        %v3062 = vpack.c.b16 %v2878, %v2876
        %v3063 = vpack.c.b16 %v2881, %v2879
        %v3064 = vpack.c.b16 %v2882, %v2880
        %v3065 = vpack.c.b16 %v2885, %v2883
        %v3066 = vpack.c.b16 %v2886, %v2884
        %v3067 = vpack.c.b16 %v2889, %v2887
        %v3068 = vpack.c.b16 %v2890, %v2888
        %v3069 = vpack.c.b16 %v2893, %v2891
        %v3070 = vpack.c.b16 %v2894, %v2892
        %v3071 = vpack.c.b16 %v2897, %v2895
        %v3072 = vpack.c.b16 %v2898, %v2896
        %v3073 = vpack.c.b16 %v2901, %v2899
        %v3074 = vpack.c.b16 %v2902, %v2900
        %v3075 = vpack.c.b16 %v2905, %v2903
        %v3076 = vpack.c.b16 %v2906, %v2904
        %v3077 = vpack.c.b16 %v2909, %v2907
        %v3078 = vpack.c.b16 %v2910, %v2908
        %v3079 = vpack.c.b16 %v2913, %v2911
        %v3080 = vpack.c.b16 %v2914, %v2912
        %v3081 = vpack.c.b16 %v2917, %v2915
        %v3082 = vpack.c.b16 %v2918, %v2916
        %v3083 = vpack.c.b16 %v2921, %v2919
        %v3084 = vpack.c.b16 %v2922, %v2920
        %v3085 = vpack.c.b16 %v2925, %v2923
        %v3086 = vpack.c.b16 %v2926, %v2924
        %v3087 = vpack.c.b16 %v2929, %v2927
        %v3088 = vpack.c.b16 %v2930, %v2928
        %v3089 = vpack.c.b16 %v2933, %v2931
        %v3090 = vpack.c.b16 %v2934, %v2932
        %v3091 = vpack.c.b16 %v2937, %v2935
        %v3092 = vpack.c.b16 %v2938, %v2936
        %v3093 = vpack.c.b16 %v2941, %v2939
        %v3094 = vpack.c.b16 %v2942, %v2940
        %v3095 = vpack.c.b16 %v2945, %v2943
        %v3096 = vpack.c.b16 %v2946, %v2944
        %v3097 = vpack.c.b16 %v2949, %v2947
        %v3098 = vpack.c.b16 %v2950, %v2948
        %v3099 = vpack.c.b16 %v2953, %v2951
        %v3100 = vpack.c.b16 %v2954, %v2952
        %v3101 = vpack.c.b16 %v2957, %v2955
        %v3102 = vpack.c.b16 %v2958, %v2956
        %v3103 = vpack.c.b16 %v2961, %v2959
        %v3104 = vpack.c.b16 %v2962, %v2960
        %v3105 = vpack.c.b16 %v2965, %v2963
        %v3106 = vpack.c.b16 %v2966, %v2964
        %v3107 = vpack.c.b16 %v2969, %v2967
        %v3108 = vpack.c.b16 %v2970, %v2968
        %v3109 = vpack.c.b16 %v2973, %v2971
        %v3110 = vpack.c.b16 %v2974, %v2972
        %v3111 = vpack.c.b16 %v2977, %v2975
        %v3112 = vpack.c.b16 %v2978, %v2976
        %v3113 = vpack.c.b16 %v2981, %v2979
        %v3114 = vpack.c.b16 %v2982, %v2980
        %v3115 = vpack.c.b16 %v2985, %v2983
        %v3116 = vpack.c.b16 %v2986, %v2984
        %v3117 = vpack.c.b16 %v2989, %v2987
        %v3118 = vpack.c.b16 %v2990, %v2988
        %v3119 = vpack.c.b16 %v2993, %v2991
        %v3120 = vpack.c.b16 %v2994, %v2992
        %v3121 = vpack.c.b16 %v2997, %v2995
        %v3122 = vpack.c.b16 %v2998, %v2996
        %v3123 = vpack.c.b16 %v3001, %v2999
        %v3124 = vpack.c.b16 %v3002, %v3000
        %v3125 = vpack.c.b16 %v3005, %v3003
        %v3126 = vpack.c.b16 %v3006, %v3004
        %v3127 = vpack.c.b16 %v3009, %v3007
        %v3128 = vpack.c.b16 %v3010, %v3008
        %v3129 = vpack.c.b16 %v3013, %v3011
        %v3130 = vpack.c.b16 %v3014, %v3012
        %v3131 = vpack.c.b16 %v3017, %v3015
        %v3132 = vpack.c.b16 %v3018, %v3016
        %v3133 = vpack.c.b16 %v3021, %v3019
        %v3134 = vpack.c.b16 %v3022, %v3020
        %v3135 = vpack.c.b16 %v3025, %v3023
        %v3136 = vpack.c.b16 %v3026, %v3024
        %v3137 = vpack.c.b16 %v3029, %v3027
        %v3138 = vpack.c.b16 %v3030, %v3028
        %v3139 = vpack.c.b16 %v3033, %v3031
        %v3140 = vpack.c.b16 %v3034, %v3032
        %v3141 = vpack.c.b16 %v3035, %v3035
        %v3142 = vpack.c.b16 %v3036, %v3036
        %vm3247 = vcmask 547840
        %v3249 = vsel %vm3247, %v2501, 0
        %v3252 = vsel %vm3247, %v2502, 0
        %v3255 = vsel %vm3247, %v2503, 0
        %v3258 = vsel %vm3247, %v2504, 0
        %v3261 = vsel %vm3247, %v2505, 0
        %v3264 = vsel %vm3247, %v2506, 0
        %v3267 = vsel %vm3247, %v2507, 0
        %vm3269 = vcmask 1040384
        %vm3270 = vcmask 1041408
        %v3271 = vsel %vm3269, 4294967295, 65535
        %v3272 = vsel %vm3270, %v3271, 0
        %v3274 = vand.u32 %v3141, %v3272
        %v3277 = vand.u32 %v3142, %v3272
        %3279 = vmatprep.subr.bf16.mxu0 %v3052
        %3280 = vmatpush1.bf16.msra.mxu0 %v3051
        %3281 = vmatprep.subr.bf16.mxu0 %v3050
        %3282 = vmatpush1.bf16.msra.mxu0 %v3049
        %3283 = vmatprep.subr.bf16.mxu0 %v3048
        %3284 = vmatpush1.bf16.msra.mxu0 %v3047
        %3285 = vmatprep.subr.bf16.mxu0 %v3046
        %3286 = vmatpush1.bf16.msra.mxu0 %v3045
        %3287 = vmatprep.subr.bf16.mxu0 %v3044
        %3288 = vmatpush1.bf16.msra.mxu0 %v3043
        %3289 = vmatprep.subr.bf16.mxu0 %v3042
        %3290 = vmatpush1.bf16.msra.mxu0 %v3041
        %3291 = vmatprep.subr.bf16.mxu0 %v3040
        %3292 = vmatpush1.bf16.msra.mxu0 %v3039
        %3293 = vmatprep.subr.bf16.mxu0 %v3038
        %3294 = vmatpush1.bf16.msra.mxu0 %v3037
        %3295 = vmatprep.subr.bf16.mxu0 %v3068
        %3296 = vmatpush2.bf16.msra.mxu0 %v3067
        %3297 = vmatprep.subr.bf16.mxu0 %v3066
        %3298 = vmatpush2.bf16.msra.mxu0 %v3065
        %3299 = vmatprep.subr.bf16.mxu0 %v3064
        %3300 = vmatpush2.bf16.msra.mxu0 %v3063
        %3301 = vmatprep.subr.bf16.mxu0 %v3062
        %3302 = vmatpush2.bf16.msra.mxu0 %v3061
        %3303 = vmatprep.subr.bf16.mxu0 %v3060
        %3304 = vmatpush2.bf16.msra.mxu0 %v3059
        %3305 = vmatprep.subr.bf16.mxu0 %v3058
        %3306 = vmatpush2.bf16.msra.mxu0 %v3057
        %3307 = vmatprep.subr.bf16.mxu0 %v3056
        %3308 = vmatpush2.bf16.msra.mxu0 %v3055
        %3309 = vmatprep.subr.bf16.mxu0 %v3054
        %3310 = vmatpush2.bf16.msra.mxu0 %v3053
        %3311 = vmatprep.mubr.bf16.mxu0 %v2510
        %3312 = vmatmul.mubr.bf16.gmra.mxu0 %v2113
        %v3313 = vpop.f32.mrf.mxu0
        %v3314 = vadd.f32 0.0, %v3313
        %v3315 = vpop.f32.mrf.mxu0
        %v3316 = vadd.f32 0.0, %v3315
        %v3317 = vpop.f32.mrf.mxu0
        %v3318 = vadd.f32 0.0, %v3317
        %v3319 = vpop.f32.mrf.mxu0
        %v3320 = vadd.f32 0.0, %v3319
        %3321 = vmatprep.mubr.bf16.mxu0 %v2513
        %3322 = vmatmul.mubr.bf16.gmra.mxu0 %v2115
        %v3323 = vpop.f32.mrf.mxu0
        %v3324 = vadd.f32 0.0, %v3323
        %v3325 = vpop.f32.mrf.mxu0
        %v3326 = vadd.f32 0.0, %v3325
        %v3327 = vpop.f32.mrf.mxu0
        %v3328 = vadd.f32 0.0, %v3327
        %v3329 = vpop.f32.mrf.mxu0
        %v3330 = vadd.f32 0.0, %v3329
        %3331 = vmatprep.mubr.bf16.mxu0 %v2516
        %3332 = vmatmul.mubr.bf16.gmra.mxu0 %v2117
        %v3333 = vpop.f32.mrf.mxu0
        %v3334 = vadd.f32 0.0, %v3333
        %v3335 = vpop.f32.mrf.mxu0
        %v3336 = vadd.f32 0.0, %v3335
        %v3337 = vpop.f32.mrf.mxu0
        %v3338 = vadd.f32 0.0, %v3337
        %v3339 = vpop.f32.mrf.mxu0
        %v3340 = vadd.f32 0.0, %v3339
        %3341 = vmatprep.mubr.bf16.mxu0 %v2519
        %3342 = vmatmul.mubr.bf16.gmra.mxu0 %v2119
        %v3343 = vpop.f32.mrf.mxu0
        %v3344 = vadd.f32 0.0, %v3343
        %v3345 = vpop.f32.mrf.mxu0
        %v3346 = vadd.f32 0.0, %v3345
        %v3347 = vpop.f32.mrf.mxu0
        %v3348 = vadd.f32 0.0, %v3347
        %v3349 = vpop.f32.mrf.mxu0
        %v3350 = vadd.f32 0.0, %v3349
        %3351 = vmatprep.mubr.bf16.mxu0 %v2522
        %3352 = vmatmul.mubr.bf16.gmra.mxu0 %v2121
        %v3353 = vpop.f32.mrf.mxu0
        %v3354 = vadd.f32 0.0, %v3353
        %v3355 = vpop.f32.mrf.mxu0
        %v3356 = vadd.f32 0.0, %v3355
        %v3357 = vpop.f32.mrf.mxu0
        %v3358 = vadd.f32 0.0, %v3357
        %v3359 = vpop.f32.mrf.mxu0
        %v3360 = vadd.f32 0.0, %v3359
        %3361 = vmatprep.mubr.bf16.mxu0 %v2525
        %3362 = vmatmul.mubr.bf16.gmra.mxu0 %v2123
        %v3363 = vpop.f32.mrf.mxu0
        %v3364 = vadd.f32 0.0, %v3363
        %v3365 = vpop.f32.mrf.mxu0
        %v3366 = vadd.f32 0.0, %v3365
        %v3367 = vpop.f32.mrf.mxu0
        %v3368 = vadd.f32 0.0, %v3367
        %v3369 = vpop.f32.mrf.mxu0
        %v3370 = vadd.f32 0.0, %v3369
        %3371 = vmatprep.mubr.bf16.mxu0 %v2528
        %3372 = vmatmul.mubr.bf16.gmra.mxu0 %v2125
        %v3373 = vpop.f32.mrf.mxu0
        %v3374 = vadd.f32 0.0, %v3373
        %v3375 = vpop.f32.mrf.mxu0
        %v3376 = vadd.f32 0.0, %v3375
        %v3377 = vpop.f32.mrf.mxu0
        %v3378 = vadd.f32 0.0, %v3377
        %v3379 = vpop.f32.mrf.mxu0
        %v3380 = vadd.f32 0.0, %v3379
        %3381 = vdwg.mxu0
        %3382 = vmatprep.subr.bf16.mxu0 %v3084
        %3383 = vmatpush1.bf16.msra.mxu0 %v3083
        %3384 = vmatprep.subr.bf16.mxu0 %v3082
        %3385 = vmatpush1.bf16.msra.mxu0 %v3081
        %3386 = vmatprep.subr.bf16.mxu0 %v3080
        %3387 = vmatpush1.bf16.msra.mxu0 %v3079
        %3388 = vmatprep.subr.bf16.mxu0 %v3078
        %3389 = vmatpush1.bf16.msra.mxu0 %v3077
        %3390 = vmatprep.subr.bf16.mxu0 %v3076
        %3391 = vmatpush1.bf16.msra.mxu0 %v3075
        %3392 = vmatprep.subr.bf16.mxu0 %v3074
        %3393 = vmatpush1.bf16.msra.mxu0 %v3073
        %3394 = vmatprep.subr.bf16.mxu0 %v3072
        %3395 = vmatpush1.bf16.msra.mxu0 %v3071
        %3396 = vmatprep.subr.bf16.mxu0 %v3070
        %3397 = vmatpush1.bf16.msra.mxu0 %v3069
        %3398 = vmatprep.subr.bf16.mxu0 %v3100
        %3399 = vmatpush2.bf16.msra.mxu0 %v3099
        %3400 = vmatprep.subr.bf16.mxu0 %v3098
        %3401 = vmatpush2.bf16.msra.mxu0 %v3097
        %3402 = vmatprep.subr.bf16.mxu0 %v3096
        %3403 = vmatpush2.bf16.msra.mxu0 %v3095
        %3404 = vmatprep.subr.bf16.mxu0 %v3094
        %3405 = vmatpush2.bf16.msra.mxu0 %v3093
        %3406 = vmatprep.subr.bf16.mxu0 %v3092
        %3407 = vmatpush2.bf16.msra.mxu0 %v3091
        %3408 = vmatprep.subr.bf16.mxu0 %v3090
        %3409 = vmatpush2.bf16.msra.mxu0 %v3089
        %3410 = vmatprep.subr.bf16.mxu0 %v3088
        %3411 = vmatpush2.bf16.msra.mxu0 %v3087
        %3412 = vmatprep.subr.bf16.mxu0 %v3086
        %3413 = vmatpush2.bf16.msra.mxu0 %v3085
        %3414 = vmatprep.mubr.bf16.mxu0 %v2562
        %3415 = vmatmul.mubr.bf16.gmra.mxu0 %v2533
        %v3416 = vpop.f32.mrf.mxu0
        %v3417 = vadd.f32 %v3314, %v3416
        %v3418 = vpop.f32.mrf.mxu0
        %v3419 = vadd.f32 %v3316, %v3418
        %v3420 = vpop.f32.mrf.mxu0
        %v3421 = vadd.f32 %v3318, %v3420
        %v3422 = vpop.f32.mrf.mxu0
        %v3423 = vadd.f32 %v3320, %v3422
        %3424 = vmatprep.mubr.bf16.mxu0 %v2566
        %3425 = vmatmul.mubr.bf16.gmra.mxu0 %v2537
        %v3426 = vpop.f32.mrf.mxu0
        %v3427 = vadd.f32 %v3324, %v3426
        %v3428 = vpop.f32.mrf.mxu0
        %v3429 = vadd.f32 %v3326, %v3428
        %v3430 = vpop.f32.mrf.mxu0
        %v3431 = vadd.f32 %v3328, %v3430
        %v3432 = vpop.f32.mrf.mxu0
        %v3433 = vadd.f32 %v3330, %v3432
        %3434 = vmatprep.mubr.bf16.mxu0 %v2570
        %3435 = vmatmul.mubr.bf16.gmra.mxu0 %v2541
        %v3436 = vpop.f32.mrf.mxu0
        %v3437 = vadd.f32 %v3334, %v3436
        %v3438 = vpop.f32.mrf.mxu0
        %v3439 = vadd.f32 %v3336, %v3438
        %v3440 = vpop.f32.mrf.mxu0
        %v3441 = vadd.f32 %v3338, %v3440
        %v3442 = vpop.f32.mrf.mxu0
        %v3443 = vadd.f32 %v3340, %v3442
        %3444 = vmatprep.mubr.bf16.mxu0 %v2574
        %3445 = vmatmul.mubr.bf16.gmra.mxu0 %v2545
        %v3446 = vpop.f32.mrf.mxu0
        %v3447 = vadd.f32 %v3344, %v3446
        %v3448 = vpop.f32.mrf.mxu0
        %v3449 = vadd.f32 %v3346, %v3448
        %v3450 = vpop.f32.mrf.mxu0
        %v3451 = vadd.f32 %v3348, %v3450
        %v3452 = vpop.f32.mrf.mxu0
        %v3453 = vadd.f32 %v3350, %v3452
        %3454 = vmatprep.mubr.bf16.mxu0 %v2578
        %3455 = vmatmul.mubr.bf16.gmra.mxu0 %v2549
        %v3456 = vpop.f32.mrf.mxu0
        %v3457 = vadd.f32 %v3354, %v3456
        %v3458 = vpop.f32.mrf.mxu0
        %v3459 = vadd.f32 %v3356, %v3458
        %v3460 = vpop.f32.mrf.mxu0
        %v3461 = vadd.f32 %v3358, %v3460
        %v3462 = vpop.f32.mrf.mxu0
        %v3463 = vadd.f32 %v3360, %v3462
        %3464 = vmatprep.mubr.bf16.mxu0 %v2582
        %3465 = vmatmul.mubr.bf16.gmra.mxu0 %v2553
        %v3466 = vpop.f32.mrf.mxu0
        %v3467 = vadd.f32 %v3364, %v3466
        %v3468 = vpop.f32.mrf.mxu0
        %v3469 = vadd.f32 %v3366, %v3468
        %v3470 = vpop.f32.mrf.mxu0
        %v3471 = vadd.f32 %v3368, %v3470
        %v3472 = vpop.f32.mrf.mxu0
        %v3473 = vadd.f32 %v3370, %v3472
        %3474 = vmatprep.mubr.bf16.mxu0 %v2586
        %3475 = vmatmul.mubr.bf16.gmra.mxu0 %v2557
        %v3476 = vpop.f32.mrf.mxu0
        %v3477 = vadd.f32 %v3374, %v3476
        %v3478 = vpop.f32.mrf.mxu0
        %v3479 = vadd.f32 %v3376, %v3478
        %v3480 = vpop.f32.mrf.mxu0
        %v3481 = vadd.f32 %v3378, %v3480
        %v3482 = vpop.f32.mrf.mxu0
        %v3483 = vadd.f32 %v3380, %v3482
        %3484 = vdwg.mxu0
        %3485 = vmatprep.subr.bf16.mxu0 %v3116
        %3486 = vmatpush1.bf16.msra.mxu0 %v3115
        %3487 = vmatprep.subr.bf16.mxu0 %v3114
        %3488 = vmatpush1.bf16.msra.mxu0 %v3113
        %3489 = vmatprep.subr.bf16.mxu0 %v3112
        %3490 = vmatpush1.bf16.msra.mxu0 %v3111
        %3491 = vmatprep.subr.bf16.mxu0 %v3110
        %3492 = vmatpush1.bf16.msra.mxu0 %v3109
        %3493 = vmatprep.subr.bf16.mxu0 %v3108
        %3494 = vmatpush1.bf16.msra.mxu0 %v3107
        %3495 = vmatprep.subr.bf16.mxu0 %v3106
        %3496 = vmatpush1.bf16.msra.mxu0 %v3105
        %3497 = vmatprep.subr.bf16.mxu0 %v3104
        %3498 = vmatpush1.bf16.msra.mxu0 %v3103
        %3499 = vmatprep.subr.bf16.mxu0 %v3102
        %3500 = vmatpush1.bf16.msra.mxu0 %v3101
        %3501 = vmatprep.subr.bf16.mxu0 %v3132
        %3502 = vmatpush2.bf16.msra.mxu0 %v3131
        %3503 = vmatprep.subr.bf16.mxu0 %v3130
        %3504 = vmatpush2.bf16.msra.mxu0 %v3129
        %3505 = vmatprep.subr.bf16.mxu0 %v3128
        %3506 = vmatpush2.bf16.msra.mxu0 %v3127
        %3507 = vmatprep.subr.bf16.mxu0 %v3126
        %3508 = vmatpush2.bf16.msra.mxu0 %v3125
        %3509 = vmatprep.subr.bf16.mxu0 %v3124
        %3510 = vmatpush2.bf16.msra.mxu0 %v3123
        %3511 = vmatprep.subr.bf16.mxu0 %v3122
        %3512 = vmatpush2.bf16.msra.mxu0 %v3121
        %3513 = vmatprep.subr.bf16.mxu0 %v3120
        %3514 = vmatpush2.bf16.msra.mxu0 %v3119
        %3515 = vmatprep.subr.bf16.mxu0 %v3118
        %3516 = vmatpush2.bf16.msra.mxu0 %v3117
        %3517 = vmatprep.mubr.bf16.mxu0 %v2591
        %3518 = vmatmul.mubr.bf16.gmra.mxu0 %v2432
        %v3519 = vpop.f32.mrf.mxu0
        %v3520 = vadd.f32 %v3417, %v3519
        %v3521 = vpop.f32.mrf.mxu0
        %v3522 = vadd.f32 %v3419, %v3521
        %v3523 = vpop.f32.mrf.mxu0
        %v3524 = vadd.f32 %v3421, %v3523
        %v3525 = vpop.f32.mrf.mxu0
        %v3526 = vadd.f32 %v3423, %v3525
        %3527 = vmatprep.mubr.bf16.mxu0 %v2595
        %3528 = vmatmul.mubr.bf16.gmra.mxu0 %v2433
        %v3529 = vpop.f32.mrf.mxu0
        %v3530 = vadd.f32 %v3427, %v3529
        %v3531 = vpop.f32.mrf.mxu0
        %v3532 = vadd.f32 %v3429, %v3531
        %v3533 = vpop.f32.mrf.mxu0
        %v3534 = vadd.f32 %v3431, %v3533
        %v3535 = vpop.f32.mrf.mxu0
        %v3536 = vadd.f32 %v3433, %v3535
        %3537 = vmatprep.mubr.bf16.mxu0 %v2599
        %3538 = vmatmul.mubr.bf16.gmra.mxu0 %v2434
        %v3539 = vpop.f32.mrf.mxu0
        %v3540 = vadd.f32 %v3437, %v3539
        %v3541 = vpop.f32.mrf.mxu0
        %v3542 = vadd.f32 %v3439, %v3541
        %v3543 = vpop.f32.mrf.mxu0
        %v3544 = vadd.f32 %v3441, %v3543
        %v3545 = vpop.f32.mrf.mxu0
        %v3546 = vadd.f32 %v3443, %v3545
        %3547 = vmatprep.mubr.bf16.mxu0 %v2603
        %3548 = vmatmul.mubr.bf16.gmra.mxu0 %v2435
        %v3549 = vpop.f32.mrf.mxu0
        %v3550 = vadd.f32 %v3447, %v3549
        %v3551 = vpop.f32.mrf.mxu0
        %v3552 = vadd.f32 %v3449, %v3551
        %v3553 = vpop.f32.mrf.mxu0
        %v3554 = vadd.f32 %v3451, %v3553
        %v3555 = vpop.f32.mrf.mxu0
        %v3556 = vadd.f32 %v3453, %v3555
        %3557 = vmatprep.mubr.bf16.mxu0 %v2607
        %3558 = vmatmul.mubr.bf16.gmra.mxu0 %v2436
        %v3559 = vpop.f32.mrf.mxu0
        %v3560 = vadd.f32 %v3457, %v3559
        %v3561 = vpop.f32.mrf.mxu0
        %v3562 = vadd.f32 %v3459, %v3561
        %v3563 = vpop.f32.mrf.mxu0
        %v3564 = vadd.f32 %v3461, %v3563
        %v3565 = vpop.f32.mrf.mxu0
        %v3566 = vadd.f32 %v3463, %v3565
        %3567 = vmatprep.mubr.bf16.mxu0 %v2611
        %3568 = vmatmul.mubr.bf16.gmra.mxu0 %v2437
        %v3569 = vpop.f32.mrf.mxu0
        %v3570 = vadd.f32 %v3467, %v3569
        %v3571 = vpop.f32.mrf.mxu0
        %v3572 = vadd.f32 %v3469, %v3571
        %v3573 = vpop.f32.mrf.mxu0
        %v3574 = vadd.f32 %v3471, %v3573
        %v3575 = vpop.f32.mrf.mxu0
        %v3576 = vadd.f32 %v3473, %v3575
        %3577 = vmatprep.mubr.bf16.mxu0 %v2615
        %3578 = vmatmul.mubr.bf16.gmra.mxu0 %v2438
        %v3579 = vpop.f32.mrf.mxu0
        %v3580 = vadd.f32 %v3477, %v3579
        %v3581 = vpop.f32.mrf.mxu0
        %v3582 = vadd.f32 %v3479, %v3581
        %v3583 = vpop.f32.mrf.mxu0
        %v3584 = vadd.f32 %v3481, %v3583
        %v3585 = vpop.f32.mrf.mxu0
        %v3586 = vadd.f32 %v3483, %v3585
        %3587 = vdwg.mxu0
        %3588 = vmatprep.subr.bf16.mxu0 0
        %3589 = vmatpush1.bf16.msra.mxu0 0
        %3590 = vmatprep.subr.bf16.mxu0 0
        %3591 = vmatpush1.bf16.msra.mxu0 0
        %3592 = vmatprep.subr.bf16.mxu0 0
        %3593 = vmatpush1.bf16.msra.mxu0 0
        %3594 = vmatprep.subr.bf16.mxu0 %v3277
        %3595 = vmatpush1.bf16.msra.mxu0 %v3274
        %3596 = vmatprep.subr.bf16.mxu0 %v3140
        %3597 = vmatpush1.bf16.msra.mxu0 %v3139
        %3598 = vmatprep.subr.bf16.mxu0 %v3138
        %3599 = vmatpush1.bf16.msra.mxu0 %v3137
        %3600 = vmatprep.subr.bf16.mxu0 %v3136
        %3601 = vmatpush1.bf16.msra.mxu0 %v3135
        %3602 = vmatprep.subr.bf16.mxu0 %v3134
        %3603 = vmatpush1.bf16.msra.mxu0 %v3133
        %3604 = vmatprep.subr.bf16.mxu0 0
        %3605 = vmatpush2.bf16.msra.mxu0 0
        %3606 = vmatprep.subr.bf16.mxu0 0
        %3607 = vmatpush2.bf16.msra.mxu0 0
        %3608 = vmatprep.subr.bf16.mxu0 0
        %3609 = vmatpush2.bf16.msra.mxu0 0
        %3610 = vmatprep.subr.bf16.mxu0 0
        %3611 = vmatpush2.bf16.msra.mxu0 0
        %3612 = vmatprep.subr.bf16.mxu0 0
        %3613 = vmatpush2.bf16.msra.mxu0 0
        %3614 = vmatprep.subr.bf16.mxu0 0
        %3615 = vmatpush2.bf16.msra.mxu0 0
        %3616 = vmatprep.subr.bf16.mxu0 0
        %3617 = vmatpush2.bf16.msra.mxu0 0
        %3618 = vmatprep.subr.bf16.mxu0 0
        %3619 = vmatpush2.bf16.msra.mxu0 0
        %3620 = vmatprep.mubr.bf16.mxu0 0
        %3621 = vmatmul.mubr.bf16.gmra.mxu0 %v3249
        %v3622 = vpop.f32.mrf.mxu0
        %v3623 = vadd.f32 %v3520, %v3622
        %v3624 = vpop.f32.mrf.mxu0
        %v3625 = vadd.f32 %v3522, %v3624
        %v3626 = vpop.f32.mrf.mxu0
        %v3627 = vadd.f32 %v3524, %v3626
        %v3628 = vpop.f32.mrf.mxu0
        %v3629 = vadd.f32 %v3526, %v3628
        %3630 = vmatprep.mubr.bf16.mxu0 0
        %3631 = vmatmul.mubr.bf16.gmra.mxu0 %v3252
        %v3632 = vpop.f32.mrf.mxu0
        %v3633 = vadd.f32 %v3530, %v3632
        %v3634 = vpop.f32.mrf.mxu0
        %v3635 = vadd.f32 %v3532, %v3634
        %v3636 = vpop.f32.mrf.mxu0
        %v3637 = vadd.f32 %v3534, %v3636
        %v3638 = vpop.f32.mrf.mxu0
        %v3639 = vadd.f32 %v3536, %v3638
        %3640 = vmatprep.mubr.bf16.mxu0 0
        %3641 = vmatmul.mubr.bf16.gmra.mxu0 %v3255
        %v3642 = vpop.f32.mrf.mxu0
        %v3643 = vadd.f32 %v3540, %v3642
        %v3644 = vpop.f32.mrf.mxu0
        %v3645 = vadd.f32 %v3542, %v3644
        %v3646 = vpop.f32.mrf.mxu0
        %v3647 = vadd.f32 %v3544, %v3646
        %v3648 = vpop.f32.mrf.mxu0
        %v3649 = vadd.f32 %v3546, %v3648
        %3650 = vmatprep.mubr.bf16.mxu0 0
        %3651 = vmatmul.mubr.bf16.gmra.mxu0 %v3258
        %v3652 = vpop.f32.mrf.mxu0
        %v3653 = vadd.f32 %v3550, %v3652
        %v3654 = vpop.f32.mrf.mxu0
        %v3655 = vadd.f32 %v3552, %v3654
        %v3656 = vpop.f32.mrf.mxu0
        %v3657 = vadd.f32 %v3554, %v3656
        %v3658 = vpop.f32.mrf.mxu0
        %v3659 = vadd.f32 %v3556, %v3658
        %3660 = vmatprep.mubr.bf16.mxu0 0
        %3661 = vmatmul.mubr.bf16.gmra.mxu0 %v3261
        %v3662 = vpop.f32.mrf.mxu0
        %v3663 = vadd.f32 %v3560, %v3662
        %v3664 = vpop.f32.mrf.mxu0
        %v3665 = vadd.f32 %v3562, %v3664
        %v3666 = vpop.f32.mrf.mxu0
        %v3667 = vadd.f32 %v3564, %v3666
        %v3668 = vpop.f32.mrf.mxu0
        %v3669 = vadd.f32 %v3566, %v3668
        %3670 = vmatprep.mubr.bf16.mxu0 0
        %3671 = vmatmul.mubr.bf16.gmra.mxu0 %v3264
        %v3672 = vpop.f32.mrf.mxu0
        %v3673 = vadd.f32 %v3570, %v3672
        %v3674 = vpop.f32.mrf.mxu0
        %v3675 = vadd.f32 %v3572, %v3674
        %v3676 = vpop.f32.mrf.mxu0
        %v3677 = vadd.f32 %v3574, %v3676
        %v3678 = vpop.f32.mrf.mxu0
        %v3679 = vadd.f32 %v3576, %v3678
        %3680 = vmatprep.mubr.bf16.mxu0 0
        %3681 = vmatmul.mubr.bf16.gmra.mxu0 %v3267
        %v3682 = vpop.f32.mrf.mxu0
        %v3683 = vadd.f32 %v3580, %v3682
        %v3684 = vpop.f32.mrf.mxu0
        %v3685 = vadd.f32 %v3582, %v3684
        %v3686 = vpop.f32.mrf.mxu0
        %v3687 = vadd.f32 %v3584, %v3686
        %v3688 = vpop.f32.mrf.mxu0
        %v3689 = vadd.f32 %v3586, %v3688
        %3690 = vdwg.mxu0
        %v3691 = vpack.c.bf16 %v3627, %v3623
        %v3692 = vpack.c.bf16 %v3629, %v3625
        %v3693 = vpack.c.bf16 %v3637, %v3633
        %v3694 = vpack.c.bf16 %v3639, %v3635
        %v3695 = vpack.c.bf16 %v3647, %v3643
        %v3696 = vpack.c.bf16 %v3649, %v3645
        %v3697 = vpack.c.bf16 %v3657, %v3653
        %v3698 = vpack.c.bf16 %v3659, %v3655
        %v3699 = vpack.c.bf16 %v3667, %v3663
        %v3700 = vpack.c.bf16 %v3669, %v3665
        %v3701 = vpack.c.bf16 %v3677, %v3673
        %v3702 = vpack.c.bf16 %v3679, %v3675
        %v3703 = vpack.c.bf16 %v3687, %v3683
        %v3704 = vpack.c.bf16 %v3689, %v3685
        %3719 = vrot.lane.b32.xlu0 %v3691, 127
        %v3720 = vpop.permute.xlu0 %3719
        %3721 = vrot.lane.b32.xlu0 %v3692, 127
        %v3722 = vpop.permute.xlu0 %3721
        %3723 = vrot.lane.b32.xlu0 %v3693, 127
        %v3724 = vpop.permute.xlu0 %3723
        %3725 = vrot.lane.b32.xlu0 %v3694, 127
        %v3726 = vpop.permute.xlu0 %3725
        %3727 = vrot.lane.b32.xlu0 %v3695, 127
        %v3728 = vpop.permute.xlu0 %3727
        %3729 = vrot.lane.b32.xlu0 %v3696, 127
        %v3730 = vpop.permute.xlu0 %3729
        %3731 = vrot.lane.b32.xlu0 %v3697, 127
        %v3732 = vpop.permute.xlu0 %3731
        %3733 = vrot.lane.b32.xlu0 %v3698, 127
        %v3734 = vpop.permute.xlu0 %3733
        %3735 = vrot.lane.b32.xlu0 %v3699, 127
        %v3736 = vpop.permute.xlu0 %3735
        %3737 = vrot.lane.b32.xlu0 %v3700, 127
        %v3738 = vpop.permute.xlu0 %3737
        %3739 = vrot.lane.b32.xlu0 %v3701, 127
        %v3740 = vpop.permute.xlu0 %3739
        %3741 = vrot.lane.b32.xlu0 %v3702, 127
        %v3742 = vpop.permute.xlu0 %3741
        %3743 = vrot.lane.b32.xlu0 %v3703, 127
        %v3744 = vpop.permute.xlu0 %3743
        %3745 = vrot.lane.b32.xlu0 %v3704, 127
        %v3746 = vpop.permute.xlu0 %3745
        %v3747 = vsel %vm1462, %v3720, %v3722
        %v3748 = vsel %vm1462, %v3724, %v3726
        %v3749 = vsel %vm1462, %v3728, %v3730
        %v3750 = vsel %vm1462, %v3732, %v3734
        %v3751 = vsel %vm1462, %v3736, %v3738
        %v3752 = vsel %vm1462, %v3740, %v3742
        %v3753 = vsel %vm1462, %v3744, %v3746
        %v3768 = vmax.bf16 %v3691, %v3747
        %v3769 = vmax.bf16 %v3692, %v3722
        %v3770 = vmax.bf16 %v3693, %v3748
        %v3771 = vmax.bf16 %v3694, %v3726
        %v3772 = vmax.bf16 %v3695, %v3749
        %v3773 = vmax.bf16 %v3696, %v3730
        %v3774 = vmax.bf16 %v3697, %v3750
        %v3775 = vmax.bf16 %v3698, %v3734
        %v3776 = vmax.bf16 %v3699, %v3751
        %v3777 = vmax.bf16 %v3700, %v3738
        %v3778 = vmax.bf16 %v3701, %v3752
        %v3779 = vmax.bf16 %v3702, %v3742
        %v3780 = vmax.bf16 %v3703, %v3753
        %v3781 = vmax.bf16 %v3704, %v3746
        %v3783 = vshrl.u32 %v3768, 16
        %v3785 = vshll.u32 %v3768, 16
        %v3787 = vrot.slane %v3785, 1
        %v3788 = vor.u32 %v3783, %v3787
        %v3790 = vshll.u32 %v3770, 16
        %v3792 = vrot.slane %v3790, 1
        %v3793 = vsel %vm490, %v3788, %v3792
        %v3795 = vshrl.u32 %v3769, 16
        %v3797 = vshll.u32 %v3769, 16
        %v3799 = vrot.slane %v3797, 1
        %v3800 = vor.u32 %v3795, %v3799
        %v3802 = vshll.u32 %v3771, 16
        %v3804 = vrot.slane %v3802, 1
        %v3805 = vsel %vm490, %v3800, %v3804
        %v3806 = vshrl.u32 %v3770, 16
        %v3808 = vor.u32 %v3806, %v3792
        %v3810 = vshll.u32 %v3772, 16
        %v3812 = vrot.slane %v3810, 1
        %v3813 = vsel %vm490, %v3808, %v3812
        %v3814 = vshrl.u32 %v3771, 16
        %v3816 = vor.u32 %v3814, %v3804
        %v3818 = vshll.u32 %v3773, 16
        %v3820 = vrot.slane %v3818, 1
        %v3821 = vsel %vm490, %v3816, %v3820
        %v3822 = vshrl.u32 %v3772, 16
        %v3824 = vor.u32 %v3822, %v3812
        %v3826 = vshll.u32 %v3774, 16
        %v3828 = vrot.slane %v3826, 1
        %v3829 = vsel %vm490, %v3824, %v3828
        %v3830 = vshrl.u32 %v3773, 16
        %v3832 = vor.u32 %v3830, %v3820
        %v3834 = vshll.u32 %v3775, 16
        %v3836 = vrot.slane %v3834, 1
        %v3837 = vsel %vm490, %v3832, %v3836
        %v3838 = vshrl.u32 %v3774, 16
        %v3840 = vor.u32 %v3838, %v3828
        %v3842 = vshll.u32 %v3776, 16
        %v3844 = vrot.slane %v3842, 1
        %v3845 = vsel %vm490, %v3840, %v3844
        %v3846 = vshrl.u32 %v3775, 16
        %v3848 = vor.u32 %v3846, %v3836
        %v3850 = vshll.u32 %v3777, 16
        %v3852 = vrot.slane %v3850, 1
        %v3853 = vsel %vm490, %v3848, %v3852
        %v3854 = vshrl.u32 %v3776, 16
        %v3856 = vor.u32 %v3854, %v3844
        %v3858 = vshll.u32 %v3778, 16
        %v3860 = vrot.slane %v3858, 1
        %v3861 = vsel %vm490, %v3856, %v3860
        %v3862 = vshrl.u32 %v3777, 16
        %v3864 = vor.u32 %v3862, %v3852
        %v3866 = vshll.u32 %v3779, 16
        %v3868 = vrot.slane %v3866, 1
        %v3869 = vsel %vm490, %v3864, %v3868
        %v3870 = vshrl.u32 %v3778, 16
        %v3872 = vor.u32 %v3870, %v3860
        %v3874 = vshll.u32 %v3780, 16
        %v3876 = vrot.slane %v3874, 1
        %v3877 = vsel %vm490, %v3872, %v3876
        %v3878 = vshrl.u32 %v3779, 16
        %v3880 = vor.u32 %v3878, %v3868
        %v3882 = vshll.u32 %v3781, 16
        %v3884 = vrot.slane %v3882, 1
        %v3885 = vsel %vm490, %v3880, %v3884
        %v3886 = vshrl.u32 %v3780, 16
        %v3888 = vor.u32 %v3886, %v3876
        %v3889 = vshrl.u32 %v3781, 16
        %v3891 = vor.u32 %v3889, %v3884
        %v3906 = vmax.bf16 %v3768, %v3793
        %v3907 = vmax.bf16 %v3769, %v3805
        %v3908 = vmax.bf16 %v3770, %v3813
        %v3909 = vmax.bf16 %v3771, %v3821
        %v3910 = vmax.bf16 %v3772, %v3829
        %v3911 = vmax.bf16 %v3773, %v3837
        %v3912 = vmax.bf16 %v3774, %v3845
        %v3913 = vmax.bf16 %v3775, %v3853
        %v3914 = vmax.bf16 %v3776, %v3861
        %v3915 = vmax.bf16 %v3777, %v3869
        %v3916 = vmax.bf16 %v3778, %v3877
        %v3917 = vmax.bf16 %v3779, %v3885
        %v3918 = vmax.bf16 %v3780, %v3888
        %v3919 = vmax.bf16 %v3781, %v3891
        %v3920 = vld [vmem:[%s6] sm:$0xf]
        %v3921 = vld [vmem:[%s6 + $0x4] sm:$0xf]
        %v3922 = vld [vmem:[%s6 + $0x8] sm:$0xf]
        %v3923 = vld [vmem:[%s6 + $0xc] sm:$0xf]
        %v3924 = vld [vmem:[%s6 + $0x10] sm:$0xf]
        %v3925 = vld [vmem:[%s5] sm:$0x3]
        %v3927 = vlaneseq
        %v3928 = vshrl.u32 %v3927, 7
        %v3929 = vsub.s32 0, %v3928
        %v3930 = vrot.slane %v3925, %v3929
        %v3931 = vlaneseq
        %v3932 = vshrl.u32 %v3931, 7
        %v3933 = vsub.s32 1, %v3932
        %v3934 = vrot.slane %v3925, %v3933
        %v3942 = vunpack.c.l.b16 %v3920
        %v3943 = vunpack.c.l.b16 %v3921
        %v3944 = vunpack.c.l.b16 %v3922
        %v3945 = vunpack.c.l.b16 %v3923
        %v3946 = vunpack.c.l.b16 %v3924
        %v3947 = vpack.c.b16 %v3943, %v3942
        %v3948 = vpack.c.b16 %v3945, %v3944
        %v3949 = vpack.c.b16 %v3946, %v3946
        %vm3950 = vcmask 875520
        %v3952 = vsel %vm3950, %v3947, 0
        %v3955 = vsel %vm3950, %v3948, 0
        %v3958 = vsel %vm3950, %v3949, 0
        %v3961 = vand.u32 %v3918, %v1975
        %v3964 = vand.u32 %v3919, %v1975
        %3966 = vmatprep.subr.bf16.mxu0 0
        %3967 = vmatpush1.bf16.msra.mxu0 0
        %3968 = vmatprep.subr.bf16.mxu0 %v3964
        %3969 = vmatpush1.bf16.msra.mxu0 %v3961
        %3970 = vmatprep.subr.bf16.mxu0 %v3917
        %3971 = vmatpush1.bf16.msra.mxu0 %v3916
        %3972 = vmatprep.subr.bf16.mxu0 %v3915
        %3973 = vmatpush1.bf16.msra.mxu0 %v3914
        %3974 = vmatprep.subr.bf16.mxu0 %v3913
        %3975 = vmatpush1.bf16.msra.mxu0 %v3912
        %3976 = vmatprep.subr.bf16.mxu0 %v3911
        %3977 = vmatpush1.bf16.msra.mxu0 %v3910
        %3978 = vmatprep.subr.bf16.mxu0 %v3909
        %3979 = vmatpush1.bf16.msra.mxu0 %v3908
        %3980 = vmatprep.subr.bf16.mxu0 %v3907
        %3981 = vmatpush1.bf16.msra.mxu0 %v3906
        %3982 = vmatprep.subr.bf16.mxu0 0
        %3983 = vmatpush2.bf16.msra.mxu0 0
        %3984 = vmatprep.subr.bf16.mxu0 0
        %3985 = vmatpush2.bf16.msra.mxu0 0
        %3986 = vmatprep.subr.bf16.mxu0 0
        %3987 = vmatpush2.bf16.msra.mxu0 0
        %3988 = vmatprep.subr.bf16.mxu0 0
        %3989 = vmatpush2.bf16.msra.mxu0 0
        %3990 = vmatprep.subr.bf16.mxu0 0
        %3991 = vmatpush2.bf16.msra.mxu0 0
        %3992 = vmatprep.subr.bf16.mxu0 0
        %3993 = vmatpush2.bf16.msra.mxu0 0
        %3994 = vmatprep.subr.bf16.mxu0 0
        %3995 = vmatpush2.bf16.msra.mxu0 0
        %3996 = vmatprep.subr.bf16.mxu0 0
        %3997 = vmatpush2.bf16.msra.mxu0 0
        %3998 = vmatprep.mubr.bf16.mxu0 0
        %3999 = vmatmul.mubr.bf16.gmra.mxu0 %v3952
        %v4000 = vpop.f32.mrf.mxu0
        %v4001 = vadd.f32 %v3930, %v4000
        %v4002 = vpop.f32.mrf.mxu0
        %v4003 = vadd.f32 %v3934, %v4002
        %v4004 = vpop.f32.mrf.mxu0
        %v4005 = vadd.f32 %v3930, %v4004
        %v4006 = vpop.f32.mrf.mxu0
        %v4007 = vadd.f32 %v3934, %v4006
        %4008 = vmatprep.mubr.bf16.mxu0 0
        %4009 = vmatmul.mubr.bf16.gmra.mxu0 %v3955
        %v4010 = vpop.f32.mrf.mxu0
        %v4011 = vadd.f32 %v3930, %v4010
        %v4012 = vpop.f32.mrf.mxu0
        %v4013 = vadd.f32 %v3934, %v4012
        %v4014 = vpop.f32.mrf.mxu0
        %v4015 = vadd.f32 %v3930, %v4014
        %v4016 = vpop.f32.mrf.mxu0
        %v4017 = vadd.f32 %v3934, %v4016
        %4018 = vmatprep.mubr.bf16.mxu0 0
        %4019 = vmatmul.mubr.bf16.gmra.mxu0 %v3958
        %v4020 = vpop.f32.mrf.mxu0
        %v4021 = vadd.f32 %v3930, %v4020
        %v4022 = vpop.f32.mrf.mxu0
        %v4023 = vadd.f32 %v3934, %v4022
        %v4024 = vpop.f32.mrf.mxu0
        %v4025 = vpop.f32.mrf.mxu0
        %4026 = vdwg.mxu0
        %v4027 = vmax.f32 %v4001, 0.0
        %v4028 = vmax.f32 %v4003, 0.0
        %v4029 = vmax.f32 %v4005, 0.0
        %v4030 = vmax.f32 %v4007, 0.0
        %v4031 = vmax.f32 %v4011, 0.0
        %v4032 = vmax.f32 %v4013, 0.0
        %v4033 = vmax.f32 %v4015, 0.0
        %v4034 = vmax.f32 %v4017, 0.0
        %v4035 = vmax.f32 %v4021, 0.0
        %v4036 = vmax.f32 %v4023, 0.0
        %v4037 = vpack.c.bf16 %v4029, %v4027
        %v4038 = vpack.c.bf16 %v4030, %v4028
        %v4039 = vpack.c.bf16 %v4033, %v4031
        %v4040 = vpack.c.bf16 %v4034, %v4032
        %v4041 = vpack.c.bf16 %v4035, %v4035
        %v4042 = vpack.c.bf16 %v4036, %v4036
        %v4045 = vrot.slane %v4037, 4
        %v4046 = vrot.slane %v4038, 4
        %4047 = vrot.lane.b32.xlu0 %v4045, 31
        %v4048 = vpop.permute.xlu0 %4047
        %4049 = vrot.lane.b32.xlu0 %v4046, 31
        %v4050 = vpop.permute.xlu0 %4049
        %vm4051 = vcmask 252928
        %v4052 = vsel %vm4051, %v4048, %v4050
        %4055 = vrot.lane.b32.xlu0 %v4039, 62
        %v4056 = vpop.permute.xlu0 %4055
        %4057 = vrot.lane.b32.xlu0 %v4040, 62
        %v4058 = vpop.permute.xlu0 %4057
        %vm4059 = vcmask 506880
        %v4060 = vsel %vm4059, %v4056, %v4058
        %v4061 = vrot.slane %v4039, 4
        %v4062 = vrot.slane %v4040, 4
        %4063 = vrot.lane.b32.xlu0 %v4061, 93
        %v4064 = vpop.permute.xlu0 %4063
        %4065 = vrot.lane.b32.xlu0 %v4062, 93
        %v4066 = vpop.permute.xlu0 %4065
        %vm4067 = vcmask 760832
        %v4068 = vsel %vm4067, %v4064, %v4066
        %4071 = vrot.lane.b32.xlu0 %v4041, 124
        %v4072 = vpop.permute.xlu0 %4071
        %4073 = vrot.lane.b32.xlu0 %v4042, 124
        %v4074 = vpop.permute.xlu0 %4073
        %vm4075 = vcmask 1014784
        %v4076 = vsel %vm4075, %v4072, %v4074
        %vm4078 = vcmask 252928
        %v4081 = vsel %vm4078, %v4038, %v4048
        %vm4083 = vcmask 506880
        %v4086 = vsel %vm4083, %v4052, %v4056
        %vm4088 = vcmask 760832
        %v4091 = vsel %vm4088, %v4060, %v4064
        %vm4093 = vcmask 1014784
        %v4096 = vsel %vm4093, %v4068, %v4072
        %v4098 = vld [vmem:[%s7] sm:$0xf]
        %v4099 = vld [vmem:[%s7 + $0x4] sm:$0xf]
        %v4100 = vld [vmem:[%s7 + $0x8] sm:$0xf]
        %v4101 = vld [vmem:[%s7 + $0xc] sm:$0xf]
        %v4102 = vld [vmem:[%s7 + $0x10] sm:$0xf]
        %v4103 = vld [vmem:[%s7 + $0x14] sm:$0xf]
        %v4104 = vld [vmem:[%s7 + $0x18] sm:$0xf]
        %v4105 = vld [vmem:[%s7 + $0x1c] sm:$0xf]
        %v4106 = vld [vmem:[%s7 + $0x20] sm:$0xf]
        %v4107 = vld [vmem:[%s7 + $0x24] sm:$0xf]
        %v4108 = vld [vmem:[%s7 + $0x28] sm:$0xf]
        %v4109 = vld [vmem:[%s7 + $0x2c] sm:$0xf]
        %v4110 = vld [vmem:[%s7 + $0x30] sm:$0xf]
        %v4111 = vld [vmem:[%s7 + $0x34] sm:$0xf]
        %v4112 = vld [vmem:[%s7 + $0x38] sm:$0xf]
        %v4113 = vld [vmem:[%s7 + $0x3c] sm:$0xf]
        %v4114 = vld [vmem:[%s7 + $0x40] sm:$0xf]
        %v4115 = vld [vmem:[%s7 + $0x44] sm:$0xf]
        %v4116 = vld [vmem:[%s7 + $0x48] sm:$0xf]
        %v4117 = vld [vmem:[%s7 + $0x4c] sm:$0xf]
        %v4118 = vld [vmem:[%s7 + $0x50] sm:$0xf]
        %v4119 = vld [vmem:[%s7 + $0x54] sm:$0xf]
        %v4120 = vld [vmem:[%s7 + $0x58] sm:$0xf]
        %v4121 = vld [vmem:[%s7 + $0x5c] sm:$0xf]
        %v4122 = vld [vmem:[%s7 + $0x60] sm:$0xf]
        %v4123 = vld [vmem:[%s7 + $0x64] sm:$0xf]
        %v4124 = vld [vmem:[%s7 + $0x68] sm:$0xf]
        %v4125 = vld [vmem:[%s7 + $0x6c] sm:$0xf]
        %v4126 = vld [vmem:[%s7 + $0x70] sm:$0xf]
        %v4127 = vld [vmem:[%s7 + $0x74] sm:$0xf]
        %v4128 = vld [vmem:[%s7 + $0x78] sm:$0xf]
        %v4129 = vld [vmem:[%s7 + $0x7c] sm:$0xf]
        %v4130 = vld [vmem:[%s7 + $0x80] sm:$0xf]
        %v4131 = vld [vmem:[%s7 + $0x84] sm:$0xf]
        %v4132 = vld [vmem:[%s7 + $0x88] sm:$0xf]
        %v4133 = vld [vmem:[%s7 + $0x8c] sm:$0xf]
        %v4134 = vld [vmem:[%s7 + $0x90] sm:$0xf]
        %v4135 = vld [vmem:[%s7 + $0x94] sm:$0xf]
        %v4136 = vld [vmem:[%s7 + $0x98] sm:$0xf]
        %v4137 = vld [vmem:[%s7 + $0x9c] sm:$0xf]
        %v4138 = vld [vmem:[%s7 + $0xa0] sm:$0xf]
        %v4139 = vld [vmem:[%s7 + $0xa4] sm:$0xf]
        %v4140 = vld [vmem:[%s7 + $0xa8] sm:$0xf]
        %v4141 = vld [vmem:[%s7 + $0xac] sm:$0xf]
        %v4142 = vld [vmem:[%s7 + $0xb0] sm:$0xf]
        %v4143 = vld [vmem:[%s7 + $0xb4] sm:$0xf]
        %v4144 = vld [vmem:[%s7 + $0xb8] sm:$0xf]
        %v4145 = vld [vmem:[%s7 + $0xbc] sm:$0xf]
        %v4146 = vld [vmem:[%s7 + $0xc0] sm:$0xf]
        %v4147 = vld [vmem:[%s7 + $0xc4] sm:$0xf]
        %v4148 = vld [vmem:[%s7 + $0xc8] sm:$0xf]
        %v4149 = vld [vmem:[%s7 + $0xcc] sm:$0xf]
        %v4150 = vld [vmem:[%s7 + $0xd0] sm:$0xf]
        %v4151 = vld [vmem:[%s7 + $0xd4] sm:$0xf]
        %v4152 = vld [vmem:[%s7 + $0xd8] sm:$0xf]
        %v4153 = vld [vmem:[%s7 + $0xdc] sm:$0xf]
        %v4154 = vld [vmem:[%s7 + $0xe0] sm:$0xf]
        %v4155 = vld [vmem:[%s7 + $0xe4] sm:$0xf]
        %v4156 = vld [vmem:[%s7 + $0xe8] sm:$0xf]
        %v4157 = vld [vmem:[%s7 + $0xec] sm:$0xf]
        %v4158 = vld [vmem:[%s7 + $0xf0] sm:$0xf]
        %v4159 = vld [vmem:[%s7 + $0xf4] sm:$0xf]
        %v4160 = vld [vmem:[%s7 + $0xf8] sm:$0xf]
        %v4161 = vld [vmem:[%s7 + $0xfc] sm:$0xf]
        %v4162 = vld [vmem:[%s7 + $0x100] sm:$0xf]
        %v4163 = vld [vmem:[%s7 + $0x104] sm:$0xf]
        %v4164 = vld [vmem:[%s7 + $0x108] sm:$0xf]
        %v4165 = vld [vmem:[%s7 + $0x10c] sm:$0xf]
        %v4166 = vld [vmem:[%s7 + $0x110] sm:$0xf]
        %v4167 = vld [vmem:[%s7 + $0x114] sm:$0xf]
        %v4168 = vld [vmem:[%s7 + $0x118] sm:$0xf]
        %v4169 = vld [vmem:[%s7 + $0x11c] sm:$0xf]
        %v4170 = vld [vmem:[%s7 + $0x120] sm:$0xf]
        %v4171 = vld [vmem:[%s7 + $0x124] sm:$0xf]
        %v4172 = vld [vmem:[%s7 + $0x128] sm:$0xf]
        %v4173 = vld [vmem:[%s7 + $0x12c] sm:$0xf]
        %v4174 = vld [vmem:[%s7 + $0x130] sm:$0xf]
        %v4175 = vld [vmem:[%s7 + $0x134] sm:$0xf]
        %v4176 = vld [vmem:[%s7 + $0x138] sm:$0xf]
        %v4177 = vld [vmem:[%s7 + $0x13c] sm:$0xf]
        %v4178 = vld [vmem:[%s7 + $0x140] sm:$0xf]
        %v4179 = vld [vmem:[%s7 + $0x144] sm:$0xf]
        %v4180 = vld [vmem:[%s7 + $0x148] sm:$0xf]
        %v4181 = vld [vmem:[%s7 + $0x14c] sm:$0xf]
        %v4182 = vld [vmem:[%s7 + $0x150] sm:$0xf]
        %v4183 = vld [vmem:[%s7 + $0x154] sm:$0xf]
        %v4184 = vld [vmem:[%s7 + $0x158] sm:$0xf]
        %v4185 = vld [vmem:[%s7 + $0x15c] sm:$0xf]
        %v4186 = vld [vmem:[%s7 + $0x160] sm:$0xf]
        %v4187 = vld [vmem:[%s7 + $0x164] sm:$0xf]
        %v4188 = vld [vmem:[%s7 + $0x168] sm:$0xf]
        %v4189 = vld [vmem:[%s7 + $0x16c] sm:$0xf]
        %v4190 = vld [vmem:[%s7 + $0x170] sm:$0xf]
        %v4191 = vld [vmem:[%s7 + $0x174] sm:$0xf]
        %v4192 = vld [vmem:[%s7 + $0x178] sm:$0xf]
        %v4193 = vld [vmem:[%s7 + $0x17c] sm:$0xf]
        %v4194 = vld [vmem:[%s7 + $0x180] sm:$0xf]
        %v4195 = vld [vmem:[%s7 + $0x184] sm:$0xf]
        %v4196 = vld [vmem:[%s7 + $0x188] sm:$0xf]
        %v4197 = vld [vmem:[%s7 + $0x18c] sm:$0x3]
        %v4198 = vld [vmem:[%s8] sm:$0x1]
        %v4200 = vlaneseq
        %v4201 = vshrl.u32 %v4200, 7
        %v4202 = vsub.s32 0, %v4201
        %v4203 = vrot.slane %v4198, %v4202
        %v4305 = vunpack.c.l.b16 %v4098
        %v4306 = vunpack.c.l.b16 %v4099
        %v4307 = vunpack.c.l.b16 %v4100
        %v4308 = vunpack.c.l.b16 %v4101
        %v4309 = vunpack.c.l.b16 %v4102
        %v4310 = vunpack.c.l.b16 %v4103
        %v4311 = vunpack.c.l.b16 %v4104
        %v4312 = vunpack.c.l.b16 %v4105
        %v4313 = vunpack.c.l.b16 %v4106
        %v4314 = vunpack.c.l.b16 %v4107
        %v4315 = vunpack.c.l.b16 %v4108
        %v4316 = vunpack.c.l.b16 %v4109
        %v4317 = vunpack.c.l.b16 %v4110
        %v4318 = vunpack.c.l.b16 %v4111
        %v4319 = vunpack.c.l.b16 %v4112
        %v4320 = vunpack.c.l.b16 %v4113
        %v4321 = vunpack.c.l.b16 %v4114
        %v4322 = vunpack.c.l.b16 %v4115
        %v4323 = vunpack.c.l.b16 %v4116
        %v4324 = vunpack.c.l.b16 %v4117
        %v4325 = vunpack.c.l.b16 %v4118
        %v4326 = vunpack.c.l.b16 %v4119
        %v4327 = vunpack.c.l.b16 %v4120
        %v4328 = vunpack.c.l.b16 %v4121
        %v4329 = vunpack.c.l.b16 %v4122
        %v4330 = vunpack.c.l.b16 %v4123
        %v4331 = vunpack.c.l.b16 %v4124
        %v4332 = vunpack.c.l.b16 %v4125
        %v4333 = vunpack.c.l.b16 %v4126
        %v4334 = vunpack.c.l.b16 %v4127
        %v4335 = vunpack.c.l.b16 %v4128
        %v4336 = vunpack.c.l.b16 %v4129
        %v4337 = vunpack.c.l.b16 %v4130
        %v4338 = vunpack.c.l.b16 %v4131
        %v4339 = vunpack.c.l.b16 %v4132
        %v4340 = vunpack.c.l.b16 %v4133
        %v4341 = vunpack.c.l.b16 %v4134
        %v4342 = vunpack.c.l.b16 %v4135
        %v4343 = vunpack.c.l.b16 %v4136
        %v4344 = vunpack.c.l.b16 %v4137
        %v4345 = vunpack.c.l.b16 %v4138
        %v4346 = vunpack.c.l.b16 %v4139
        %v4347 = vunpack.c.l.b16 %v4140
        %v4348 = vunpack.c.l.b16 %v4141
        %v4349 = vunpack.c.l.b16 %v4142
        %v4350 = vunpack.c.l.b16 %v4143
        %v4351 = vunpack.c.l.b16 %v4144
        %v4352 = vunpack.c.l.b16 %v4145
        %v4353 = vunpack.c.l.b16 %v4146
        %v4354 = vunpack.c.l.b16 %v4147
        %v4355 = vunpack.c.l.b16 %v4148
        %v4356 = vunpack.c.l.b16 %v4149
        %v4357 = vunpack.c.l.b16 %v4150
        %v4358 = vunpack.c.l.b16 %v4151
        %v4359 = vunpack.c.l.b16 %v4152
        %v4360 = vunpack.c.l.b16 %v4153
        %v4361 = vunpack.c.l.b16 %v4154
        %v4362 = vunpack.c.l.b16 %v4155
        %v4363 = vunpack.c.l.b16 %v4156
        %v4364 = vunpack.c.l.b16 %v4157
        %v4365 = vunpack.c.l.b16 %v4158
        %v4366 = vunpack.c.l.b16 %v4159
        %v4367 = vunpack.c.l.b16 %v4160
        %v4368 = vunpack.c.l.b16 %v4161
        %v4369 = vunpack.c.l.b16 %v4162
        %v4370 = vunpack.c.l.b16 %v4163
        %v4371 = vunpack.c.l.b16 %v4164
        %v4372 = vunpack.c.l.b16 %v4165
        %v4373 = vunpack.c.l.b16 %v4166
        %v4374 = vunpack.c.l.b16 %v4167
        %v4375 = vunpack.c.l.b16 %v4168
        %v4376 = vunpack.c.l.b16 %v4169
        %v4377 = vunpack.c.l.b16 %v4170
        %v4378 = vunpack.c.l.b16 %v4171
        %v4379 = vunpack.c.l.b16 %v4172
        %v4380 = vunpack.c.l.b16 %v4173
        %v4381 = vunpack.c.l.b16 %v4174
        %v4382 = vunpack.c.l.b16 %v4175
        %v4383 = vunpack.c.l.b16 %v4176
        %v4384 = vunpack.c.l.b16 %v4177
        %v4385 = vunpack.c.l.b16 %v4178
        %v4386 = vunpack.c.l.b16 %v4179
        %v4387 = vunpack.c.l.b16 %v4180
        %v4388 = vunpack.c.l.b16 %v4181
        %v4389 = vunpack.c.l.b16 %v4182
        %v4390 = vunpack.c.l.b16 %v4183
        %v4391 = vunpack.c.l.b16 %v4184
        %v4392 = vunpack.c.l.b16 %v4185
        %v4393 = vunpack.c.l.b16 %v4186
        %v4394 = vunpack.c.l.b16 %v4187
        %v4395 = vunpack.c.l.b16 %v4188
        %v4396 = vunpack.c.l.b16 %v4189
        %v4397 = vunpack.c.l.b16 %v4190
        %v4398 = vunpack.c.l.b16 %v4191
        %v4399 = vunpack.c.l.b16 %v4192
        %v4400 = vunpack.c.l.b16 %v4193
        %v4401 = vunpack.c.l.b16 %v4194
        %v4402 = vunpack.c.l.b16 %v4195
        %v4403 = vunpack.c.l.b16 %v4196
        %v4404 = vunpack.c.l.b16 %v4197
        %v4405 = vpack.c.b16 %v4306, %v4305
        %v4406 = vpack.c.b16 %v4308, %v4307
        %v4407 = vpack.c.b16 %v4310, %v4309
        %v4408 = vpack.c.b16 %v4312, %v4311
        %v4409 = vpack.c.b16 %v4314, %v4313
        %v4410 = vpack.c.b16 %v4316, %v4315
        %v4411 = vpack.c.b16 %v4318, %v4317
        %v4412 = vpack.c.b16 %v4320, %v4319
        %v4413 = vpack.c.b16 %v4322, %v4321
        %v4414 = vpack.c.b16 %v4324, %v4323
        %v4415 = vpack.c.b16 %v4326, %v4325
        %v4416 = vpack.c.b16 %v4328, %v4327
        %v4417 = vpack.c.b16 %v4330, %v4329
        %v4418 = vpack.c.b16 %v4332, %v4331
        %v4419 = vpack.c.b16 %v4334, %v4333
        %v4420 = vpack.c.b16 %v4336, %v4335
        %v4421 = vpack.c.b16 %v4338, %v4337
        %v4422 = vpack.c.b16 %v4340, %v4339
        %v4423 = vpack.c.b16 %v4342, %v4341
        %v4424 = vpack.c.b16 %v4344, %v4343
        %v4425 = vpack.c.b16 %v4346, %v4345
        %v4426 = vpack.c.b16 %v4348, %v4347
        %v4427 = vpack.c.b16 %v4350, %v4349
        %v4428 = vpack.c.b16 %v4352, %v4351
        %v4429 = vpack.c.b16 %v4354, %v4353
        %v4430 = vpack.c.b16 %v4356, %v4355
        %v4431 = vpack.c.b16 %v4358, %v4357
        %v4432 = vpack.c.b16 %v4360, %v4359
        %v4433 = vpack.c.b16 %v4362, %v4361
        %v4434 = vpack.c.b16 %v4364, %v4363
        %v4435 = vpack.c.b16 %v4366, %v4365
        %v4436 = vpack.c.b16 %v4368, %v4367
        %v4437 = vpack.c.b16 %v4370, %v4369
        %v4438 = vpack.c.b16 %v4372, %v4371
        %v4439 = vpack.c.b16 %v4374, %v4373
        %v4440 = vpack.c.b16 %v4376, %v4375
        %v4441 = vpack.c.b16 %v4378, %v4377
        %v4442 = vpack.c.b16 %v4380, %v4379
        %v4443 = vpack.c.b16 %v4382, %v4381
        %v4444 = vpack.c.b16 %v4384, %v4383
        %v4445 = vpack.c.b16 %v4386, %v4385
        %v4446 = vpack.c.b16 %v4388, %v4387
        %v4447 = vpack.c.b16 %v4390, %v4389
        %v4448 = vpack.c.b16 %v4392, %v4391
        %v4449 = vpack.c.b16 %v4394, %v4393
        %v4450 = vpack.c.b16 %v4396, %v4395
        %v4451 = vpack.c.b16 %v4398, %v4397
        %v4452 = vpack.c.b16 %v4400, %v4399
        %v4453 = vpack.c.b16 %v4402, %v4401
        %v4454 = vpack.c.b16 %v4404, %v4403
        %vm4504 = vcmask 220160
        %v4506 = vsel %vm4504, %v4074, 0
        %v4509 = vand.u32 %v4454, %v1975
        %4511 = vmatprep.subr.bf16.mxu0 0
        %4512 = vmatpush1.bf16.msra.mxu0 %v4412
        %4513 = vmatprep.subr.bf16.mxu0 0
        %4514 = vmatpush1.bf16.msra.mxu0 %v4411
        %4515 = vmatprep.subr.bf16.mxu0 0
        %4516 = vmatpush1.bf16.msra.mxu0 %v4410
        %4517 = vmatprep.subr.bf16.mxu0 0
        %4518 = vmatpush1.bf16.msra.mxu0 %v4409
        %4519 = vmatprep.subr.bf16.mxu0 0
        %4520 = vmatpush1.bf16.msra.mxu0 %v4408
        %4521 = vmatprep.subr.bf16.mxu0 0
        %4522 = vmatpush1.bf16.msra.mxu0 %v4407
        %4523 = vmatprep.subr.bf16.mxu0 0
        %4524 = vmatpush1.bf16.msra.mxu0 %v4406
        %4525 = vmatprep.subr.bf16.mxu0 0
        %4526 = vmatpush1.bf16.msra.mxu0 %v4405
        %4527 = vmatprep.subr.bf16.mxu0 0
        %4528 = vmatpush2.bf16.msra.mxu0 %v4420
        %4529 = vmatprep.subr.bf16.mxu0 0
        %4530 = vmatpush2.bf16.msra.mxu0 %v4419
        %4531 = vmatprep.subr.bf16.mxu0 0
        %4532 = vmatpush2.bf16.msra.mxu0 %v4418
        %4533 = vmatprep.subr.bf16.mxu0 0
        %4534 = vmatpush2.bf16.msra.mxu0 %v4417
        %4535 = vmatprep.subr.bf16.mxu0 0
        %4536 = vmatpush2.bf16.msra.mxu0 %v4416
        %4537 = vmatprep.subr.bf16.mxu0 0
        %4538 = vmatpush2.bf16.msra.mxu0 %v4415
        %4539 = vmatprep.subr.bf16.mxu0 0
        %4540 = vmatpush2.bf16.msra.mxu0 %v4414
        %4541 = vmatprep.subr.bf16.mxu0 0
        %4542 = vmatpush2.bf16.msra.mxu0 %v4413
        %4543 = vmatprep.mubr.bf16.mxu0 %v4081
        %4544 = vmatmul.mubr.bf16.gmra.mxu0 %v4037
        %v4545 = vpop.f32.mrf.mxu0
        %v4546 = vadd.f32 %v4203, %v4545
        %v4547 = vpop.f32.mrf.mxu0
        %v4548 = vpop.f32.mrf.mxu0
        %v4549 = vpop.f32.mrf.mxu0
        %4550 = vdwg.mxu0
        %4551 = vmatprep.subr.bf16.mxu0 0
        %4552 = vmatpush1.bf16.msra.mxu0 %v4428
        %4553 = vmatprep.subr.bf16.mxu0 0
        %4554 = vmatpush1.bf16.msra.mxu0 %v4427
        %4555 = vmatprep.subr.bf16.mxu0 0
        %4556 = vmatpush1.bf16.msra.mxu0 %v4426
        %4557 = vmatprep.subr.bf16.mxu0 0
        %4558 = vmatpush1.bf16.msra.mxu0 %v4425
        %4559 = vmatprep.subr.bf16.mxu0 0
        %4560 = vmatpush1.bf16.msra.mxu0 %v4424
        %4561 = vmatprep.subr.bf16.mxu0 0
        %4562 = vmatpush1.bf16.msra.mxu0 %v4423
        %4563 = vmatprep.subr.bf16.mxu0 0
        %4564 = vmatpush1.bf16.msra.mxu0 %v4422
        %4565 = vmatprep.subr.bf16.mxu0 0
        %4566 = vmatpush1.bf16.msra.mxu0 %v4421
        %4567 = vmatprep.subr.bf16.mxu0 0
        %4568 = vmatpush2.bf16.msra.mxu0 %v4436
        %4569 = vmatprep.subr.bf16.mxu0 0
        %4570 = vmatpush2.bf16.msra.mxu0 %v4435
        %4571 = vmatprep.subr.bf16.mxu0 0
        %4572 = vmatpush2.bf16.msra.mxu0 %v4434
        %4573 = vmatprep.subr.bf16.mxu0 0
        %4574 = vmatpush2.bf16.msra.mxu0 %v4433
        %4575 = vmatprep.subr.bf16.mxu0 0
        %4576 = vmatpush2.bf16.msra.mxu0 %v4432
        %4577 = vmatprep.subr.bf16.mxu0 0
        %4578 = vmatpush2.bf16.msra.mxu0 %v4431
        %4579 = vmatprep.subr.bf16.mxu0 0
        %4580 = vmatpush2.bf16.msra.mxu0 %v4430
        %4581 = vmatprep.subr.bf16.mxu0 0
        %4582 = vmatpush2.bf16.msra.mxu0 %v4429
        %4583 = vmatprep.mubr.bf16.mxu0 %v4091
        %4584 = vmatmul.mubr.bf16.gmra.mxu0 %v4086
        %v4585 = vpop.f32.mrf.mxu0
        %v4586 = vadd.f32 %v4546, %v4585
        %v4587 = vpop.f32.mrf.mxu0
        %v4588 = vpop.f32.mrf.mxu0
        %v4589 = vpop.f32.mrf.mxu0
        %4590 = vdwg.mxu0
        %4591 = vmatprep.subr.bf16.mxu0 0
        %4592 = vmatpush1.bf16.msra.mxu0 %v4444
        %4593 = vmatprep.subr.bf16.mxu0 0
        %4594 = vmatpush1.bf16.msra.mxu0 %v4443
        %4595 = vmatprep.subr.bf16.mxu0 0
        %4596 = vmatpush1.bf16.msra.mxu0 %v4442
        %4597 = vmatprep.subr.bf16.mxu0 0
        %4598 = vmatpush1.bf16.msra.mxu0 %v4441
        %4599 = vmatprep.subr.bf16.mxu0 0
        %4600 = vmatpush1.bf16.msra.mxu0 %v4440
        %4601 = vmatprep.subr.bf16.mxu0 0
        %4602 = vmatpush1.bf16.msra.mxu0 %v4439
        %4603 = vmatprep.subr.bf16.mxu0 0
        %4604 = vmatpush1.bf16.msra.mxu0 %v4438
        %4605 = vmatprep.subr.bf16.mxu0 0
        %4606 = vmatpush1.bf16.msra.mxu0 %v4437
        %4607 = vmatprep.subr.bf16.mxu0 0
        %4608 = vmatpush2.bf16.msra.mxu0 %v4452
        %4609 = vmatprep.subr.bf16.mxu0 0
        %4610 = vmatpush2.bf16.msra.mxu0 %v4451
        %4611 = vmatprep.subr.bf16.mxu0 0
        %4612 = vmatpush2.bf16.msra.mxu0 %v4450
        %4613 = vmatprep.subr.bf16.mxu0 0
        %4614 = vmatpush2.bf16.msra.mxu0 %v4449
        %4615 = vmatprep.subr.bf16.mxu0 0
        %4616 = vmatpush2.bf16.msra.mxu0 %v4448
        %4617 = vmatprep.subr.bf16.mxu0 0
        %4618 = vmatpush2.bf16.msra.mxu0 %v4447
        %4619 = vmatprep.subr.bf16.mxu0 0
        %4620 = vmatpush2.bf16.msra.mxu0 %v4446
        %4621 = vmatprep.subr.bf16.mxu0 0
        %4622 = vmatpush2.bf16.msra.mxu0 %v4445
        %4623 = vmatprep.mubr.bf16.mxu0 %v4076
        %4624 = vmatmul.mubr.bf16.gmra.mxu0 %v4096
        %v4625 = vpop.f32.mrf.mxu0
        %v4626 = vadd.f32 %v4586, %v4625
        %v4627 = vpop.f32.mrf.mxu0
        %v4628 = vpop.f32.mrf.mxu0
        %v4629 = vpop.f32.mrf.mxu0
        %4630 = vdwg.mxu0
        %4631 = vmatprep.subr.bf16.mxu0 0
        %4632 = vmatpush1.bf16.msra.mxu0 0
        %4633 = vmatprep.subr.bf16.mxu0 0
        %4634 = vmatpush1.bf16.msra.mxu0 0
        %4635 = vmatprep.subr.bf16.mxu0 0
        %4636 = vmatpush1.bf16.msra.mxu0 0
        %4637 = vmatprep.subr.bf16.mxu0 0
        %4638 = vmatpush1.bf16.msra.mxu0 0
        %4639 = vmatprep.subr.bf16.mxu0 0
        %4640 = vmatpush1.bf16.msra.mxu0 0
        %4641 = vmatprep.subr.bf16.mxu0 0
        %4642 = vmatpush1.bf16.msra.mxu0 0
        %4643 = vmatprep.subr.bf16.mxu0 0
        %4644 = vmatpush1.bf16.msra.mxu0 %v4509
        %4645 = vmatprep.subr.bf16.mxu0 0
        %4646 = vmatpush1.bf16.msra.mxu0 %v4453
        %4647 = vmatprep.subr.bf16.mxu0 0
        %4648 = vmatpush2.bf16.msra.mxu0 0
        %4649 = vmatprep.subr.bf16.mxu0 0
        %4650 = vmatpush2.bf16.msra.mxu0 0
        %4651 = vmatprep.subr.bf16.mxu0 0
        %4652 = vmatpush2.bf16.msra.mxu0 0
        %4653 = vmatprep.subr.bf16.mxu0 0
        %4654 = vmatpush2.bf16.msra.mxu0 0
        %4655 = vmatprep.subr.bf16.mxu0 0
        %4656 = vmatpush2.bf16.msra.mxu0 0
        %4657 = vmatprep.subr.bf16.mxu0 0
        %4658 = vmatpush2.bf16.msra.mxu0 0
        %4659 = vmatprep.subr.bf16.mxu0 0
        %4660 = vmatpush2.bf16.msra.mxu0 0
        %4661 = vmatprep.subr.bf16.mxu0 0
        %4662 = vmatpush2.bf16.msra.mxu0 0
        %4663 = vmatprep.mubr.bf16.mxu0 0
        %4664 = vmatmul.mubr.bf16.gmra.mxu0 %v4506
        %v4665 = vpop.f32.mrf.mxu0
        %v4666 = vadd.f32 %v4626, %v4665
        %v4667 = vpop.f32.mrf.mxu0
        %v4668 = vpop.f32.mrf.mxu0
        %v4669 = vpop.f32.mrf.mxu0
        %4670 = vdwg.mxu0
        %v4671 = vpack.c.bf16 %v4666, %v4666
        %v4672 = vld [vmem:[%s9] sm:$0xf]
        %v4673 = vld [vmem:[%s9 + $0x4] sm:$0xf]
        %v4674 = vld [vmem:[%s9 + $0x8] sm:$0xf]
        %v4675 = vld [vmem:[%s9 + $0xc] sm:$0xf]
        %v4676 = vld [vmem:[%s9 + $0x10] sm:$0xf]
        %v4677 = vld [vmem:[%s9 + $0x14] sm:$0xf]
        %v4678 = vld [vmem:[%s9 + $0x18] sm:$0xf]
        %v4679 = vld [vmem:[%s9 + $0x1c] sm:$0xf]
        %v4680 = vld [vmem:[%s9 + $0x20] sm:$0xf]
        %v4681 = vld [vmem:[%s9 + $0x24] sm:$0xf]
        %v4682 = vld [vmem:[%s9 + $0x28] sm:$0xf]
        %v4683 = vld [vmem:[%s9 + $0x2c] sm:$0xf]
        %v4684 = vld [vmem:[%s9 + $0x30] sm:$0xf]
        %v4685 = vld [vmem:[%s9 + $0x34] sm:$0xf]
        %v4686 = vld [vmem:[%s9 + $0x38] sm:$0xf]
        %v4687 = vld [vmem:[%s10] sm:$0x1]
        %v4689 = vlaneseq
        %v4690 = vshrl.u32 %v4689, 7
        %v4691 = vsub.s32 0, %v4690
        %v4692 = vrot.slane %v4687, %v4691
        %v4709 = vunpack.c.l.b16 %v4672
        %v4710 = vunpack.c.l.b16 %v4673
        %v4711 = vunpack.c.l.b16 %v4674
        %v4712 = vunpack.c.l.b16 %v4675
        %v4713 = vunpack.c.l.b16 %v4676
        %v4714 = vunpack.c.l.b16 %v4677
        %v4715 = vunpack.c.l.b16 %v4678
        %v4716 = vunpack.c.l.b16 %v4679
        %v4717 = vunpack.c.l.b16 %v4680
        %v4718 = vunpack.c.l.b16 %v4681
        %v4719 = vunpack.c.l.b16 %v4682
        %v4720 = vunpack.c.l.b16 %v4683
        %v4721 = vunpack.c.l.b16 %v4684
        %v4722 = vunpack.c.l.b16 %v4685
        %v4723 = vunpack.c.l.b16 %v4686
        %v4724 = vpack.c.b16 %v4710, %v4709
        %v4725 = vpack.c.b16 %v4712, %v4711
        %v4726 = vpack.c.b16 %v4714, %v4713
        %v4727 = vpack.c.b16 %v4716, %v4715
        %v4728 = vpack.c.b16 %v4718, %v4717
        %v4729 = vpack.c.b16 %v4720, %v4719
        %v4730 = vpack.c.b16 %v4722, %v4721
        %v4731 = vpack.c.b16 %v4723, %v4723
        %vm4739 = vcmask 982016
        %v4741 = vsel %vm4739, %v4671, 0
        %vm4743 = vcmask 1043456
        %v4745 = vsel %vm4743, %v4731, 0
        %4747 = vmatprep.subr.bf16.mxu0 0
        %4748 = vmatpush1.bf16.msra.mxu0 %v4745
        %4749 = vmatprep.subr.bf16.mxu0 0
        %4750 = vmatpush1.bf16.msra.mxu0 %v4730
        %4751 = vmatprep.subr.bf16.mxu0 0
        %4752 = vmatpush1.bf16.msra.mxu0 %v4729
        %4753 = vmatprep.subr.bf16.mxu0 0
        %4754 = vmatpush1.bf16.msra.mxu0 %v4728
        %4755 = vmatprep.subr.bf16.mxu0 0
        %4756 = vmatpush1.bf16.msra.mxu0 %v4727
        %4757 = vmatprep.subr.bf16.mxu0 0
        %4758 = vmatpush1.bf16.msra.mxu0 %v4726
        %4759 = vmatprep.subr.bf16.mxu0 0
        %4760 = vmatpush1.bf16.msra.mxu0 %v4725
        %4761 = vmatprep.subr.bf16.mxu0 0
        %4762 = vmatpush1.bf16.msra.mxu0 %v4724
        %4763 = vmatprep.subr.bf16.mxu0 0
        %4764 = vmatpush2.bf16.msra.mxu0 0
        %4765 = vmatprep.subr.bf16.mxu0 0
        %4766 = vmatpush2.bf16.msra.mxu0 0
        %4767 = vmatprep.subr.bf16.mxu0 0
        %4768 = vmatpush2.bf16.msra.mxu0 0
        %4769 = vmatprep.subr.bf16.mxu0 0
        %4770 = vmatpush2.bf16.msra.mxu0 0
        %4771 = vmatprep.subr.bf16.mxu0 0
        %4772 = vmatpush2.bf16.msra.mxu0 0
        %4773 = vmatprep.subr.bf16.mxu0 0
        %4774 = vmatpush2.bf16.msra.mxu0 0
        %4775 = vmatprep.subr.bf16.mxu0 0
        %4776 = vmatpush2.bf16.msra.mxu0 0
        %4777 = vmatprep.subr.bf16.mxu0 0
        %4778 = vmatpush2.bf16.msra.mxu0 0
        %4779 = vmatprep.mubr.bf16.mxu0 0
        %4780 = vmatmul.mubr.bf16.gmra.mxu0 %v4741
        %v4781 = vpop.f32.mrf.mxu0
        %v4782 = vadd.f32 %v4692, %v4781
        %v4783 = vpop.f32.mrf.mxu0
        %v4784 = vpop.f32.mrf.mxu0
        %v4785 = vpop.f32.mrf.mxu0
        %4786 = vdwg.mxu0
        %v4787 = vpack.c.bf16 %v4782, %v4782
        %v4788 = vld [vmem:[%s11] sm:$0xf]
        %v4789 = vld [vmem:[%s11 + $0x4] sm:$0xf]
        %v4790 = vld [vmem:[%s11 + $0x8] sm:$0xf]
        %v4791 = vld [vmem:[%s11 + $0xc] sm:$0xf]
        %v4792 = vld [vmem:[%s11 + $0x10] sm:$0xf]
        %v4793 = vld [vmem:[%s11 + $0x14] sm:$0xf]
        %v4794 = vld [vmem:[%s11 + $0x18] sm:$0xf]
        %v4795 = vld [vmem:[%s11 + $0x1c] sm:$0xf]
        %v4796 = vld [vmem:[%s11 + $0x20] sm:$0xf]
        %v4797 = vld [vmem:[%s11 + $0x24] sm:$0xf]
        %v4798 = vld [vmem:[%s11 + $0x28] sm:$0x3]
        %v4799 = vld [vmem:[%s12] sm:$0x1]
        %v4801 = vlaneseq
        %v4802 = vshrl.u32 %v4801, 7
        %v4803 = vsub.s32 0, %v4802
        %v4804 = vrot.slane %v4799, %v4803
        %v4817 = vunpack.c.l.b16 %v4788
        %v4818 = vunpack.c.l.b16 %v4789
        %v4819 = vunpack.c.l.b16 %v4790
        %v4820 = vunpack.c.l.b16 %v4791
        %v4821 = vunpack.c.l.b16 %v4792
        %v4822 = vunpack.c.l.b16 %v4793
        %v4823 = vunpack.c.l.b16 %v4794
        %v4824 = vunpack.c.l.b16 %v4795
        %v4825 = vunpack.c.l.b16 %v4796
        %v4826 = vunpack.c.l.b16 %v4797
        %v4827 = vunpack.c.l.b16 %v4798
        %v4828 = vpack.c.b16 %v4818, %v4817
        %v4829 = vpack.c.b16 %v4820, %v4819
        %v4830 = vpack.c.b16 %v4822, %v4821
        %v4831 = vpack.c.b16 %v4824, %v4823
        %v4832 = vpack.c.b16 %v4826, %v4825
        %v4833 = vpack.c.b16 %v4827, %v4827
        %vm4839 = vcmask 687104
        %v4841 = vsel %vm4839, %v4787, 0
        %v4844 = vsel %vm3270, %v4833, 0
        %4846 = vmatprep.subr.bf16.mxu0 0
        %4847 = vmatpush1.bf16.msra.mxu0 0
        %4848 = vmatprep.subr.bf16.mxu0 0
        %4849 = vmatpush1.bf16.msra.mxu0 0
        %4850 = vmatprep.subr.bf16.mxu0 0
        %4851 = vmatpush1.bf16.msra.mxu0 %v4844
        %4852 = vmatprep.subr.bf16.mxu0 0
        %4853 = vmatpush1.bf16.msra.mxu0 %v4832
        %4854 = vmatprep.subr.bf16.mxu0 0
        %4855 = vmatpush1.bf16.msra.mxu0 %v4831
        %4856 = vmatprep.subr.bf16.mxu0 0
        %4857 = vmatpush1.bf16.msra.mxu0 %v4830
        %4858 = vmatprep.subr.bf16.mxu0 0
        %4859 = vmatpush1.bf16.msra.mxu0 %v4829
        %4860 = vmatprep.subr.bf16.mxu0 0
        %4861 = vmatpush1.bf16.msra.mxu0 %v4828
        %4862 = vmatprep.subr.bf16.mxu0 0
        %4863 = vmatpush2.bf16.msra.mxu0 0
        %4864 = vmatprep.subr.bf16.mxu0 0
        %4865 = vmatpush2.bf16.msra.mxu0 0
        %4866 = vmatprep.subr.bf16.mxu0 0
        %4867 = vmatpush2.bf16.msra.mxu0 0
        %4868 = vmatprep.subr.bf16.mxu0 0
        %4869 = vmatpush2.bf16.msra.mxu0 0
        %4870 = vmatprep.subr.bf16.mxu0 0
        %4871 = vmatpush2.bf16.msra.mxu0 0
        %4872 = vmatprep.subr.bf16.mxu0 0
        %4873 = vmatpush2.bf16.msra.mxu0 0
        %4874 = vmatprep.subr.bf16.mxu0 0
        %4875 = vmatpush2.bf16.msra.mxu0 0
        %4876 = vmatprep.subr.bf16.mxu0 0
        %4877 = vmatpush2.bf16.msra.mxu0 0
        %4878 = vmatprep.mubr.bf16.mxu0 0
        %4879 = vmatmul.mubr.bf16.gmra.mxu0 %v4841
        %v4880 = vpop.f32.mrf.mxu0
        %v4881 = vadd.f32 %v4804, %v4880
        %v4882 = vpop.f32.mrf.mxu0
        %v4883 = vpop.f32.mrf.mxu0
        %v4884 = vpop.f32.mrf.mxu0
        %4885 = vdwg.mxu0
        %4886 = vmax.xlane.f32.xlu0 %v4881
        %v4887 = vpop.xlane.xlu0 %4886
        %v4888 = vsub.f32 %v4881, %v4887
        %v4889 = vmul.f32 %v4888, 1.442695
        %v4890 = vpow.pop %v4889
        %4891 = vadd.xlane.f32.xlu0 %v4890
        %v4892 = vpop.xlane.xlu0 %4891
        %v4893 = vrcp.pop %v4892
        %v4894 = vmul.f32 %v4890, %v4893
        %4895 = vst [vmem:[%s434] sm:$0xff] %v4894
        %s4896 = sand.u32 %s313, 1
        %s4897 = scalar_lea.sflag [#allocation3], %s4896
        %s4898 = sand.u32 %s313, 1
        %s4899 = smul.addr %s4898, 8
        %s4900 = scalar_lea.vmem [#allocation2], %s4899
        // Predicated region
        $region73: #{lenet5_forward.1} parent=71 // pred_check
          %p4901 = pneg %p323
        $region74: #{lenet5_forward.1} parent=71 // pred_check_branch
          %4903 = sbr.rel (%p4901) target = $region76
        $region75: #{lenet5_forward.1} parent=71 // pred_region
          %s4905 = ssub.s32 128, 128
          %4906 = vsyncadd %s4897, %s4905
          %s4907 = smul.addr %s27, 128
          %s4908 = scalar_lea.hbm %s13, %s4907
          %s4910 = sshll.u32 %s4900, 4
          %s4911 = int_to_ptr.vmem [resolvable:$true] %s4910
          %4913 = dma.vmem_to_hbm [thread:$0]  %s4911, 128, %s4908, %s4897
        $region76: #{lenet5_forward.1} parent=71 // pred_fallthru
          _
      $region72: #{lenet5_forward.1} parent=5 // pred_fallthru
        _
      %p4914 = scmp.le.s32.totalorder 2, %s22
      // Predicated region
      $region77: #{lenet5_forward.1} parent=5 // pred_check
        %p4915 = pneg %p4914
      $region78: #{lenet5_forward.1} parent=5 // pred_check_branch
        %4917 = sbr.rel (%p4915) target = $region80
      $region79: #{lenet5_forward.1} parent=5 // pred_region
        %s4918 = ssub.s32 %s22, 2
        // Predicated region
        $region81: #{lenet5_forward.1} parent=79 // pred_check
          %p4919 = pneg %p329
        $region82: #{lenet5_forward.1} parent=79 // pred_check_branch
          %4921 = sbr.rel (%p4919) target = $region84
        $region83: #{lenet5_forward.1} parent=79 // pred_region
          %s4922 = sand.u32 %s314, 1
          %s4923 = scalar_lea.sflag [#allocation3], %s4922
          %s4924 = sand.u32 %s314, 1
          %s4925 = smul.addr %s4924, 8
          %s4926 = scalar_lea.vmem [#allocation2], %s4925
          %4927 = dma.done %s4923, 128
        $region84: #{lenet5_forward.1} parent=79 // pred_fallthru
          _
      $region80: #{lenet5_forward.1} parent=5 // pred_fallthru
        _
    $region6: #{lenet5_forward.1} parent=1 // loop_footer
      %s26 = sadd.s32 1, %s22
    $region7: #{lenet5_forward.1} parent=1 // loop_footer_branch
      %21 = sbr.rel target = $region3
    $region8: #{lenet5_forward.1} parent=1 // loop_exit
      _
    %4928 = vsyncpa [#allocation3], 1
    %s4929 = scalar_lea.sflag [#allocation3], 1
    %4930 = vsyncpa %s4929, 1

</llo_original>
